<compile_context>
chip_gen: v7x
topology: tpu7x:2x2x1
jax: 0.10.0
libtpu: 0.0.40
codegen_flags: <defaults>
</compile_context>

<pallas_src>
import functools

import jax
import jax.numpy as jnp
from jax.experimental import pallas as pl
from jax.experimental.pallas import tpu as pltpu

_SMEM = pltpu.MemorySpace.SMEM

ACT_DTYPE = jnp.bfloat16          # backbone activation / weight dtype

# torchvision VGG16_Weights.IMAGENET1K_V1 transforms()
IMAGENET_MEAN = (0.485, 0.456, 0.406)
IMAGENET_STD = (0.229, 0.224, 0.225)

# VGG16 `features` conv stack: (Cin, Cout) per 3x3 conv (stride 1, pad 1),
# grouped into the 5 post-activation perceptual slices
# (VGG_SLICES_POST_ACTIVATION['vgg16'] = [(0,4),(4,9),(9,16),(16,23),(23,30)]).
# Every conv is followed by ReLU; a 2x2 max-pool precedes slices 2..5.
VGG16_CONVS = [(3, 64), (64, 64),
               (64, 128), (128, 128),
               (128, 256), (256, 256), (256, 256),
               (256, 512), (512, 512), (512, 512),
               (512, 512), (512, 512), (512, 512)]
SLICE_CONV_IDS = [[0, 1], [2, 3], [4, 5, 6], [7, 8, 9], [10, 11, 12]]


def _detect_vmem_bytes():
    """Physical VMEM per TensorCore; conservative (v7x-safe) fallback."""
    try:
        return int(pltpu.get_tpu_info().vmem_capacity_bytes)
    except Exception:
        return 64 * 1024 * 1024


_VMEM_PHYS = _detect_vmem_bytes()
if _VMEM_PHYS >= 128 * 1024 * 1024:        # v5e / v6e (128 MiB physical)
    VMEM_LIMIT = 96 * 1024 * 1024
    MAX_ROW_TILE = 32
    L1_BLOCK_BUDGET = 24 * 1024 * 1024
else:                                       # v7x (64 MiB) or unknown
    VMEM_LIMIT = 48 * 1024 * 1024
    MAX_ROW_TILE = 16
    L1_BLOCK_BUDGET = 12 * 1024 * 1024


def _pick_tile(n, max_tile, multiple=1):
    """Largest t <= max_tile that divides n and is a multiple of `multiple`.

    Note: prime n (e.g. 227) degrades to t=1 -- a perf cliff, not a bug.
    """
    best = None
    for t in range(1, min(n, max_tile) + 1):
        if n % t == 0 and t % multiple == 0:
            best = t
    return best if best is not None else n


# ------------------------------ Pallas kernels ------------------------------
def _conv3x3_kernel(x_top_ref, x_mid_ref, x_bot_ref, w_ref, b_ref, *rest,
                    fuse_pool):
    """Fused 3x3 conv (pad=1) + bias + ReLU [+ 2x2 max-pool] on one row tile.

    x_mid_ref: (1, TH, W, Cin) rows of this tile                    [bf16]
    x_top_ref: (1, 1, W, Cin)  row above the tile (clamped at top edge)
    x_bot_ref: (1, 1, W, Cin)  row below the tile (clamped at bottom edge)
    w_ref    : (3, 3*Cin, Cout)  (kh, kw-major x Cin, Cout)         [bf16]
    b_ref    : (1, Cout) f32
    out      : (1, TH, W, Cout); pooled out (1, TH//2, W//2, Cout) if fused.
    scratch  : VMEM (TH+2, W+2, Cin) zero-padded input tile.
    """
    out_ref = rest[0]
    pool_ref = rest[1] if fuse_pool else None
    scratch = rest[-1]

    th, wd, cin = x_mid_ref.shape[1], x_mid_ref.shape[2], x_mid_ref.shape[3]
    cout = out_ref.shape[3]
    cdt = x_mid_ref.dtype

    i = pl.program_id(1)
    nh = pl.num_programs(1)

    # Zero only the 1-wide border ring (the conv's zero padding); the interior
    # and (when they exist) the halo rows are overwritten below.
    scratch[0:1, :, :] = jnp.zeros((1, wd + 2, cin), cdt)
    scratch[th + 1:th + 2, :, :] = jnp.zeros((1, wd + 2, cin), cdt)
    scratch[1:th + 1, 0:1, :] = jnp.zeros((th, 1, cin), cdt)
    scratch[1:th + 1, wd + 1:wd + 2, :] = jnp.zeros((th, 1, cin), cdt)

    scratch[1:th + 1, 1:wd + 1, :] = x_mid_ref[0]

    @pl.when(i > 0)
    def _():
        scratch[0:1, 1:wd + 1, :] = x_top_ref[0]

    @pl.when(i < nh - 1)
    def _():
        scratch[th + 1:th + 2, 1:wd + 1, :] = x_bot_ref[0]

    if cin <= 16:
        # conv0 (Cin=3): single K = 9*Cin im2col matmul.
        # TODO(synk): lane width here is only Cin=3; repacking W into lanes
        # would raise utilization but is not done in this version.
        taps = []
        for kh in range(3):
            taps.append(jnp.concatenate(
                [scratch[kh:kh + th, kw:kw + wd, :] for kw in range(3)],
                axis=-1).reshape(th * wd, 3 * cin))
        a_full = jnp.concatenate(taps, axis=-1)            # (TH*W, 9*Cin)
        w_full = w_ref[...].reshape(9 * cin, cout)
        acc = jnp.dot(a_full, w_full, preferred_element_type=jnp.float32)
    else:
        # 9 accumulating K=Cin matmuls over shifted scratch windows; avoids the
        # kw-concat im2col temporaries entirely.
        acc = jnp.zeros((th * wd, cout), jnp.float32)
        for kh in range(3):
            for kw in range(3):
                a = scratch[kh:kh + th, kw:kw + wd, :].reshape(th * wd, cin)
                acc = acc + jnp.dot(a, w_ref[kh, kw * cin:(kw + 1) * cin, :],
                                    preferred_element_type=jnp.float32)

    acc = acc + b_ref[...].astype(jnp.float32)             # (1, Cout) broadcast
    acc = jnp.maximum(acc, 0.0)                            # ReLU in f32
    out_ref[...] = acc.reshape(1, th, wd, cout).astype(out_ref.dtype)

    if fuse_pool:
        # 2x2 max-pool (stride 2) computed from the in-register f32 acc
        # (no store -> strided-load round trip on the just-written block).
        y = acc.reshape(th, wd // 2, 2, cout)
        y = jnp.maximum(y[:, :, 0, :], y[:, :, 1, :])      # (TH, W//2, Cout)
        y = y.reshape(th // 2, 2, wd // 2, cout)
        y = jnp.maximum(y[:, 0, :, :], y[:, 1, :, :])      # (TH//2, W//2, Cout)
        pool_ref[...] = y.reshape(1, th // 2, wd // 2, cout).astype(
            pool_ref.dtype)


def _l1_partial_kernel(a_ref, b_ref, o_ref):
    """Accumulate sum(|a - b|) over the grid into a single SMEM scalar."""
    @pl.when((pl.program_id(0) == 0) & (pl.program_id(1) == 0))
    def _():
        o_ref[0, 0] = jnp.float32(0.0)

    d = a_ref[...].astype(jnp.float32) - b_ref[...].astype(jnp.float32)
    o_ref[0, 0] = o_ref[0, 0] + jnp.sum(jnp.abs(d))


# ------------------------------ kernel wrappers ------------------------------
def conv3x3_relu(x, w, b, *, fuse_pool=False):
    """Fused 3x3 conv (stride 1, pad 1) + bias + ReLU [+ 2x2 max-pool].

    x: (N, H, W, Cin) bf16 NHWC.  w: (3, 3*Cin, Cout) bf16.  b: (1, Cout) f32.
    Returns (N, H, W, Cout) features; if fuse_pool, also the pooled
    (N, H//2, W//2, Cout) tensor for the next slice.
    """
    n, h, wd, cin = x.shape
    cout = w.shape[-1]
    if fuse_pool:
        assert h % 2 == 0 and wd % 2 == 0, "fused 2x2 pool needs even H, W"
        th = _pick_tile(h, MAX_ROW_TILE, multiple=2)
    else:
        th = _pick_tile(h, MAX_ROW_TILE)
    hb = h // th
    grid = (n, hb)

    x_mid = pl.BlockSpec((1, th, wd, cin), lambda bi, hi: (bi, hi, 0, 0))
    # Single-row halo blocks: block size 1 along H, so the index map returns a
    # row index directly; it is clamped at the image edges and the kernel
    # leaves those scratch rows zero (= the conv's zero padding).
    x_top = pl.BlockSpec(
        (1, 1, wd, cin),
        lambda bi, hi: (bi, jnp.maximum(hi * th - 1, 0), 0, 0))
    x_bot = pl.BlockSpec(
        (1, 1, wd, cin),
        lambda bi, hi: (bi, jnp.minimum(hi * th + th, h - 1), 0, 0))
    # Full-Cout weight block with a constant index map -> stays VMEM-resident
    # across all grid steps (no per-row-tile weight re-DMA).
    w_spec = pl.BlockSpec((3, 3 * cin, cout), lambda bi, hi: (0, 0, 0))
    b_spec = pl.BlockSpec((1, cout), lambda bi, hi: (0, 0))
    feat_spec = pl.BlockSpec((1, th, wd, cout), lambda bi, hi: (bi, hi, 0, 0))

    feat_shape = jax.ShapeDtypeStruct((n, h, wd, cout), ACT_DTYPE)
    if fuse_pool:
        pool_spec = pl.BlockSpec((1, th // 2, wd // 2, cout),
                                 lambda bi, hi: (bi, hi, 0, 0))
        out_shape = (feat_shape,
                     jax.ShapeDtypeStruct((n, h // 2, wd // 2, cout),
                                          ACT_DTYPE))
        out_specs = (feat_spec, pool_spec)
    else:
        out_shape = feat_shape
        out_specs = feat_spec

    kernel = functools.partial(_conv3x3_kernel, fuse_pool=fuse_pool)
    return pl.pallas_call(
        kernel,
        grid=grid,
        in_specs=[x_top, x_mid, x_bot, w_spec, b_spec],
        out_specs=out_specs,
        out_shape=out_shape,
        scratch_shapes=[pltpu.VMEM((th + 2, wd + 2, cin), ACT_DTYPE)],
        compiler_params=pltpu.CompilerParams(
            dimension_semantics=("parallel", "parallel"),
            vmem_limit_bytes=VMEM_LIMIT),
    )(x, x, x, w, b)


def l1_mean(feats, batch):
    """mean(|feats[:batch] - feats[batch:]|) via a gridded SMEM accumulator.

    `feats` is the concatenated (input, target) feature map; both halves are
    read from the same HBM array via two BlockSpecs (no slicing/copies).
    """
    n2, h, w, c = feats.shape
    assert n2 == 2 * batch
    bytes_per_row = w * c * jnp.dtype(feats.dtype).itemsize
    # Size row blocks from the VMEM budget: 2 inputs x 2 pipeline buffers.
    max_rows = max(1, int(L1_BLOCK_BUDGET // (4 * bytes_per_row)))
    th = _pick_tile(h, min(h, max_rows))
    hb = h // th

    total = pl.pallas_call(
        _l1_partial_kernel,
        grid=(batch, hb),
        in_specs=[
            pl.BlockSpec((1, th, w, c), lambda bi, hi: (bi, hi, 0, 0)),
            pl.BlockSpec((1, th, w, c), lambda bi, hi: (bi + batch, hi, 0, 0)),
        ],
        out_specs=pl.BlockSpec((1, 1), lambda bi, hi: (0, 0),
                               memory_space=_SMEM),
        out_shape=jax.ShapeDtypeStruct((1, 1), jnp.float32),
        compiler_params=pltpu.CompilerParams(
            dimension_semantics=("arbitrary", "arbitrary"),
            vmem_limit_bytes=VMEM_LIMIT),
    )(feats, feats)
    return total[0, 0] / float(batch * h * w * c)


# ------------------------------ backbone / loss ------------------------------
def init_vgg16_params(key):
    """Deterministic He-normal init; weights pre-folded to (3, 3*Cin, Cout) bf16."""
    params = []
    for cin, cout in VGG16_CONVS:
        key, kw_, kb_ = jax.random.split(key, 3)
        std = (2.0 / (9.0 * cin)) ** 0.5
        w = jax.random.normal(kw_, (3, 3, cin, cout), jnp.float32) * std
        b = jax.random.normal(kb_, (cout,), jnp.float32) * 0.01
        params.append((w.reshape(3, 3 * cin, cout).astype(ACT_DTYPE),
                       b.reshape(1, cout)))
    return params


def vgg16_perceptual_features(x, params):
    """Returns the 5 post-activation VGG16 feature maps (NHWC, bf16)."""
    feats = []
    for sidx, conv_ids in enumerate(SLICE_CONV_IDS):
        last_j = len(conv_ids) - 1
        pool_after = sidx < len(SLICE_CONV_IDS) - 1  # pool precedes slices 2..5
        feat = x
        for j, ci in enumerate(conv_ids):
            w, b = params[ci]
            fuse_pool = (j == last_j) and pool_after
            out = conv3x3_relu(x, w, b, fuse_pool=fuse_pool)
            if fuse_pool:
                feat, x = out     # (unpooled feature, pooled next-slice input)
            else:
                x = out
                if j == last_j:
                    feat = out
        feats.append(feat)
    return feats


class PerceptualLossPallas:
    """JAX/Pallas mirror of the PyTorch PerceptualLoss (vgg16 backbone, L1)."""

    def __init__(self, params,
                 weights=(4.0 / 32, 8.0 / 32, 16.0 / 32, 24.0 / 32, 1.0),
                 do_normalize=True, start_after_iterations=5000, cnt=0):
        self.params = params
        self.weights = tuple(float(w) for w in weights)
        self.do_normalize = do_normalize
        self.start_after_iterations = start_after_iterations
        self.cnt = cnt

    def __call__(self, inp, tgt):
        # TODO(synk): self.cnt is Python-side state; under jit the warm-up gate
        # is baked in at trace time and does not count iterations.
        self.cnt += 1

        # Channel handling mirrors the PyTorch reference exactly, including
        # its quirky `input.size(3) > 3` check on the W dim of an NCHW tensor.
        if inp.shape[1] > 3 and inp.ndim == 4:
            inp = inp[:, :3, :, :]
        if inp.shape[3] > 3:
            inp = inp[:, :3, :, :]
        if inp.shape[1] == 1:
            inp = jnp.tile(inp, (1, 3, 1, 1))
        if tgt.shape[1] == 1:
            tgt = jnp.tile(tgt, (1, 3, 1, 1))

        x = jnp.transpose(inp, (0, 2, 3, 1)).astype(jnp.float32)  # NCHW->NHWC
        t = jax.lax.stop_gradient(
            jnp.transpose(tgt, (0, 2, 3, 1)).astype(jnp.float32))
        batch = x.shape[0]

        # Run the backbone once on the concatenated (input, target) batch.
        # Normalization is a cheap XLA elementwise op (matches PyTorch's
        # Normalize-then-conv-with-zero-padding semantics exactly).
        xt = jnp.concatenate([x, t], axis=0)
        if self.do_normalize:
            mean = jnp.asarray(IMAGENET_MEAN, jnp.float32).reshape(1, 1, 1, 3)
            std = jnp.asarray(IMAGENET_STD, jnp.float32).reshape(1, 1, 1, 3)
            xt = (xt - mean) / std
        xt = xt.astype(ACT_DTYPE)

        feats = vgg16_perceptual_features(xt, self.params)

        loss = jnp.float32(0.0)
        for i, f in enumerate(feats):
            loss = loss + l1_mean(f, batch) * self.weights[i]
        loss = loss / float(sum(self.weights))

        if self.cnt < self.start_after_iterations:
            loss = loss * 0.0
        return loss


if __name__ == "__main__":
    key = jax.random.PRNGKey(0)
    kp, ki, kt = jax.random.split(key, 3)

    params = init_vgg16_params(kp)
    # Small NCHW inputs consistent with the module: batch=2, C=3, 16x16.
    inp = jax.random.uniform(ki, (2, 3, 16, 16), jnp.float32)
    tgt = jax.random.uniform(kt, (2, 3, 16, 16), jnp.float32)

    # start_after_iterations=0 so the warm-up gate does not zero the loss
    # (module default is 5000, which would return 0 on the first call).
    loss_mod = PerceptualLossPallas(params, start_after_iterations=0)
    loss = loss_mod(inp, tgt)
    jax.block_until_ready(loss)

    assert loss.shape == () and bool(jnp.isfinite(loss))
    print("KERNEL_OK")
</pallas_src>

<mosaic_0001>
module attributes {stable_mosaic.version = 11 : i64} {
  func.func @_conv3x3_kernel(%arg0: i32, %arg1: i32, %arg2: memref<1x1x16x3xbf16, #tpu.memory_space<vmem>>, %arg3: memref<1x16x16x3xbf16, #tpu.memory_space<vmem>>, %arg4: memref<1x1x16x3xbf16, #tpu.memory_space<vmem>>, %arg5: memref<3x9x64xbf16, #tpu.memory_space<vmem>>, %arg6: memref<1x64xf32, #tpu.memory_space<vmem>>, %arg7: memref<1x16x16x64xbf16, #tpu.memory_space<vmem>>, %arg8: memref<18x18x3xbf16, #tpu.memory_space<vmem>>) attributes {dimension_semantics = [#tpu.dimension_semantics<parallel>, #tpu.dimension_semantics<parallel>], iteration_bounds = array<i64: 4, 1>, scalar_prefetch = 0 : i64, scratch_operands = 1 : i64, tpu.core_type = #tpu.core_type<tc>, window_params = [{transform_indices = @transform_0, window_bounds = array<i64: 1, 1, 16, 3>}, {transform_indices = @transform_1, window_bounds = array<i64: 1, 16, 16, 3>}, {transform_indices = @transform_2, window_bounds = array<i64: 1, 1, 16, 3>}, {pipeline_mode = #tpu.pipeline_mode<synchronous>, transform_indices = @transform_3, window_bounds = array<i64: 3, 9, 64>}, {pipeline_mode = #tpu.pipeline_mode<synchronous>, transform_indices = @transform_4, window_bounds = array<i64: 1, 64>}, {transform_indices = @transform_5, window_bounds = array<i64: 1, 16, 16, 64>}]} {
    %cst = arith.constant 0.000000e+00 : bf16
    %0 = vector.broadcast %cst : bf16 to vector<1x18x3xbf16>
    %c0 = arith.constant 0 : index
    %c0_0 = arith.constant 0 : index
    %c0_1 = arith.constant 0 : index
    %1 = vector.load %arg8[%c0, %c0_0, %c0_1] : memref<18x18x3xbf16, #tpu.memory_space<vmem>>, vector<1x18x3xbf16>
    tpu.vector_store %arg8[%c0, %c0_0, %c0_1], %0 {strides = array<i32>} : memref<18x18x3xbf16, #tpu.memory_space<vmem>>, vector<1x18x3xbf16>,
    %cst_2 = arith.constant 0.000000e+00 : bf16
    %2 = vector.broadcast %cst_2 : bf16 to vector<1x18x3xbf16>
    %c17 = arith.constant 17 : index
    %c0_3 = arith.constant 0 : index
    %c0_4 = arith.constant 0 : index
    %3 = vector.load %arg8[%c17, %c0_3, %c0_4] : memref<18x18x3xbf16, #tpu.memory_space<vmem>>, vector<1x18x3xbf16>
    tpu.vector_store %arg8[%c17, %c0_3, %c0_4], %2 {strides = array<i32>} : memref<18x18x3xbf16, #tpu.memory_space<vmem>>, vector<1x18x3xbf16>,
    %cst_5 = arith.constant 0.000000e+00 : bf16
    %4 = vector.broadcast %cst_5 : bf16 to vector<16x1x3xbf16>
    %c1 = arith.constant 1 : index
    %c0_6 = arith.constant 0 : index
    %c0_7 = arith.constant 0 : index
    %5 = vector.load %arg8[%c1, %c0_6, %c0_7] : memref<18x18x3xbf16, #tpu.memory_space<vmem>>, vector<16x1x3xbf16>
    tpu.vector_store %arg8[%c1, %c0_6, %c0_7], %4 {strides = array<i32>} : memref<18x18x3xbf16, #tpu.memory_space<vmem>>, vector<16x1x3xbf16>,
    %cst_8 = arith.constant 0.000000e+00 : bf16
    %6 = vector.broadcast %cst_8 : bf16 to vector<16x1x3xbf16>
    %c1_9 = arith.constant 1 : index
    %c17_10 = arith.constant 17 : index
    %c0_11 = arith.constant 0 : index
    %7 = vector.load %arg8[%c1_9, %c17_10, %c0_11] : memref<18x18x3xbf16, #tpu.memory_space<vmem>>, vector<16x1x3xbf16>
    tpu.vector_store %arg8[%c1_9, %c17_10, %c0_11], %6 {strides = array<i32>} : memref<18x18x3xbf16, #tpu.memory_space<vmem>>, vector<16x1x3xbf16>,
    %c0_12 = arith.constant 0 : index
    %c0_13 = arith.constant 0 : index
    %c0_14 = arith.constant 0 : index
    %c0_15 = arith.constant 0 : index
    %8 = vector.load %arg3[%c0_12, %c0_13, %c0_14, %c0_15] : memref<1x16x16x3xbf16, #tpu.memory_space<vmem>>, vector<1x16x16x3xbf16>
    %9 = vector.shape_cast %8 : vector<1x16x16x3xbf16> to vector<16x16x3xbf16>
    %c1_16 = arith.constant 1 : index
    %c1_17 = arith.constant 1 : index
    %c0_18 = arith.constant 0 : index
    %10 = vector.load %arg8[%c1_16, %c1_17, %c0_18] : memref<18x18x3xbf16, #tpu.memory_space<vmem>>, vector<16x16x3xbf16>
    tpu.vector_store %arg8[%c1_16, %c1_17, %c0_18], %9 {strides = array<i32>} : memref<18x18x3xbf16, #tpu.memory_space<vmem>>, vector<16x16x3xbf16>,
    %c0_i32 = arith.constant 0 : i32
    %11 = arith.cmpi sgt, %arg1, %c0_i32 : i32
    %12 = arith.extui %11 : i1 to i32
    %c0_i32_19 = arith.constant 0 : i32
    %13 = arith.cmpi ne, %12, %c0_i32_19 : i32
    scf.if %13 {
      %c0_59 = arith.constant 0 : index
      %c0_60 = arith.constant 0 : index
      %c0_61 = arith.constant 0 : index
      %c0_62 = arith.constant 0 : index
      %44 = vector.load %arg2[%c0_59, %c0_60, %c0_61, %c0_62] : memref<1x1x16x3xbf16, #tpu.memory_space<vmem>>, vector<1x1x16x3xbf16>
      %45 = vector.shape_cast %44 : vector<1x1x16x3xbf16> to vector<1x16x3xbf16>
      %c0_63 = arith.constant 0 : index
      %c1_64 = arith.constant 1 : index
      %c0_65 = arith.constant 0 : index
      %46 = vector.load %arg8[%c0_63, %c1_64, %c0_65] : memref<18x18x3xbf16, #tpu.memory_space<vmem>>, vector<1x16x3xbf16>
      tpu.vector_store %arg8[%c0_63, %c1_64, %c0_65], %45 {strides = array<i32>} : memref<18x18x3xbf16, #tpu.memory_space<vmem>>, vector<1x16x3xbf16>,
    } else {
    }
    %c0_i32_20 = arith.constant 0 : i32
    %14 = arith.cmpi slt, %arg1, %c0_i32_20 : i32
    %15 = arith.extui %14 : i1 to i32
    %c0_i32_21 = arith.constant 0 : i32
    %16 = arith.cmpi ne, %15, %c0_i32_21 : i32
    scf.if %16 {
      %c0_59 = arith.constant 0 : index
      %c0_60 = arith.constant 0 : index
      %c0_61 = arith.constant 0 : index
      %c0_62 = arith.constant 0 : index
      %44 = vector.load %arg4[%c0_59, %c0_60, %c0_61, %c0_62] : memref<1x1x16x3xbf16, #tpu.memory_space<vmem>>, vector<1x1x16x3xbf16>
      %45 = vector.shape_cast %44 : vector<1x1x16x3xbf16> to vector<1x16x3xbf16>
      %c17_63 = arith.constant 17 : index
      %c1_64 = arith.constant 1 : index
      %c0_65 = arith.constant 0 : index
      %46 = vector.load %arg8[%c17_63, %c1_64, %c0_65] : memref<18x18x3xbf16, #tpu.memory_space<vmem>>, vector<1x16x3xbf16>
      tpu.vector_store %arg8[%c17_63, %c1_64, %c0_65], %45 {strides = array<i32>} : memref<18x18x3xbf16, #tpu.memory_space<vmem>>, vector<1x16x3xbf16>,
    } else {
    }
    %c0_22 = arith.constant 0 : index
    %c0_23 = arith.constant 0 : index
    %c0_24 = arith.constant 0 : index
    %17 = vector.load %arg8[%c0_22, %c0_23, %c0_24] : memref<18x18x3xbf16, #tpu.memory_space<vmem>>, vector<16x16x3xbf16>
    %c0_25 = arith.constant 0 : index
    %c1_26 = arith.constant 1 : index
    %c0_27 = arith.constant 0 : index
    %18 = vector.load %arg8[%c0_25, %c1_26, %c0_27] : memref<18x18x3xbf16, #tpu.memory_space<vmem>>, vector<16x16x3xbf16>
    %c0_28 = arith.constant 0 : index
    %c2 = arith.constant 2 : index
    %c0_29 = arith.constant 0 : index
    %19 = vector.load %arg8[%c0_28, %c2, %c0_29] : memref<18x18x3xbf16, #tpu.memory_space<vmem>>, vector<16x16x3xbf16>
    %20 = tpu.concatenate %17, %18, %19 in 2 : vector<16x16x3xbf16>, vector<16x16x3xbf16>, vector<16x16x3xbf16> -> vector<16x16x9xbf16>
    %21 = vector.shape_cast %20 : vector<16x16x9xbf16> to vector<256x9xbf16>
    %c1_30 = arith.constant 1 : index
    %c0_31 = arith.constant 0 : index
    %c0_32 = arith.constant 0 : index
    %22 = vector.load %arg8[%c1_30, %c0_31, %c0_32] : memref<18x18x3xbf16, #tpu.memory_space<vmem>>, vector<16x16x3xbf16>
    %c1_33 = arith.constant 1 : index
    %c1_34 = arith.constant 1 : index
    %c0_35 = arith.constant 0 : index
    %23 = vector.load %arg8[%c1_33, %c1_34, %c0_35] : memref<18x18x3xbf16, #tpu.memory_space<vmem>>, vector<16x16x3xbf16>
    %c1_36 = arith.constant 1 : index
    %c2_37 = arith.constant 2 : index
    %c0_38 = arith.constant 0 : index
    %24 = vector.load %arg8[%c1_36, %c2_37, %c0_38] : memref<18x18x3xbf16, #tpu.memory_space<vmem>>, vector<16x16x3xbf16>
    %25 = tpu.concatenate %22, %23, %24 in 2 : vector<16x16x3xbf16>, vector<16x16x3xbf16>, vector<16x16x3xbf16> -> vector<16x16x9xbf16>
    %26 = vector.shape_cast %25 : vector<16x16x9xbf16> to vector<256x9xbf16>
    %c2_39 = arith.constant 2 : index
    %c0_40 = arith.constant 0 : index
    %c0_41 = arith.constant 0 : index
    %27 = vector.load %arg8[%c2_39, %c0_40, %c0_41] : memref<18x18x3xbf16, #tpu.memory_space<vmem>>, vector<16x16x3xbf16>
    %c2_42 = arith.constant 2 : index
    %c1_43 = arith.constant 1 : index
    %c0_44 = arith.constant 0 : index
    %28 = vector.load %arg8[%c2_42, %c1_43, %c0_44] : memref<18x18x3xbf16, #tpu.memory_space<vmem>>, vector<16x16x3xbf16>
    %c2_45 = arith.constant 2 : index
    %c2_46 = arith.constant 2 : index
    %c0_47 = arith.constant 0 : index
    %29 = vector.load %arg8[%c2_45, %c2_46, %c0_47] : memref<18x18x3xbf16, #tpu.memory_space<vmem>>, vector<16x16x3xbf16>
    %30 = tpu.concatenate %27, %28, %29 in 2 : vector<16x16x3xbf16>, vector<16x16x3xbf16>, vector<16x16x3xbf16> -> vector<16x16x9xbf16>
    %31 = vector.shape_cast %30 : vector<16x16x9xbf16> to vector<256x9xbf16>
    %32 = tpu.concatenate %21, %26, %31 in 1 : vector<256x9xbf16>, vector<256x9xbf16>, vector<256x9xbf16> -> vector<256x27xbf16>
    %c0_48 = arith.constant 0 : index
    %c0_49 = arith.constant 0 : index
    %c0_50 = arith.constant 0 : index
    %33 = vector.load %arg5[%c0_48, %c0_49, %c0_50] : memref<3x9x64xbf16, #tpu.memory_space<vmem>>, vector<3x9x64xbf16>
    %34 = vector.shape_cast %33 : vector<3x9x64xbf16> to vector<27x64xbf16>
    %cst_51 = arith.constant dense<0.000000e+00> : vector<256x64xf32>
    %35 = tpu.matmul %32, %34, %cst_51 {dimension_numbers = #tpu.dot_dimension_numbers<[1], [0], [0], [1], [0, 0, 1, 1], [], []>} : vector<256x27xbf16>, vector<27x64xbf16>, vector<256x64xf32> -> vector<256x64xf32>
    %c0_52 = arith.constant 0 : index
    %c0_53 = arith.constant 0 : index
    %36 = vector.load %arg6[%c0_52, %c0_53] : memref<1x64xf32, #tpu.memory_space<vmem>>, vector<1x64xf32>
    %37 = vector.broadcast %36 : vector<1x64xf32> to vector<256x64xf32>
    %38 = arith.addf %35, %37 : vector<256x64xf32>
    %cst_54 = arith.constant 0.000000e+00 : f32
    %39 = vector.broadcast %cst_54 : f32 to vector<256x64xf32>
    %40 = arith.maximumf %38, %39 : vector<256x64xf32>
    %41 = vector.shape_cast %40 : vector<256x64xf32> to vector<1x16x16x64xf32>
    %42 = arith.truncf %41 : vector<1x16x16x64xf32> to vector<1x16x16x64xbf16>
    %c0_55 = arith.constant 0 : index
    %c0_56 = arith.constant 0 : index
    %c0_57 = arith.constant 0 : index
    %c0_58 = arith.constant 0 : index
    %43 = vector.load %arg7[%c0_55, %c0_56, %c0_57, %c0_58] : memref<1x16x16x64xbf16, #tpu.memory_space<vmem>>, vector<1x16x16x64xbf16>
    tpu.vector_store %arg7[%c0_55, %c0_56, %c0_57, %c0_58], %42 {strides = array<i32>} : memref<1x16x16x64xbf16, #tpu.memory_space<vmem>>, vector<1x16x16x64xbf16>,
    return
  }
  func.func @transform_0(%arg0: i32, %arg1: i32) -> (i32, i32, i32, i32) {
    %c16_i32 = arith.constant 16 : i32
    %0 = arith.muli %arg1, %c16_i32 : i32
    %c1_i32 = arith.constant 1 : i32
    %1 = arith.subi %0, %c1_i32 : i32
    %c0_i32 = arith.constant 0 : i32
    %2 = arith.maxsi %1, %c0_i32 : i32
    %c0_i32_0 = arith.constant 0 : i32
    %c0_i32_1 = arith.constant 0 : i32
    %c0_i32_2 = arith.constant 0 : i32
    return %arg0, %2, %c0_i32_0, %c0_i32_1 : i32, i32, i32, i32
  }
  func.func @transform_1(%arg0: i32, %arg1: i32) -> (i32, i32, i32, i32) {
    %c0_i32 = arith.constant 0 : i32
    %c0_i32_0 = arith.constant 0 : i32
    %c0_i32_1 = arith.constant 0 : i32
    return %arg0, %arg1, %c0_i32, %c0_i32_0 : i32, i32, i32, i32
  }
  func.func @transform_2(%arg0: i32, %arg1: i32) -> (i32, i32, i32, i32) {
    %c16_i32 = arith.constant 16 : i32
    %0 = arith.muli %arg1, %c16_i32 : i32
    %c16_i32_0 = arith.constant 16 : i32
    %1 = arith.addi %0, %c16_i32_0 : i32
    %c15_i32 = arith.constant 15 : i32
    %2 = arith.minsi %1, %c15_i32 : i32
    %c0_i32 = arith.constant 0 : i32
    %c0_i32_1 = arith.constant 0 : i32
    %c0_i32_2 = arith.constant 0 : i32
    return %arg0, %2, %c0_i32, %c0_i32_1 : i32, i32, i32, i32
  }
  func.func @transform_3(%arg0: i32, %arg1: i32) -> (i32, i32, i32) {
    %c0_i32 = arith.constant 0 : i32
    %c0_i32_0 = arith.constant 0 : i32
    %c0_i32_1 = arith.constant 0 : i32
    %c0_i32_2 = arith.constant 0 : i32
    return %c0_i32, %c0_i32_0, %c0_i32_1 : i32, i32, i32
  }
  func.func @transform_4(%arg0: i32, %arg1: i32) -> (i32, i32) {
    %c0_i32 = arith.constant 0 : i32
    %c0_i32_0 = arith.constant 0 : i32
    %c0_i32_1 = arith.constant 0 : i32
    return %c0_i32, %c0_i32_0 : i32, i32
  }
  func.func @transform_5(%arg0: i32, %arg1: i32) -> (i32, i32, i32, i32) {
    %c0_i32 = arith.constant 0 : i32
    %c0_i32_0 = arith.constant 0 : i32
    %c0_i32_1 = arith.constant 0 : i32
    return %arg0, %arg1, %c0_i32, %c0_i32_0 : i32, i32, i32, i32
  }
}

</mosaic_0001>

<llo_original>
// kernel: tpu_custom_call.1
$region0: #{tpu_custom_call.1}
  #allocation0 [shape = 'u32[]', space=smem, size = 0x4, offset = 0x4, fixed_abs, tag = 'smem constant byte address 0x4 - core index']
  #allocation1 [shape = 'u32[144,128]{1,0:T(1,128)}', space=vmem, size = 0x12000, scoped, tag = 'internal scratch']
  #allocation2 [shape = 'bf16[18,18,3]{2,1,0:T(8,128)(2,1)}', space=vmem, size = 0x1b000, scoped, tag = 'scratch operand']
  %s0 = inlined_call_operand.vmem [shape: bf16[4,16,16,3], index: 0, kind: input, shape index: {}]
  %s1 = inlined_call_operand.vmem [shape: bf16[4,16,16,3], index: 1, kind: input, shape index: {}]
  %s2 = inlined_call_operand.vmem [shape: bf16[4,16,16,3], index: 2, kind: input, shape index: {}]
  %s3 = inlined_call_operand.vmem [shape: bf16[3,9,64], index: 3, kind: input, shape index: {}]
  %s4 = inlined_call_operand.vmem [shape: f32[1,64], index: 4, kind: input, shape index: {}]
  %s5 = inlined_call_operand.hbm [shape: bf16[4,16,16,64], index: 5, kind: output, shape index: {}]
  %s6 = sld [smem:[#allocation0]]
  $region61: #{tpu_custom_call.1} parent=0
    _
  %s8 = ssub.s32 1, %s6
  %s9 = scalar_select 0, %s8, %s6
  $region1: #{tpu_custom_call.1} parent=0
    #allocation3 [shape = 'u8[131072]{0}', space=vmem, size = 0x20000, scoped, tag = 'output window, operand 0']
    #allocation4 [shape = 's32[2]{0}', space=sflag, size = 0x8, scoped, tag = 'scoped memory for tpu_custom_call.1']
    %10 = vsyncpa [#allocation4], 0
    %s11 = scalar_lea.sflag [#allocation4], 1
    %12 = vsyncpa %s11, 0
    loop: start=0, step=1, limit=6
    $region2: #{tpu_custom_call.1} parent=1 // loop_pre_header
      _
    $region3: #{tpu_custom_call.1} parent=1 // loop_header
      %s14 = sphi 0, %s18
      %p15 = scmp.ge.s32.totalorder %s14, 6
      %s21 = sphi 0, %s33
      %s22 = sphi 0, %s29
      %s23 = sphi 0, %s21
      %s24 = sphi 0, %s22
      %s25 = sphi 0, %s23
      %s26 = sphi 0, %s24
      %s46 = sphi 0, %s48
      %s49 = sphi 0, %s46
      %s50 = sphi 0, %s49
      %s66 = sphi 0, %s50
      %s74 = sphi 0, %s76
      %s77 = sphi 0, %s74
      %s78 = sphi 0, %s77
      %s94 = sphi 0, %s78
      %s110 = sphi 0, %s112
      %s113 = sphi 0, %s110
      %s114 = sphi 0, %s113
      %s130 = sphi 0, %s114
      %s134 = sphi 0, %s134
      %s136 = sphi 0, %s134
      %s137 = sphi 0, %s136
      %s151 = sphi 0, %s137
      %s155 = sphi 0, %s155
      %s157 = sphi 0, %s155
      %s158 = sphi 0, %s157
      %s172 = sphi 0, %s158
      %s180 = sphi 0, %s182
      %s183 = sphi 0, %s180
      %s184 = sphi 0, %s183
      %s200 = sphi 0, %s184
    $region4: #{tpu_custom_call.1} parent=1 // loop_header_branch
      %17 = sbr.rel (%p15) target = $region8
    $region5: #{tpu_custom_call.1} parent=1 // loop_body
      %s19 = ssub.s32 %s14, 1
      %s20 = ssub.s32 %s14, 2
      %s27 = sadd.s32 1, %s22
      %p28 = scmp.ge.s32.totalorder %s27, 1
      %s29 = scalar_select %p28, 0, %s27
      %s30 = sadd.s32 1, %s21
      %s31 = scalar_select %p28, %s30, %s21
      %p32 = scmp.ge.s32.totalorder %s31, 4
      %s33 = scalar_select %p32, 0, %s31
      %s34 = smul.u32 %s22, 16
      %s35 = ssub.s32 %s34, 1
      %p36 = scmp.gt.s32.totalorder %s35, 0
      %s37 = scalar_select %p36, %s35, 0
      %s38 = smul.u32 %s29, 16
      %s39 = ssub.s32 %s38, 1
      %p40 = scmp.gt.s32.totalorder %s39, 0
      %s41 = scalar_select %p40, %s39, 0
      %s42 = ssub.s32 %s21, %s33
      %s43 = ssub.s32 %s37, %s41
      %s44 = sor.u32 %s42, %s43
      %p45 = scmp.eq.s32.totalorder %s44, 0
      %s47 = sadd.s32 %s46, 1
      %s48 = scalar_select %p45, %s46, %s47
      %p51 = pneg %p45
      %p52 = scmp.eq.s32.totalorder %s14, 3
      %p53 = por %p51, %p52
      %p54 = scmp.ne.s32.totalorder %s46, %s49
      %p55 = scmp.eq.s32.totalorder %s14, 0
      %p56 = por %p54, %p55
      %p57 = scmp.ne.s32.totalorder %s46, %s49
      %p58 = scmp.eq.s32.totalorder %s19, 3
      %p59 = por %p57, %p58
      %p60 = scmp.ne.s32.totalorder %s49, %s50
      %p61 = scmp.eq.s32.totalorder %s19, 0
      %p62 = por %p60, %p61
      %p63 = scmp.ne.s32.totalorder %s49, %s50
      %p64 = scmp.eq.s32.totalorder %s20, 3
      %p65 = por %p63, %p64
      %p67 = scmp.ne.s32.totalorder %s50, %s66
      %p68 = scmp.eq.s32.totalorder %s20, 0
      %p69 = por %p67, %p68
      %s70 = ssub.s32 %s21, %s33
      %s71 = ssub.s32 %s22, %s29
      %s72 = sor.u32 %s70, %s71
      %p73 = scmp.eq.s32.totalorder %s72, 0
      %s75 = sadd.s32 %s74, 1
      %s76 = scalar_select %p73, %s74, %s75
      %p79 = pneg %p73
      %p80 = scmp.eq.s32.totalorder %s14, 3
      %p81 = por %p79, %p80
      %p82 = scmp.ne.s32.totalorder %s74, %s77
      %p83 = scmp.eq.s32.totalorder %s14, 0
      %p84 = por %p82, %p83
      %p85 = scmp.ne.s32.totalorder %s74, %s77
      %p86 = scmp.eq.s32.totalorder %s19, 3
      %p87 = por %p85, %p86
      %p88 = scmp.ne.s32.totalorder %s77, %s78
      %p89 = scmp.eq.s32.totalorder %s19, 0
      %p90 = por %p88, %p89
      %p91 = scmp.ne.s32.totalorder %s77, %s78
      %p92 = scmp.eq.s32.totalorder %s20, 3
      %p93 = por %p91, %p92
      %p95 = scmp.ne.s32.totalorder %s78, %s94
      %p96 = scmp.eq.s32.totalorder %s20, 0
      %p97 = por %p95, %p96
      %s98 = smul.u32 %s22, 16
      %s99 = sadd.s32 %s98, 16
      %p100 = scmp.lt.s32.totalorder %s99, 15
      %s101 = scalar_select %p100, %s99, 15
      %s102 = smul.u32 %s29, 16
      %s103 = sadd.s32 %s102, 16
      %p104 = scmp.lt.s32.totalorder %s103, 15
      %s105 = scalar_select %p104, %s103, 15
      %s106 = ssub.s32 %s21, %s33
      %s107 = ssub.s32 %s101, %s105
      %s108 = sor.u32 %s106, %s107
      %p109 = scmp.eq.s32.totalorder %s108, 0
      %s111 = sadd.s32 %s110, 1
      %s112 = scalar_select %p109, %s110, %s111
      %p115 = pneg %p109
      %p116 = scmp.eq.s32.totalorder %s14, 3
      %p117 = por %p115, %p116
      %p118 = scmp.ne.s32.totalorder %s110, %s113
      %p119 = scmp.eq.s32.totalorder %s14, 0
      %p120 = por %p118, %p119
      %p121 = scmp.ne.s32.totalorder %s110, %s113
      %p122 = scmp.eq.s32.totalorder %s19, 3
      %p123 = por %p121, %p122
      %p124 = scmp.ne.s32.totalorder %s113, %s114
      %p125 = scmp.eq.s32.totalorder %s19, 0
      %p126 = por %p124, %p125
      %p127 = scmp.ne.s32.totalorder %s113, %s114
      %p128 = scmp.eq.s32.totalorder %s20, 3
      %p129 = por %p127, %p128
      %p131 = scmp.ne.s32.totalorder %s114, %s130
      %p132 = scmp.eq.s32.totalorder %s20, 0
      %p133 = por %p131, %p132
      %s135 = sadd.s32 %s134, 1
      %p138 = scmp.eq.s32.totalorder %s14, 3
      %p139 = scmp.ne.s32.totalorder %s134, %s136
      %p140 = scmp.eq.s32.totalorder %s14, 0
      %p141 = por %p139, %p140
      %p142 = scmp.ne.s32.totalorder %s134, %s136
      %p143 = scmp.eq.s32.totalorder %s19, 3
      %p144 = por %p142, %p143
      %p145 = scmp.ne.s32.totalorder %s136, %s137
      %p146 = scmp.eq.s32.totalorder %s19, 0
      %p147 = por %p145, %p146
      %p148 = scmp.ne.s32.totalorder %s136, %s137
      %p149 = scmp.eq.s32.totalorder %s20, 3
      %p150 = por %p148, %p149
      %p152 = scmp.ne.s32.totalorder %s137, %s151
      %p153 = scmp.eq.s32.totalorder %s20, 0
      %p154 = por %p152, %p153
      %s156 = sadd.s32 %s155, 1
      %p159 = scmp.eq.s32.totalorder %s14, 3
      %p160 = scmp.ne.s32.totalorder %s155, %s157
      %p161 = scmp.eq.s32.totalorder %s14, 0
      %p162 = por %p160, %p161
      %p163 = scmp.ne.s32.totalorder %s155, %s157
      %p164 = scmp.eq.s32.totalorder %s19, 3
      %p165 = por %p163, %p164
      %p166 = scmp.ne.s32.totalorder %s157, %s158
      %p167 = scmp.eq.s32.totalorder %s19, 0
      %p168 = por %p166, %p167
      %p169 = scmp.ne.s32.totalorder %s157, %s158
      %p170 = scmp.eq.s32.totalorder %s20, 3
      %p171 = por %p169, %p170
      %p173 = scmp.ne.s32.totalorder %s158, %s172
      %p174 = scmp.eq.s32.totalorder %s20, 0
      %p175 = por %p173, %p174
      %s176 = ssub.s32 %s21, %s33
      %s177 = ssub.s32 %s22, %s29
      %s178 = sor.u32 %s176, %s177
      %p179 = scmp.eq.s32.totalorder %s178, 0
      %s181 = sadd.s32 %s180, 1
      %s182 = scalar_select %p179, %s180, %s181
      %p185 = pneg %p179
      %p186 = scmp.eq.s32.totalorder %s14, 3
      %p187 = por %p185, %p186
      %p188 = scmp.ne.s32.totalorder %s180, %s183
      %p189 = scmp.eq.s32.totalorder %s14, 0
      %p190 = por %p188, %p189
      %p191 = scmp.ne.s32.totalorder %s180, %s183
      %p192 = scmp.eq.s32.totalorder %s19, 3
      %p193 = por %p191, %p192
      %p194 = scmp.ne.s32.totalorder %s183, %s184
      %p195 = scmp.eq.s32.totalorder %s19, 0
      %p196 = por %p194, %p195
      %p197 = scmp.ne.s32.totalorder %s183, %s184
      %p198 = scmp.eq.s32.totalorder %s20, 3
      %p199 = por %p197, %p198
      %p201 = scmp.ne.s32.totalorder %s184, %s200
      %p202 = scmp.eq.s32.totalorder %s20, 0
      %p203 = por %p201, %p202
      %p204 = scmp.le.s32.totalorder 1, %s14
      %p205 = scmp.lt.s32.totalorder %s14, 5
      %p206 = pnand %p204, %p205
      %p207 = pneg %p206
      // Predicated region
      $region9: #{tpu_custom_call.1} parent=5 // pred_check
        _
      $region10: #{tpu_custom_call.1} parent=5 // pred_check_branch
        %209 = sbr.rel (%p206) target = $region12
      $region11: #{tpu_custom_call.1} parent=5 // pred_region
        %s210 = ssub.s32 %s14, 1
        // Predicated region
        $region13: #{tpu_custom_call.1} parent=11 // pred_check
          %p211 = pneg %p147
        $region14: #{tpu_custom_call.1} parent=11 // pred_check_branch
          %213 = sbr.rel (%p211) target = $region16
        $region15: #{tpu_custom_call.1} parent=11 // pred_region
          _
        $region16: #{tpu_custom_call.1} parent=11 // pred_fallthru
          _
        // Predicated region
        $region17: #{tpu_custom_call.1} parent=11 // pred_check
          %p214 = pneg %p168
        $region18: #{tpu_custom_call.1} parent=11 // pred_check_branch
          %216 = sbr.rel (%p214) target = $region20
        $region19: #{tpu_custom_call.1} parent=11 // pred_region
          _
        $region20: #{tpu_custom_call.1} parent=11 // pred_fallthru
          _
      $region12: #{tpu_custom_call.1} parent=5 // pred_fallthru
        _
      %p217 = scmp.lt.s32.totalorder %s14, 4
      // Predicated region
      $region21: #{tpu_custom_call.1} parent=5 // pred_check
        %p218 = pneg %p217
      $region22: #{tpu_custom_call.1} parent=5 // pred_check_branch
        %220 = sbr.rel (%p218) target = $region24
      $region23: #{tpu_custom_call.1} parent=5 // pred_region
        // Predicated region
        $region25: #{tpu_custom_call.1} parent=23 // pred_check
          %p221 = pneg %p56
        $region26: #{tpu_custom_call.1} parent=23 // pred_check_branch
          %223 = sbr.rel (%p221) target = $region28
        $region27: #{tpu_custom_call.1} parent=23 // pred_region
          %s224 = smul.u32 %s22, 16
          %s225 = ssub.s32 %s224, 1
          %p226 = scmp.gt.s32.totalorder %s225, 0
          %s227 = scalar_select %p226, %s225, 0
          %p228 = scmp.lt.s32.totalorder %s21, 3
          %s229 = scalar_select %p228, %s21, 3
          %p230 = scmp.lt.s32.totalorder %s227, 15
          %s231 = scalar_select %p230, %s227, 15
          %s232 = smul.addr %s231, 2
          %s233 = smul.addr %s229, 32
          %s234 = sadd.s32 %s232, %s233
          %s235 = smul.addr %s234, 4
          %s236 = scalar_lea.vmem %s0, %s235
          %s237 = smul.u32 %s22, 16
          %s238 = ssub.s32 %s237, 1
          %p239 = scmp.gt.s32.totalorder %s238, 0
          %s240 = scalar_select %p239, %s238, 0
        $region28: #{tpu_custom_call.1} parent=23 // pred_fallthru
          _
        // Predicated region
        $region29: #{tpu_custom_call.1} parent=23 // pred_check
          %p241 = pneg %p84
        $region30: #{tpu_custom_call.1} parent=23 // pred_check_branch
          %243 = sbr.rel (%p241) target = $region32
        $region31: #{tpu_custom_call.1} parent=23 // pred_region
          %s244 = smul.u32 16, %s22
          %p245 = scmp.lt.s32.totalorder %s21, 3
          %s246 = scalar_select %p245, %s21, 3
          %p247 = scmp.lt.s32.totalorder %s244, 15
          %s248 = scalar_select %p247, %s244, 15
          %s249 = smul.addr %s248, 2
          %s250 = smul.addr %s246, 32
          %s251 = sadd.s32 %s249, %s250
          %s252 = smul.addr %s251, 4
          %s253 = scalar_lea.vmem %s1, %s252
          %s254 = smul.u32 16, %s22
        $region32: #{tpu_custom_call.1} parent=23 // pred_fallthru
          _
        // Predicated region
        $region33: #{tpu_custom_call.1} parent=23 // pred_check
          %p255 = pneg %p120
        $region34: #{tpu_custom_call.1} parent=23 // pred_check_branch
          %257 = sbr.rel (%p255) target = $region36
        $region35: #{tpu_custom_call.1} parent=23 // pred_region
          %s258 = smul.u32 %s22, 16
          %s259 = sadd.s32 %s258, 16
          %p260 = scmp.lt.s32.totalorder %s259, 15
          %s261 = scalar_select %p260, %s259, 15
          %p262 = scmp.lt.s32.totalorder %s21, 3
          %s263 = scalar_select %p262, %s21, 3
          %p264 = scmp.lt.s32.totalorder %s261, 15
          %s265 = scalar_select %p264, %s261, 15
          %s266 = smul.addr %s265, 2
          %s267 = smul.addr %s263, 32
          %s268 = sadd.s32 %s266, %s267
          %s269 = smul.addr %s268, 4
          %s270 = scalar_lea.vmem %s2, %s269
          %s271 = smul.u32 %s22, 16
          %s272 = sadd.s32 %s271, 16
          %p273 = scmp.lt.s32.totalorder %s272, 15
          %s274 = scalar_select %p273, %s272, 15
        $region36: #{tpu_custom_call.1} parent=23 // pred_fallthru
          _
      $region24: #{tpu_custom_call.1} parent=5 // pred_fallthru
        _
      %p275 = scmp.le.s32.totalorder 1, %s14
      %p276 = scmp.lt.s32.totalorder %s14, 5
      %p277 = pnand %p275, %p276
      %p278 = pneg %p277
      // Predicated region
      $region37: #{tpu_custom_call.1} parent=5 // pred_check
        _
      $region38: #{tpu_custom_call.1} parent=5 // pred_check_branch
        %280 = sbr.rel (%p277) target = $region40
      $region39: #{tpu_custom_call.1} parent=5 // pred_region
        %s281 = ssub.s32 %s14, 1
        %s282 = smul.u32 %s24, 16
        %s283 = ssub.s32 %s282, 1
        %p284 = scmp.gt.s32.totalorder %s283, 0
        %s285 = scalar_select %p284, %s283, 0
        %p286 = scmp.lt.s32.totalorder %s23, 3
        %s287 = scalar_select %p286, %s23, 3
        %p288 = scmp.lt.s32.totalorder %s285, 15
        %s289 = scalar_select %p288, %s285, 15
        %s290 = smul.addr %s289, 2
        %s291 = smul.addr %s287, 32
        %s292 = sadd.s32 %s290, %s291
        %s293 = smul.addr %s292, 4
        %s294 = scalar_lea.vmem %s0, %s293
        %p295 = pneg %p62
        %p296 = pneg %p59
        %s297 = smul.u32 16, %s24
        %p298 = scmp.lt.s32.totalorder %s23, 3
        %s299 = scalar_select %p298, %s23, 3
        %p300 = scmp.lt.s32.totalorder %s297, 15
        %s301 = scalar_select %p300, %s297, 15
        %s302 = smul.addr %s301, 2
        %s303 = smul.addr %s299, 32
        %s304 = sadd.s32 %s302, %s303
        %s305 = smul.addr %s304, 4
        %s306 = scalar_lea.vmem %s1, %s305
        %p307 = pneg %p90
        %p308 = pneg %p87
        %s309 = smul.u32 %s24, 16
        %s310 = sadd.s32 %s309, 16
        %p311 = scmp.lt.s32.totalorder %s310, 15
        %s312 = scalar_select %p311, %s310, 15
        %p313 = scmp.lt.s32.totalorder %s23, 3
        %s314 = scalar_select %p313, %s23, 3
        %p315 = scmp.lt.s32.totalorder %s312, 15
        %s316 = scalar_select %p315, %s312, 15
        %s317 = smul.addr %s316, 2
        %s318 = smul.addr %s314, 32
        %s319 = sadd.s32 %s317, %s318
        %s320 = smul.addr %s319, 4
        %s321 = scalar_lea.vmem %s2, %s320
        %p322 = pneg %p126
        %p323 = pneg %p123
        %p324 = pneg %p147
        %p325 = pneg %p144
        %p326 = pneg %p168
        %p327 = pneg %p165
        %p328 = pneg %p196
        %p329 = pneg %p193
        %s330 = sand.u32 %s183, 1
        %s331 = scalar_lea.sflag [#allocation4], %s330
        %s332 = sand.u32 %s183, 1
        %s333 = smul.addr %s332, 128
        %s334 = scalar_lea.vmem [#allocation3], %s333
        %s335 = smul.u32 %s24, 16
        %s336 = ssub.s32 %s335, 1
        %p337 = scmp.gt.s32.totalorder %s336, 0
        %s338 = scalar_select %p337, %s336, 0
        %p339 = scmp.lt.s32.totalorder %s23, 3
        %s340 = scalar_select %p339, %s23, 3
        %p341 = scmp.lt.s32.totalorder %s338, 15
        %s342 = scalar_select %p341, %s338, 15
        %s343 = smul.addr %s342, 2
        %s344 = smul.addr %s340, 32
        %s345 = sadd.s32 %s343, %s344
        %s346 = smul.addr %s345, 4
        %s347 = scalar_lea.vmem %s0, %s346
        %s348 = smul.u32 %s24, 16
        %s349 = ssub.s32 %s348, 1
        %p350 = scmp.gt.s32.totalorder %s349, 0
        %s351 = scalar_select %p350, %s349, 0
        %s352 = smul.u32 16, %s24
        %p353 = scmp.lt.s32.totalorder %s23, 3
        %s354 = scalar_select %p353, %s23, 3
        %p355 = scmp.lt.s32.totalorder %s352, 15
        %s356 = scalar_select %p355, %s352, 15
        %s357 = smul.addr %s356, 2
        %s358 = smul.addr %s354, 32
        %s359 = sadd.s32 %s357, %s358
        %s360 = smul.addr %s359, 4
        %s361 = scalar_lea.vmem %s1, %s360
        %s362 = smul.u32 16, %s24
        %s363 = smul.u32 %s24, 16
        %s364 = sadd.s32 %s363, 16
        %p365 = scmp.lt.s32.totalorder %s364, 15
        %s366 = scalar_select %p365, %s364, 15
        %p367 = scmp.lt.s32.totalorder %s23, 3
        %s368 = scalar_select %p367, %s23, 3
        %p369 = scmp.lt.s32.totalorder %s366, 15
        %s370 = scalar_select %p369, %s366, 15
        %s371 = smul.addr %s370, 2
        %s372 = smul.addr %s368, 32
        %s373 = sadd.s32 %s371, %s372
        %s374 = smul.addr %s373, 4
        %s375 = scalar_lea.vmem %s2, %s374
        %s376 = smul.u32 %s24, 16
        %s377 = sadd.s32 %s376, 16
        %p378 = scmp.lt.s32.totalorder %s377, 15
        %s379 = scalar_select %p378, %s377, 15
        %s380 = smul.u32 16, %s24
        %vm382 = vcmask 19456
        %383 = vst.msk [vmem:[#allocation2] sm:$0xf] %vm382, 0
        %384 = vst.msk [vmem:[#allocation2 + $0x4] sm:$0xf] %vm382, 0
        %vm385 = vcmask 16384
        %386 = vst.msk [vmem:[#allocation2 + $0x8] sm:$0x1] %vm385, 0
        %s387 = scalar_lea.vmem [#allocation2], 204
        %388 = vst.msk [vmem:[%s387] sm:$0xf] %vm382, 0
        %389 = vst.msk [vmem:[%s387 + $0x4] sm:$0xf] %vm382, 0
        %390 = vst.msk [vmem:[%s387 + $0x8] sm:$0x1] %vm385, 0
        %s391 = scalar_lea.vmem [#allocation2], 12
        %vm392 = vcmask 16384
        %vm393 = vsmask.f32 256
        %vm394 = vmand %vm392, %vm393
        %v395 = vld [vmem:[%s391] sm:$0x1]
        %v396 = vsel %vm394, 0, %v395
        %397 = vst [vmem:[%s391] sm:$0x1] %v396
        %v398 = vld [vmem:[%s391 + $0xc] sm:$0x1]
        %v399 = vsel %vm394, 0, %v398
        %400 = vst [vmem:[%s391 + $0xc] sm:$0x1] %v399
        %v401 = vld [vmem:[%s391 + $0x18] sm:$0x1]
        %v402 = vsel %vm394, 0, %v401
        %403 = vst [vmem:[%s391 + $0x18] sm:$0x1] %v402
        %v404 = vld [vmem:[%s391 + $0x24] sm:$0x1]
        %v405 = vsel %vm394, 0, %v404
        %406 = vst [vmem:[%s391 + $0x24] sm:$0x1] %v405
        %v407 = vld [vmem:[%s391 + $0x30] sm:$0x1]
        %v408 = vsel %vm394, 0, %v407
        %409 = vst [vmem:[%s391 + $0x30] sm:$0x1] %v408
        %v410 = vld [vmem:[%s391 + $0x3c] sm:$0x1]
        %v411 = vsel %vm394, 0, %v410
        %412 = vst [vmem:[%s391 + $0x3c] sm:$0x1] %v411
        %v413 = vld [vmem:[%s391 + $0x48] sm:$0x1]
        %v414 = vsel %vm394, 0, %v413
        %415 = vst [vmem:[%s391 + $0x48] sm:$0x1] %v414
        %v416 = vld [vmem:[%s391 + $0x54] sm:$0x1]
        %v417 = vsel %vm394, 0, %v416
        %418 = vst [vmem:[%s391 + $0x54] sm:$0x1] %v417
        %v419 = vld [vmem:[%s391 + $0x60] sm:$0x1]
        %v420 = vsel %vm394, 0, %v419
        %421 = vst [vmem:[%s391 + $0x60] sm:$0x1] %v420
        %v422 = vld [vmem:[%s391 + $0x6c] sm:$0x1]
        %v423 = vsel %vm394, 0, %v422
        %424 = vst [vmem:[%s391 + $0x6c] sm:$0x1] %v423
        %v425 = vld [vmem:[%s391 + $0x78] sm:$0x1]
        %v426 = vsel %vm394, 0, %v425
        %427 = vst [vmem:[%s391 + $0x78] sm:$0x1] %v426
        %v428 = vld [vmem:[%s391 + $0x84] sm:$0x1]
        %v429 = vsel %vm394, 0, %v428
        %430 = vst [vmem:[%s391 + $0x84] sm:$0x1] %v429
        %v431 = vld [vmem:[%s391 + $0x90] sm:$0x1]
        %v432 = vsel %vm394, 0, %v431
        %433 = vst [vmem:[%s391 + $0x90] sm:$0x1] %v432
        %v434 = vld [vmem:[%s391 + $0x9c] sm:$0x1]
        %v435 = vsel %vm394, 0, %v434
        %436 = vst [vmem:[%s391 + $0x9c] sm:$0x1] %v435
        %v437 = vld [vmem:[%s391 + $0xa8] sm:$0x1]
        %v438 = vsel %vm394, 0, %v437
        %439 = vst [vmem:[%s391 + $0xa8] sm:$0x1] %v438
        %v440 = vld [vmem:[%s391 + $0xb4] sm:$0x1]
        %v441 = vsel %vm394, 0, %v440
        %442 = vst [vmem:[%s391 + $0xb4] sm:$0x1] %v441
        %vm443 = vsmask.f32 7938
        %vm444 = vmand %vm392, %vm443
        %v445 = vld [vmem:[%s391 + $0x8] sm:$0x1]
        %v446 = vsel %vm444, 0, %v445
        %447 = vst [vmem:[%s391 + $0x8] sm:$0x1] %v446
        %v448 = vld [vmem:[%s391 + $0x14] sm:$0x1]
        %v449 = vsel %vm444, 0, %v448
        %450 = vst [vmem:[%s391 + $0x14] sm:$0x1] %v449
        %v451 = vld [vmem:[%s391 + $0x20] sm:$0x1]
        %v452 = vsel %vm444, 0, %v451
        %453 = vst [vmem:[%s391 + $0x20] sm:$0x1] %v452
        %v454 = vld [vmem:[%s391 + $0x2c] sm:$0x1]
        %v455 = vsel %vm444, 0, %v454
        %456 = vst [vmem:[%s391 + $0x2c] sm:$0x1] %v455
        %v457 = vld [vmem:[%s391 + $0x38] sm:$0x1]
        %v458 = vsel %vm444, 0, %v457
        %459 = vst [vmem:[%s391 + $0x38] sm:$0x1] %v458
        %v460 = vld [vmem:[%s391 + $0x44] sm:$0x1]
        %v461 = vsel %vm444, 0, %v460
        %462 = vst [vmem:[%s391 + $0x44] sm:$0x1] %v461
        %v463 = vld [vmem:[%s391 + $0x50] sm:$0x1]
        %v464 = vsel %vm444, 0, %v463
        %465 = vst [vmem:[%s391 + $0x50] sm:$0x1] %v464
        %v466 = vld [vmem:[%s391 + $0x5c] sm:$0x1]
        %v467 = vsel %vm444, 0, %v466
        %468 = vst [vmem:[%s391 + $0x5c] sm:$0x1] %v467
        %v469 = vld [vmem:[%s391 + $0x68] sm:$0x1]
        %v470 = vsel %vm444, 0, %v469
        %471 = vst [vmem:[%s391 + $0x68] sm:$0x1] %v470
        %v472 = vld [vmem:[%s391 + $0x74] sm:$0x1]
        %v473 = vsel %vm444, 0, %v472
        %474 = vst [vmem:[%s391 + $0x74] sm:$0x1] %v473
        %v475 = vld [vmem:[%s391 + $0x80] sm:$0x1]
        %v476 = vsel %vm444, 0, %v475
        %477 = vst [vmem:[%s391 + $0x80] sm:$0x1] %v476
        %v478 = vld [vmem:[%s391 + $0x8c] sm:$0x1]
        %v479 = vsel %vm444, 0, %v478
        %480 = vst [vmem:[%s391 + $0x8c] sm:$0x1] %v479
        %v481 = vld [vmem:[%s391 + $0x98] sm:$0x1]
        %v482 = vsel %vm444, 0, %v481
        %483 = vst [vmem:[%s391 + $0x98] sm:$0x1] %v482
        %v484 = vld [vmem:[%s391 + $0xa4] sm:$0x1]
        %v485 = vsel %vm444, 0, %v484
        %486 = vst [vmem:[%s391 + $0xa4] sm:$0x1] %v485
        %v487 = vld [vmem:[%s391 + $0xb0] sm:$0x1]
        %v488 = vsel %vm444, 0, %v487
        %489 = vst [vmem:[%s391 + $0xb0] sm:$0x1] %v488
        %v490 = vld [vmem:[%s391 + $0xbc] sm:$0x1]
        %v491 = vsel %vm444, 0, %v490
        %492 = vst [vmem:[%s391 + $0xbc] sm:$0x1] %v491
        %v493 = vld [vmem:[%s361] sm:$0xf]
        %v494 = vld [vmem:[%s361 + $0x4] sm:$0xf]
        %v495 = vld [vmem:[%s361 + $0x8] sm:$0xf]
        %v496 = vld [vmem:[%s361 + $0xc] sm:$0xf]
        %v497 = vld [vmem:[%s361 + $0x10] sm:$0xf]
        %v498 = vld [vmem:[%s361 + $0x14] sm:$0xf]
        %v499 = vld [vmem:[%s361 + $0x18] sm:$0xf]
        %v500 = vld [vmem:[%s361 + $0x1c] sm:$0xf]
        %v501 = vld [vmem:[%s361 + $0x20] sm:$0xf]
        %v502 = vld [vmem:[%s361 + $0x24] sm:$0xf]
        %v503 = vld [vmem:[%s361 + $0x28] sm:$0xf]
        %v504 = vld [vmem:[%s361 + $0x2c] sm:$0xf]
        %v505 = vld [vmem:[%s361 + $0x30] sm:$0xf]
        %v506 = vld [vmem:[%s361 + $0x34] sm:$0xf]
        %v507 = vld [vmem:[%s361 + $0x38] sm:$0xf]
        %v508 = vld [vmem:[%s361 + $0x3c] sm:$0xf]
        %v509 = vld [vmem:[%s361 + $0x40] sm:$0xf]
        %v510 = vld [vmem:[%s361 + $0x44] sm:$0xf]
        %v511 = vld [vmem:[%s361 + $0x48] sm:$0xf]
        %v512 = vld [vmem:[%s361 + $0x4c] sm:$0xf]
        %v513 = vld [vmem:[%s361 + $0x50] sm:$0xf]
        %v514 = vld [vmem:[%s361 + $0x54] sm:$0xf]
        %v515 = vld [vmem:[%s361 + $0x58] sm:$0xf]
        %v516 = vld [vmem:[%s361 + $0x5c] sm:$0xf]
        %v517 = vld [vmem:[%s361 + $0x60] sm:$0xf]
        %v518 = vld [vmem:[%s361 + $0x64] sm:$0xf]
        %v519 = vld [vmem:[%s361 + $0x68] sm:$0xf]
        %v520 = vld [vmem:[%s361 + $0x6c] sm:$0xf]
        %v521 = vld [vmem:[%s361 + $0x70] sm:$0xf]
        %v522 = vld [vmem:[%s361 + $0x74] sm:$0xf]
        %v523 = vld [vmem:[%s361 + $0x78] sm:$0xf]
        %v524 = vld [vmem:[%s361 + $0x7c] sm:$0xf]
        %vm525 = vsmask.f32 4368
        %vm526 = vmor %vm393, %vm525
        %v528 = vshrl.u32 %v493, 16
        %v530 = vrot.slane %v528, 7
        %v531 = vshll.u32 %v493, 16
        %v533 = vor.u32 %v530, %v531
        %v534 = vrot.slane %v530, 4
        %v536 = vshrl.u32 %v494, 16
        %v538 = vrot.slane %v536, 7
        %v539 = vshll.u32 %v494, 16
        %v541 = vor.u32 %v538, %v539
        %v542 = vsel %vm526, %v534, %v541
        %v543 = vrot.slane %v538, 4
        %v545 = vshrl.u32 %v495, 16
        %v547 = vrot.slane %v545, 7
        %v548 = vshll.u32 %v495, 16
        %v550 = vor.u32 %v547, %v548
        %v551 = vrot.slane %v547, 4
        %v553 = vshrl.u32 %v496, 16
        %v555 = vrot.slane %v553, 7
        %v556 = vshll.u32 %v496, 16
        %v558 = vor.u32 %v555, %v556
        %v559 = vsel %vm526, %v551, %v558
        %v560 = vrot.slane %v555, 4
        %v562 = vshrl.u32 %v497, 16
        %v564 = vrot.slane %v562, 7
        %v565 = vshll.u32 %v497, 16
        %v567 = vor.u32 %v564, %v565
        %v568 = vrot.slane %v564, 4
        %v570 = vshrl.u32 %v498, 16
        %v572 = vrot.slane %v570, 7
        %v573 = vshll.u32 %v498, 16
        %v575 = vor.u32 %v572, %v573
        %v576 = vsel %vm526, %v568, %v575
        %v577 = vrot.slane %v572, 4
        %v579 = vshrl.u32 %v499, 16
        %v581 = vrot.slane %v579, 7
        %v582 = vshll.u32 %v499, 16
        %v584 = vor.u32 %v581, %v582
        %v585 = vrot.slane %v581, 4
        %v587 = vshrl.u32 %v500, 16
        %v589 = vrot.slane %v587, 7
        %v590 = vshll.u32 %v500, 16
        %v592 = vor.u32 %v589, %v590
        %v593 = vsel %vm526, %v585, %v592
        %v594 = vrot.slane %v589, 4
        %v596 = vshrl.u32 %v501, 16
        %v598 = vrot.slane %v596, 7
        %v599 = vshll.u32 %v501, 16
        %v601 = vor.u32 %v598, %v599
        %v602 = vrot.slane %v598, 4
        %v604 = vshrl.u32 %v502, 16
        %v606 = vrot.slane %v604, 7
        %v607 = vshll.u32 %v502, 16
        %v609 = vor.u32 %v606, %v607
        %v610 = vsel %vm526, %v602, %v609
        %v611 = vrot.slane %v606, 4
        %v613 = vshrl.u32 %v503, 16
        %v615 = vrot.slane %v613, 7
        %v616 = vshll.u32 %v503, 16
        %v618 = vor.u32 %v615, %v616
        %v619 = vrot.slane %v615, 4
        %v621 = vshrl.u32 %v504, 16
        %v623 = vrot.slane %v621, 7
        %v624 = vshll.u32 %v504, 16
        %v626 = vor.u32 %v623, %v624
        %v627 = vsel %vm526, %v619, %v626
        %v628 = vrot.slane %v623, 4
        %v630 = vshrl.u32 %v505, 16
        %v632 = vrot.slane %v630, 7
        %v633 = vshll.u32 %v505, 16
        %v635 = vor.u32 %v632, %v633
        %v636 = vrot.slane %v632, 4
        %v638 = vshrl.u32 %v506, 16
        %v640 = vrot.slane %v638, 7
        %v641 = vshll.u32 %v506, 16
        %v643 = vor.u32 %v640, %v641
        %v644 = vsel %vm526, %v636, %v643
        %v645 = vrot.slane %v640, 4
        %v647 = vshrl.u32 %v507, 16
        %v649 = vrot.slane %v647, 7
        %v650 = vshll.u32 %v507, 16
        %v652 = vor.u32 %v649, %v650
        %v653 = vrot.slane %v649, 4
        %v655 = vshrl.u32 %v508, 16
        %v657 = vrot.slane %v655, 7
        %v658 = vshll.u32 %v508, 16
        %v660 = vor.u32 %v657, %v658
        %v661 = vsel %vm526, %v653, %v660
        %v662 = vrot.slane %v657, 4
        %v664 = vshrl.u32 %v509, 16
        %v666 = vrot.slane %v664, 7
        %v667 = vshll.u32 %v509, 16
        %v669 = vor.u32 %v666, %v667
        %v670 = vrot.slane %v666, 4
        %v672 = vshrl.u32 %v510, 16
        %v674 = vrot.slane %v672, 7
        %v675 = vshll.u32 %v510, 16
        %v677 = vor.u32 %v674, %v675
        %v678 = vsel %vm526, %v670, %v677
        %v679 = vrot.slane %v674, 4
        %v681 = vshrl.u32 %v511, 16
        %v683 = vrot.slane %v681, 7
        %v684 = vshll.u32 %v511, 16
        %v686 = vor.u32 %v683, %v684
        %v687 = vrot.slane %v683, 4
        %v689 = vshrl.u32 %v512, 16
        %v691 = vrot.slane %v689, 7
        %v692 = vshll.u32 %v512, 16
        %v694 = vor.u32 %v691, %v692
        %v695 = vsel %vm526, %v687, %v694
        %v696 = vrot.slane %v691, 4
        %v698 = vshrl.u32 %v513, 16
        %v700 = vrot.slane %v698, 7
        %v701 = vshll.u32 %v513, 16
        %v703 = vor.u32 %v700, %v701
        %v704 = vrot.slane %v700, 4
        %v706 = vshrl.u32 %v514, 16
        %v708 = vrot.slane %v706, 7
        %v709 = vshll.u32 %v514, 16
        %v711 = vor.u32 %v708, %v709
        %v712 = vsel %vm526, %v704, %v711
        %v713 = vrot.slane %v708, 4
        %v715 = vshrl.u32 %v515, 16
        %v717 = vrot.slane %v715, 7
        %v718 = vshll.u32 %v515, 16
        %v720 = vor.u32 %v717, %v718
        %v721 = vrot.slane %v717, 4
        %v723 = vshrl.u32 %v516, 16
        %v725 = vrot.slane %v723, 7
        %v726 = vshll.u32 %v516, 16
        %v728 = vor.u32 %v725, %v726
        %v729 = vsel %vm526, %v721, %v728
        %v730 = vrot.slane %v725, 4
        %v732 = vshrl.u32 %v517, 16
        %v734 = vrot.slane %v732, 7
        %v735 = vshll.u32 %v517, 16
        %v737 = vor.u32 %v734, %v735
        %v738 = vrot.slane %v734, 4
        %v740 = vshrl.u32 %v518, 16
        %v742 = vrot.slane %v740, 7
        %v743 = vshll.u32 %v518, 16
        %v745 = vor.u32 %v742, %v743
        %v746 = vsel %vm526, %v738, %v745
        %v747 = vrot.slane %v742, 4
        %v749 = vshrl.u32 %v519, 16
        %v751 = vrot.slane %v749, 7
        %v752 = vshll.u32 %v519, 16
        %v754 = vor.u32 %v751, %v752
        %v755 = vrot.slane %v751, 4
        %v757 = vshrl.u32 %v520, 16
        %v759 = vrot.slane %v757, 7
        %v760 = vshll.u32 %v520, 16
        %v762 = vor.u32 %v759, %v760
        %v763 = vsel %vm526, %v755, %v762
        %v764 = vrot.slane %v759, 4
        %v766 = vshrl.u32 %v521, 16
        %v768 = vrot.slane %v766, 7
        %v769 = vshll.u32 %v521, 16
        %v771 = vor.u32 %v768, %v769
        %v772 = vrot.slane %v768, 4
        %v774 = vshrl.u32 %v522, 16
        %v776 = vrot.slane %v774, 7
        %v777 = vshll.u32 %v522, 16
        %v779 = vor.u32 %v776, %v777
        %v780 = vsel %vm526, %v772, %v779
        %v781 = vrot.slane %v776, 4
        %v783 = vshrl.u32 %v523, 16
        %v785 = vrot.slane %v783, 7
        %v786 = vshll.u32 %v523, 16
        %v788 = vor.u32 %v785, %v786
        %v789 = vrot.slane %v785, 4
        %v791 = vshrl.u32 %v524, 16
        %v793 = vrot.slane %v791, 7
        %v794 = vshll.u32 %v524, 16
        %v796 = vor.u32 %v793, %v794
        %v797 = vsel %vm526, %v789, %v796
        %v798 = vrot.slane %v793, 4
        %vm847 = vcmask 19456
        %vm848 = vmand %vm847, %vm443
        %v849 = vld [vmem:[%s391] sm:$0xf]
        %v850 = vsel %vm848, %v533, %v849
        %851 = vst [vmem:[%s391] sm:$0xf] %v850
        %852 = vst.msk [vmem:[%s391 + $0x4] sm:$0xf] %vm382, %v542
        %v853 = vld [vmem:[%s391 + $0x8] sm:$0x1]
        %v854 = vsel %vm394, %v543, %v853
        %855 = vst [vmem:[%s391 + $0x8] sm:$0x1] %v854
        %v856 = vld [vmem:[%s391 + $0xc] sm:$0xf]
        %v857 = vsel %vm848, %v550, %v856
        %858 = vst [vmem:[%s391 + $0xc] sm:$0xf] %v857
        %859 = vst.msk [vmem:[%s391 + $0x10] sm:$0xf] %vm382, %v559
        %v860 = vld [vmem:[%s391 + $0x14] sm:$0x1]
        %v861 = vsel %vm394, %v560, %v860
        %862 = vst [vmem:[%s391 + $0x14] sm:$0x1] %v861
        %v863 = vld [vmem:[%s391 + $0x18] sm:$0xf]
        %v864 = vsel %vm848, %v567, %v863
        %865 = vst [vmem:[%s391 + $0x18] sm:$0xf] %v864
        %866 = vst.msk [vmem:[%s391 + $0x1c] sm:$0xf] %vm382, %v576
        %v867 = vld [vmem:[%s391 + $0x20] sm:$0x1]
        %v868 = vsel %vm394, %v577, %v867
        %869 = vst [vmem:[%s391 + $0x20] sm:$0x1] %v868
        %v870 = vld [vmem:[%s391 + $0x24] sm:$0xf]
        %v871 = vsel %vm848, %v584, %v870
        %872 = vst [vmem:[%s391 + $0x24] sm:$0xf] %v871
        %873 = vst.msk [vmem:[%s391 + $0x28] sm:$0xf] %vm382, %v593
        %v874 = vld [vmem:[%s391 + $0x2c] sm:$0x1]
        %v875 = vsel %vm394, %v594, %v874
        %876 = vst [vmem:[%s391 + $0x2c] sm:$0x1] %v875
        %v877 = vld [vmem:[%s391 + $0x30] sm:$0xf]
        %v878 = vsel %vm848, %v601, %v877
        %879 = vst [vmem:[%s391 + $0x30] sm:$0xf] %v878
        %880 = vst.msk [vmem:[%s391 + $0x34] sm:$0xf] %vm382, %v610
        %v881 = vld [vmem:[%s391 + $0x38] sm:$0x1]
        %v882 = vsel %vm394, %v611, %v881
        %883 = vst [vmem:[%s391 + $0x38] sm:$0x1] %v882
        %v884 = vld [vmem:[%s391 + $0x3c] sm:$0xf]
        %v885 = vsel %vm848, %v618, %v884
        %886 = vst [vmem:[%s391 + $0x3c] sm:$0xf] %v885
        %887 = vst.msk [vmem:[%s391 + $0x40] sm:$0xf] %vm382, %v627
        %v888 = vld [vmem:[%s391 + $0x44] sm:$0x1]
        %v889 = vsel %vm394, %v628, %v888
        %890 = vst [vmem:[%s391 + $0x44] sm:$0x1] %v889
        %v891 = vld [vmem:[%s391 + $0x48] sm:$0xf]
        %v892 = vsel %vm848, %v635, %v891
        %893 = vst [vmem:[%s391 + $0x48] sm:$0xf] %v892
        %894 = vst.msk [vmem:[%s391 + $0x4c] sm:$0xf] %vm382, %v644
        %v895 = vld [vmem:[%s391 + $0x50] sm:$0x1]
        %v896 = vsel %vm394, %v645, %v895
        %897 = vst [vmem:[%s391 + $0x50] sm:$0x1] %v896
        %v898 = vld [vmem:[%s391 + $0x54] sm:$0xf]
        %v899 = vsel %vm848, %v652, %v898
        %900 = vst [vmem:[%s391 + $0x54] sm:$0xf] %v899
        %901 = vst.msk [vmem:[%s391 + $0x58] sm:$0xf] %vm382, %v661
        %v902 = vld [vmem:[%s391 + $0x5c] sm:$0x1]
        %v903 = vsel %vm394, %v662, %v902
        %904 = vst [vmem:[%s391 + $0x5c] sm:$0x1] %v903
        %v905 = vld [vmem:[%s391 + $0x60] sm:$0xf]
        %v906 = vsel %vm848, %v669, %v905
        %907 = vst [vmem:[%s391 + $0x60] sm:$0xf] %v906
        %908 = vst.msk [vmem:[%s391 + $0x64] sm:$0xf] %vm382, %v678
        %v909 = vld [vmem:[%s391 + $0x68] sm:$0x1]
        %v910 = vsel %vm394, %v679, %v909
        %911 = vst [vmem:[%s391 + $0x68] sm:$0x1] %v910
        %v912 = vld [vmem:[%s391 + $0x6c] sm:$0xf]
        %v913 = vsel %vm848, %v686, %v912
        %914 = vst [vmem:[%s391 + $0x6c] sm:$0xf] %v913
        %915 = vst.msk [vmem:[%s391 + $0x70] sm:$0xf] %vm382, %v695
        %v916 = vld [vmem:[%s391 + $0x74] sm:$0x1]
        %v917 = vsel %vm394, %v696, %v916
        %918 = vst [vmem:[%s391 + $0x74] sm:$0x1] %v917
        %v919 = vld [vmem:[%s391 + $0x78] sm:$0xf]
        %v920 = vsel %vm848, %v703, %v919
        %921 = vst [vmem:[%s391 + $0x78] sm:$0xf] %v920
        %922 = vst.msk [vmem:[%s391 + $0x7c] sm:$0xf] %vm382, %v712
        %v923 = vld [vmem:[%s391 + $0x80] sm:$0x1]
        %v924 = vsel %vm394, %v713, %v923
        %925 = vst [vmem:[%s391 + $0x80] sm:$0x1] %v924
        %v926 = vld [vmem:[%s391 + $0x84] sm:$0xf]
        %v927 = vsel %vm848, %v720, %v926
        %928 = vst [vmem:[%s391 + $0x84] sm:$0xf] %v927
        %929 = vst.msk [vmem:[%s391 + $0x88] sm:$0xf] %vm382, %v729
        %v930 = vld [vmem:[%s391 + $0x8c] sm:$0x1]
        %v931 = vsel %vm394, %v730, %v930
        %932 = vst [vmem:[%s391 + $0x8c] sm:$0x1] %v931
        %v933 = vld [vmem:[%s391 + $0x90] sm:$0xf]
        %v934 = vsel %vm848, %v737, %v933
        %935 = vst [vmem:[%s391 + $0x90] sm:$0xf] %v934
        %936 = vst.msk [vmem:[%s391 + $0x94] sm:$0xf] %vm382, %v746
        %v937 = vld [vmem:[%s391 + $0x98] sm:$0x1]
        %v938 = vsel %vm394, %v747, %v937
        %939 = vst [vmem:[%s391 + $0x98] sm:$0x1] %v938
        %v940 = vld [vmem:[%s391 + $0x9c] sm:$0xf]
        %v941 = vsel %vm848, %v754, %v940
        %942 = vst [vmem:[%s391 + $0x9c] sm:$0xf] %v941
        %943 = vst.msk [vmem:[%s391 + $0xa0] sm:$0xf] %vm382, %v763
        %v944 = vld [vmem:[%s391 + $0xa4] sm:$0x1]
        %v945 = vsel %vm394, %v764, %v944
        %946 = vst [vmem:[%s391 + $0xa4] sm:$0x1] %v945
        %v947 = vld [vmem:[%s391 + $0xa8] sm:$0xf]
        %v948 = vsel %vm848, %v771, %v947
        %949 = vst [vmem:[%s391 + $0xa8] sm:$0xf] %v948
        %950 = vst.msk [vmem:[%s391 + $0xac] sm:$0xf] %vm382, %v780
        %v951 = vld [vmem:[%s391 + $0xb0] sm:$0x1]
        %v952 = vsel %vm394, %v781, %v951
        %953 = vst [vmem:[%s391 + $0xb0] sm:$0x1] %v952
        %v954 = vld [vmem:[%s391 + $0xb4] sm:$0xf]
        %v955 = vsel %vm848, %v788, %v954
        %956 = vst [vmem:[%s391 + $0xb4] sm:$0xf] %v955
        %957 = vst.msk [vmem:[%s391 + $0xb8] sm:$0xf] %vm382, %v797
        %v958 = vld [vmem:[%s391 + $0xbc] sm:$0x1]
        %v959 = vsel %vm394, %v798, %v958
        %960 = vst [vmem:[%s391 + $0xbc] sm:$0x1] %v959
        %p961 = scmp.gt.s32.totalorder %s24, 0
        // Predicated region
        $region41: #{tpu_custom_call.1} parent=39 // pred_check
          %p962 = pneg %p961
        $region42: #{tpu_custom_call.1} parent=39 // pred_check_branch
          %964 = sbr.rel (%p962) target = $region44
        $region43: #{tpu_custom_call.1} parent=39 // pred_region
          %v965 = vld [vmem:[%s347] sm:$0xf]
          %v966 = vld [vmem:[%s347 + $0x4] sm:$0xf]
          %v968 = vshrl.u32 %v965, 16
          %v970 = vrot.slane %v968, 7
          %v971 = vshll.u32 %v965, 16
          %v973 = vor.u32 %v970, %v971
          %v974 = vrot.slane %v970, 4
          %v976 = vshrl.u32 %v966, 16
          %v978 = vrot.slane %v976, 7
          %v979 = vshll.u32 %v966, 16
          %v981 = vor.u32 %v978, %v979
          %v982 = vsel %vm526, %v974, %v981
          %v983 = vrot.slane %v978, 4
          %v987 = vld [vmem:[#allocation2] sm:$0xf]
          %v988 = vsel %vm848, %v973, %v987
          %989 = vst [vmem:[#allocation2] sm:$0xf] %v988
          %990 = vst.msk [vmem:[#allocation2 + $0x4] sm:$0xf] %vm382, %v982
          %v991 = vld [vmem:[#allocation2 + $0x8] sm:$0x1]
          %v992 = vsel %vm394, %v983, %v991
          %993 = vst [vmem:[#allocation2 + $0x8] sm:$0x1] %v992
        $region44: #{tpu_custom_call.1} parent=39 // pred_fallthru
          _
        %p994 = scmp.lt.s32.totalorder %s24, 0
        // Predicated region
        $region45: #{tpu_custom_call.1} parent=39 // pred_check
          %p995 = pneg %p994
        $region46: #{tpu_custom_call.1} parent=39 // pred_check_branch
          %997 = sbr.rel (%p995) target = $region48
        $region47: #{tpu_custom_call.1} parent=39 // pred_region
          %v998 = vld [vmem:[%s375] sm:$0xf]
          %v999 = vld [vmem:[%s375 + $0x4] sm:$0xf]
          %v1001 = vshrl.u32 %v998, 16
          %v1003 = vrot.slane %v1001, 7
          %v1004 = vshll.u32 %v998, 16
          %v1006 = vor.u32 %v1003, %v1004
          %v1007 = vrot.slane %v1003, 4
          %v1009 = vshrl.u32 %v999, 16
          %v1011 = vrot.slane %v1009, 7
          %v1012 = vshll.u32 %v999, 16
          %v1014 = vor.u32 %v1011, %v1012
          %v1015 = vsel %vm526, %v1007, %v1014
          %v1016 = vrot.slane %v1011, 4
          %v1020 = vld [vmem:[%s387] sm:$0xf]
          %v1021 = vsel %vm848, %v1006, %v1020
          %1022 = vst [vmem:[%s387] sm:$0xf] %v1021
          %1023 = vst.msk [vmem:[%s387 + $0x4] sm:$0xf] %vm382, %v1015
          %v1024 = vld [vmem:[%s387 + $0x8] sm:$0x1]
          %v1025 = vsel %vm394, %v1016, %v1024
          %1026 = vst [vmem:[%s387 + $0x8] sm:$0x1] %v1025
        $region48: #{tpu_custom_call.1} parent=39 // pred_fallthru
          _
        %v1027 = vld [vmem:[#allocation2] sm:$0xf]
        %v1028 = vld [vmem:[#allocation2 + $0x4] sm:$0xf]
        %v1029 = vld [vmem:[#allocation2 + $0xc] sm:$0xf]
        %v1030 = vld [vmem:[#allocation2 + $0x10] sm:$0xf]
        %v1031 = vld [vmem:[#allocation2 + $0x18] sm:$0xf]
        %v1032 = vld [vmem:[#allocation2 + $0x1c] sm:$0xf]
        %v1033 = vld [vmem:[#allocation2 + $0x24] sm:$0xf]
        %v1034 = vld [vmem:[#allocation2 + $0x28] sm:$0xf]
        %v1035 = vld [vmem:[#allocation2 + $0x30] sm:$0xf]
        %v1036 = vld [vmem:[#allocation2 + $0x34] sm:$0xf]
        %v1037 = vld [vmem:[#allocation2 + $0x3c] sm:$0xf]
        %v1038 = vld [vmem:[#allocation2 + $0x40] sm:$0xf]
        %v1039 = vld [vmem:[#allocation2 + $0x48] sm:$0xf]
        %v1040 = vld [vmem:[#allocation2 + $0x4c] sm:$0xf]
        %v1041 = vld [vmem:[#allocation2 + $0x54] sm:$0xf]
        %v1042 = vld [vmem:[#allocation2 + $0x58] sm:$0xf]
        %v1043 = vld [vmem:[#allocation2 + $0x60] sm:$0xf]
        %v1044 = vld [vmem:[#allocation2 + $0x64] sm:$0xf]
        %v1045 = vld [vmem:[#allocation2 + $0x6c] sm:$0xf]
        %v1046 = vld [vmem:[#allocation2 + $0x70] sm:$0xf]
        %v1047 = vld [vmem:[#allocation2 + $0x78] sm:$0xf]
        %v1048 = vld [vmem:[#allocation2 + $0x7c] sm:$0xf]
        %v1049 = vld [vmem:[#allocation2 + $0x84] sm:$0xf]
        %v1050 = vld [vmem:[#allocation2 + $0x88] sm:$0xf]
        %v1051 = vld [vmem:[#allocation2 + $0x90] sm:$0xf]
        %v1052 = vld [vmem:[#allocation2 + $0x94] sm:$0xf]
        %v1053 = vld [vmem:[#allocation2 + $0x9c] sm:$0xf]
        %v1054 = vld [vmem:[#allocation2 + $0xa0] sm:$0xf]
        %v1055 = vld [vmem:[#allocation2 + $0xa8] sm:$0xf]
        %v1056 = vld [vmem:[#allocation2 + $0xac] sm:$0xf]
        %v1057 = vld [vmem:[#allocation2 + $0xb4] sm:$0xf]
        %v1058 = vld [vmem:[#allocation2 + $0xb8] sm:$0xf]
        %v1059 = vld [vmem:[#allocation2 + $0x8] sm:$0x1]
        %v1060 = vld [vmem:[#allocation2 + $0x14] sm:$0x1]
        %v1061 = vld [vmem:[#allocation2 + $0x20] sm:$0x1]
        %v1062 = vld [vmem:[#allocation2 + $0x2c] sm:$0x1]
        %v1063 = vld [vmem:[#allocation2 + $0x38] sm:$0x1]
        %v1064 = vld [vmem:[#allocation2 + $0x44] sm:$0x1]
        %v1065 = vld [vmem:[#allocation2 + $0x50] sm:$0x1]
        %v1066 = vld [vmem:[#allocation2 + $0x5c] sm:$0x1]
        %v1067 = vld [vmem:[#allocation2 + $0x68] sm:$0x1]
        %v1068 = vld [vmem:[#allocation2 + $0x74] sm:$0x1]
        %v1069 = vld [vmem:[#allocation2 + $0x80] sm:$0x1]
        %v1070 = vld [vmem:[#allocation2 + $0x8c] sm:$0x1]
        %v1071 = vld [vmem:[#allocation2 + $0x98] sm:$0x1]
        %v1072 = vld [vmem:[#allocation2 + $0xa4] sm:$0x1]
        %v1073 = vld [vmem:[#allocation2 + $0xb0] sm:$0x1]
        %v1074 = vld [vmem:[#allocation2 + $0xbc] sm:$0x1]
        %v1075 = vld [vmem:[#allocation2] sm:$0xe]
        %v1076 = vld [vmem:[#allocation2 + $0xc] sm:$0xe]
        %v1077 = vld [vmem:[#allocation2 + $0x18] sm:$0xe]
        %v1078 = vld [vmem:[#allocation2 + $0x24] sm:$0xe]
        %v1079 = vld [vmem:[#allocation2 + $0x30] sm:$0xe]
        %v1080 = vld [vmem:[#allocation2 + $0x3c] sm:$0xe]
        %v1081 = vld [vmem:[#allocation2 + $0x48] sm:$0xe]
        %v1082 = vld [vmem:[#allocation2 + $0x54] sm:$0xe]
        %v1083 = vld [vmem:[#allocation2 + $0x60] sm:$0xe]
        %v1084 = vld [vmem:[#allocation2 + $0x6c] sm:$0xe]
        %v1085 = vld [vmem:[#allocation2 + $0x78] sm:$0xe]
        %v1086 = vld [vmem:[#allocation2 + $0x84] sm:$0xe]
        %v1087 = vld [vmem:[#allocation2 + $0x90] sm:$0xe]
        %v1088 = vld [vmem:[#allocation2 + $0x9c] sm:$0xe]
        %v1089 = vld [vmem:[#allocation2 + $0xa8] sm:$0xe]
        %v1090 = vld [vmem:[#allocation2 + $0xb4] sm:$0xe]
        %v1123 = vunpack.c.l.b16 %v1027
        %v1124 = vunpack.c.l.b16 %v1028
        %v1125 = vunpack.c.l.b16 %v1029
        %v1126 = vunpack.c.l.b16 %v1030
        %v1127 = vunpack.c.l.b16 %v1031
        %v1128 = vunpack.c.l.b16 %v1032
        %v1129 = vunpack.c.l.b16 %v1033
        %v1130 = vunpack.c.l.b16 %v1034
        %v1131 = vunpack.c.l.b16 %v1035
        %v1132 = vunpack.c.l.b16 %v1036
        %v1133 = vunpack.c.l.b16 %v1037
        %v1134 = vunpack.c.l.b16 %v1038
        %v1135 = vunpack.c.l.b16 %v1039
        %v1136 = vunpack.c.l.b16 %v1040
        %v1137 = vunpack.c.l.b16 %v1041
        %v1138 = vunpack.c.l.b16 %v1042
        %v1139 = vunpack.c.l.b16 %v1043
        %v1140 = vunpack.c.l.b16 %v1044
        %v1141 = vunpack.c.l.b16 %v1045
        %v1142 = vunpack.c.l.b16 %v1046
        %v1143 = vunpack.c.l.b16 %v1047
        %v1144 = vunpack.c.l.b16 %v1048
        %v1145 = vunpack.c.l.b16 %v1049
        %v1146 = vunpack.c.l.b16 %v1050
        %v1147 = vunpack.c.l.b16 %v1051
        %v1148 = vunpack.c.l.b16 %v1052
        %v1149 = vunpack.c.l.b16 %v1053
        %v1150 = vunpack.c.l.b16 %v1054
        %v1151 = vunpack.c.l.b16 %v1055
        %v1152 = vunpack.c.l.b16 %v1056
        %v1153 = vunpack.c.l.b16 %v1057
        %v1154 = vunpack.c.l.b16 %v1058
        %v1155 = vpack.c.b16 %v1124, %v1123
        %v1156 = vpack.c.b16 %v1126, %v1125
        %v1157 = vpack.c.b16 %v1128, %v1127
        %v1158 = vpack.c.b16 %v1130, %v1129
        %v1159 = vpack.c.b16 %v1132, %v1131
        %v1160 = vpack.c.b16 %v1134, %v1133
        %v1161 = vpack.c.b16 %v1136, %v1135
        %v1162 = vpack.c.b16 %v1138, %v1137
        %v1163 = vpack.c.b16 %v1140, %v1139
        %v1164 = vpack.c.b16 %v1142, %v1141
        %v1165 = vpack.c.b16 %v1144, %v1143
        %v1166 = vpack.c.b16 %v1146, %v1145
        %v1167 = vpack.c.b16 %v1148, %v1147
        %v1168 = vpack.c.b16 %v1150, %v1149
        %v1169 = vpack.c.b16 %v1152, %v1151
        %v1170 = vpack.c.b16 %v1154, %v1153
        %v1187 = vunpack.c.l.b16 %v1059
        %v1188 = vunpack.c.l.b16 %v1060
        %v1189 = vunpack.c.l.b16 %v1061
        %v1190 = vunpack.c.l.b16 %v1062
        %v1191 = vunpack.c.l.b16 %v1063
        %v1192 = vunpack.c.l.b16 %v1064
        %v1193 = vunpack.c.l.b16 %v1065
        %v1194 = vunpack.c.l.b16 %v1066
        %v1195 = vunpack.c.l.b16 %v1067
        %v1196 = vunpack.c.l.b16 %v1068
        %v1197 = vunpack.c.l.b16 %v1069
        %v1198 = vunpack.c.l.b16 %v1070
        %v1199 = vunpack.c.l.b16 %v1071
        %v1200 = vunpack.c.l.b16 %v1072
        %v1201 = vunpack.c.l.b16 %v1073
        %v1202 = vunpack.c.l.b16 %v1074
        %v1203 = vpack.c.b16 %v1187, %v1187
        %v1204 = vpack.c.b16 %v1188, %v1188
        %v1205 = vpack.c.b16 %v1189, %v1189
        %v1206 = vpack.c.b16 %v1190, %v1190
        %v1207 = vpack.c.b16 %v1191, %v1191
        %v1208 = vpack.c.b16 %v1192, %v1192
        %v1209 = vpack.c.b16 %v1193, %v1193
        %v1210 = vpack.c.b16 %v1194, %v1194
        %v1211 = vpack.c.b16 %v1195, %v1195
        %v1212 = vpack.c.b16 %v1196, %v1196
        %v1213 = vpack.c.b16 %v1197, %v1197
        %v1214 = vpack.c.b16 %v1198, %v1198
        %v1215 = vpack.c.b16 %v1199, %v1199
        %v1216 = vpack.c.b16 %v1200, %v1200
        %v1217 = vpack.c.b16 %v1201, %v1201
        %v1218 = vpack.c.b16 %v1202, %v1202
        %vm1219 = vsmask.f32 7424
        %v1221 = vshrl.u32 %v1155, 16
        %v1223 = vshll.u32 %v1155, 16
        %v1225 = vrot.slane %v1223, 1
        %v1226 = vor.u32 %v1221, %v1225
        %v1228 = vshll.u32 %v1203, 16
        %v1230 = vrot.slane %v1228, 1
        %v1231 = vsel %vm1219, %v1226, %v1230
        %v1233 = vshrl.u32 %v1156, 16
        %v1235 = vshll.u32 %v1156, 16
        %v1237 = vrot.slane %v1235, 1
        %v1238 = vor.u32 %v1233, %v1237
        %v1240 = vshll.u32 %v1204, 16
        %v1242 = vrot.slane %v1240, 1
        %v1243 = vsel %vm1219, %v1238, %v1242
        %v1245 = vshrl.u32 %v1157, 16
        %v1247 = vshll.u32 %v1157, 16
        %v1249 = vrot.slane %v1247, 1
        %v1250 = vor.u32 %v1245, %v1249
        %v1252 = vshll.u32 %v1205, 16
        %v1254 = vrot.slane %v1252, 1
        %v1255 = vsel %vm1219, %v1250, %v1254
        %v1257 = vshrl.u32 %v1158, 16
        %v1259 = vshll.u32 %v1158, 16
        %v1261 = vrot.slane %v1259, 1
        %v1262 = vor.u32 %v1257, %v1261
        %v1264 = vshll.u32 %v1206, 16
        %v1266 = vrot.slane %v1264, 1
        %v1267 = vsel %vm1219, %v1262, %v1266
        %v1269 = vshrl.u32 %v1159, 16
        %v1271 = vshll.u32 %v1159, 16
        %v1273 = vrot.slane %v1271, 1
        %v1274 = vor.u32 %v1269, %v1273
        %v1276 = vshll.u32 %v1207, 16
        %v1278 = vrot.slane %v1276, 1
        %v1279 = vsel %vm1219, %v1274, %v1278
        %v1281 = vshrl.u32 %v1160, 16
        %v1283 = vshll.u32 %v1160, 16
        %v1285 = vrot.slane %v1283, 1
        %v1286 = vor.u32 %v1281, %v1285
        %v1288 = vshll.u32 %v1208, 16
        %v1290 = vrot.slane %v1288, 1
        %v1291 = vsel %vm1219, %v1286, %v1290
        %v1293 = vshrl.u32 %v1161, 16
        %v1295 = vshll.u32 %v1161, 16
        %v1297 = vrot.slane %v1295, 1
        %v1298 = vor.u32 %v1293, %v1297
        %v1300 = vshll.u32 %v1209, 16
        %v1302 = vrot.slane %v1300, 1
        %v1303 = vsel %vm1219, %v1298, %v1302
        %v1305 = vshrl.u32 %v1162, 16
        %v1307 = vshll.u32 %v1162, 16
        %v1309 = vrot.slane %v1307, 1
        %v1310 = vor.u32 %v1305, %v1309
        %v1312 = vshll.u32 %v1210, 16
        %v1314 = vrot.slane %v1312, 1
        %v1315 = vsel %vm1219, %v1310, %v1314
        %v1317 = vshrl.u32 %v1163, 16
        %v1319 = vshll.u32 %v1163, 16
        %v1321 = vrot.slane %v1319, 1
        %v1322 = vor.u32 %v1317, %v1321
        %v1324 = vshll.u32 %v1211, 16
        %v1326 = vrot.slane %v1324, 1
        %v1327 = vsel %vm1219, %v1322, %v1326
        %v1329 = vshrl.u32 %v1164, 16
        %v1331 = vshll.u32 %v1164, 16
        %v1333 = vrot.slane %v1331, 1
        %v1334 = vor.u32 %v1329, %v1333
        %v1336 = vshll.u32 %v1212, 16
        %v1338 = vrot.slane %v1336, 1
        %v1339 = vsel %vm1219, %v1334, %v1338
        %v1341 = vshrl.u32 %v1165, 16
        %v1343 = vshll.u32 %v1165, 16
        %v1345 = vrot.slane %v1343, 1
        %v1346 = vor.u32 %v1341, %v1345
        %v1348 = vshll.u32 %v1213, 16
        %v1350 = vrot.slane %v1348, 1
        %v1351 = vsel %vm1219, %v1346, %v1350
        %v1353 = vshrl.u32 %v1166, 16
        %v1355 = vshll.u32 %v1166, 16
        %v1357 = vrot.slane %v1355, 1
        %v1358 = vor.u32 %v1353, %v1357
        %v1360 = vshll.u32 %v1214, 16
        %v1362 = vrot.slane %v1360, 1
        %v1363 = vsel %vm1219, %v1358, %v1362
        %v1365 = vshrl.u32 %v1167, 16
        %v1367 = vshll.u32 %v1167, 16
        %v1369 = vrot.slane %v1367, 1
        %v1370 = vor.u32 %v1365, %v1369
        %v1372 = vshll.u32 %v1215, 16
        %v1374 = vrot.slane %v1372, 1
        %v1375 = vsel %vm1219, %v1370, %v1374
        %v1377 = vshrl.u32 %v1168, 16
        %v1379 = vshll.u32 %v1168, 16
        %v1381 = vrot.slane %v1379, 1
        %v1382 = vor.u32 %v1377, %v1381
        %v1384 = vshll.u32 %v1216, 16
        %v1386 = vrot.slane %v1384, 1
        %v1387 = vsel %vm1219, %v1382, %v1386
        %v1389 = vshrl.u32 %v1169, 16
        %v1391 = vshll.u32 %v1169, 16
        %v1393 = vrot.slane %v1391, 1
        %v1394 = vor.u32 %v1389, %v1393
        %v1396 = vshll.u32 %v1217, 16
        %v1398 = vrot.slane %v1396, 1
        %v1399 = vsel %vm1219, %v1394, %v1398
        %v1401 = vshrl.u32 %v1170, 16
        %v1403 = vshll.u32 %v1170, 16
        %v1405 = vrot.slane %v1403, 1
        %v1406 = vor.u32 %v1401, %v1405
        %v1408 = vshll.u32 %v1218, 16
        %v1410 = vrot.slane %v1408, 1
        %v1411 = vsel %vm1219, %v1406, %v1410
        %1412 = vrot.lane.b32.xlu0 %v1231, 3
        %v1413 = vpop.permute.xlu0 %1412
        %1414 = vrot.lane.b32.xlu0 %v1243, 3
        %v1415 = vpop.permute.xlu0 %1414
        %1416 = vrot.lane.b32.xlu0 %v1255, 3
        %v1417 = vpop.permute.xlu0 %1416
        %1418 = vrot.lane.b32.xlu0 %v1267, 3
        %v1419 = vpop.permute.xlu0 %1418
        %1420 = vrot.lane.b32.xlu0 %v1279, 3
        %v1421 = vpop.permute.xlu0 %1420
        %1422 = vrot.lane.b32.xlu0 %v1291, 3
        %v1423 = vpop.permute.xlu0 %1422
        %1424 = vrot.lane.b32.xlu0 %v1303, 3
        %v1425 = vpop.permute.xlu0 %1424
        %1426 = vrot.lane.b32.xlu0 %v1315, 3
        %v1427 = vpop.permute.xlu0 %1426
        %1428 = vrot.lane.b32.xlu0 %v1327, 3
        %v1429 = vpop.permute.xlu0 %1428
        %1430 = vrot.lane.b32.xlu0 %v1339, 3
        %v1431 = vpop.permute.xlu0 %1430
        %1432 = vrot.lane.b32.xlu0 %v1351, 3
        %v1433 = vpop.permute.xlu0 %1432
        %1434 = vrot.lane.b32.xlu0 %v1363, 3
        %v1435 = vpop.permute.xlu0 %1434
        %1436 = vrot.lane.b32.xlu0 %v1375, 3
        %v1437 = vpop.permute.xlu0 %1436
        %1438 = vrot.lane.b32.xlu0 %v1387, 3
        %v1439 = vpop.permute.xlu0 %1438
        %1440 = vrot.lane.b32.xlu0 %v1399, 3
        %v1441 = vpop.permute.xlu0 %1440
        %1442 = vrot.lane.b32.xlu0 %v1411, 3
        %v1443 = vpop.permute.xlu0 %1442
        %v1460 = vunpack.c.l.b16 %v1075
        %v1461 = vunpack.c.l.b16 %v1076
        %v1462 = vunpack.c.l.b16 %v1077
        %v1463 = vunpack.c.l.b16 %v1078
        %v1464 = vunpack.c.l.b16 %v1079
        %v1465 = vunpack.c.l.b16 %v1080
        %v1466 = vunpack.c.l.b16 %v1081
        %v1467 = vunpack.c.l.b16 %v1082
        %v1468 = vunpack.c.l.b16 %v1083
        %v1469 = vunpack.c.l.b16 %v1084
        %v1470 = vunpack.c.l.b16 %v1085
        %v1471 = vunpack.c.l.b16 %v1086
        %v1472 = vunpack.c.l.b16 %v1087
        %v1473 = vunpack.c.l.b16 %v1088
        %v1474 = vunpack.c.l.b16 %v1089
        %v1475 = vunpack.c.l.b16 %v1090
        %v1476 = vpack.c.b16 %v1124, %v1460
        %v1477 = vpack.c.b16 %v1126, %v1461
        %v1478 = vpack.c.b16 %v1128, %v1462
        %v1479 = vpack.c.b16 %v1130, %v1463
        %v1480 = vpack.c.b16 %v1132, %v1464
        %v1481 = vpack.c.b16 %v1134, %v1465
        %v1482 = vpack.c.b16 %v1136, %v1466
        %v1483 = vpack.c.b16 %v1138, %v1467
        %v1484 = vpack.c.b16 %v1140, %v1468
        %v1485 = vpack.c.b16 %v1142, %v1469
        %v1486 = vpack.c.b16 %v1144, %v1470
        %v1487 = vpack.c.b16 %v1146, %v1471
        %v1488 = vpack.c.b16 %v1148, %v1472
        %v1489 = vpack.c.b16 %v1150, %v1473
        %v1490 = vpack.c.b16 %v1152, %v1474
        %v1491 = vpack.c.b16 %v1154, %v1475
        %vm1492 = vcmask 1046528
        %v1493 = vrot.slane %v1476, 1
        %v1494 = vrot.slane %v1203, 1
        %v1495 = vsel %vm1492, %v1493, %v1494
        %v1496 = vrot.slane %v1477, 1
        %v1497 = vrot.slane %v1204, 1
        %v1498 = vsel %vm1492, %v1496, %v1497
        %v1499 = vrot.slane %v1478, 1
        %v1500 = vrot.slane %v1205, 1
        %v1501 = vsel %vm1492, %v1499, %v1500
        %v1502 = vrot.slane %v1479, 1
        %v1503 = vrot.slane %v1206, 1
        %v1504 = vsel %vm1492, %v1502, %v1503
        %v1505 = vrot.slane %v1480, 1
        %v1506 = vrot.slane %v1207, 1
        %v1507 = vsel %vm1492, %v1505, %v1506
        %v1508 = vrot.slane %v1481, 1
        %v1509 = vrot.slane %v1208, 1
        %v1510 = vsel %vm1492, %v1508, %v1509
        %v1511 = vrot.slane %v1482, 1
        %v1512 = vrot.slane %v1209, 1
        %v1513 = vsel %vm1492, %v1511, %v1512
        %v1514 = vrot.slane %v1483, 1
        %v1515 = vrot.slane %v1210, 1
        %v1516 = vsel %vm1492, %v1514, %v1515
        %v1517 = vrot.slane %v1484, 1
        %v1518 = vrot.slane %v1211, 1
        %v1519 = vsel %vm1492, %v1517, %v1518
        %v1520 = vrot.slane %v1485, 1
        %v1521 = vrot.slane %v1212, 1
        %v1522 = vsel %vm1492, %v1520, %v1521
        %v1523 = vrot.slane %v1486, 1
        %v1524 = vrot.slane %v1213, 1
        %v1525 = vsel %vm1492, %v1523, %v1524
        %v1526 = vrot.slane %v1487, 1
        %v1527 = vrot.slane %v1214, 1
        %v1528 = vsel %vm1492, %v1526, %v1527
        %v1529 = vrot.slane %v1488, 1
        %v1530 = vrot.slane %v1215, 1
        %v1531 = vsel %vm1492, %v1529, %v1530
        %v1532 = vrot.slane %v1489, 1
        %v1533 = vrot.slane %v1216, 1
        %v1534 = vsel %vm1492, %v1532, %v1533
        %v1535 = vrot.slane %v1490, 1
        %v1536 = vrot.slane %v1217, 1
        %v1537 = vsel %vm1492, %v1535, %v1536
        %v1538 = vrot.slane %v1491, 1
        %v1539 = vrot.slane %v1218, 1
        %v1540 = vsel %vm1492, %v1538, %v1539
        %1541 = vrot.lane.b32.xlu0 %v1495, 6
        %v1542 = vpop.permute.xlu0 %1541
        %1543 = vrot.lane.b32.xlu0 %v1498, 6
        %v1544 = vpop.permute.xlu0 %1543
        %1545 = vrot.lane.b32.xlu0 %v1501, 6
        %v1546 = vpop.permute.xlu0 %1545
        %1547 = vrot.lane.b32.xlu0 %v1504, 6
        %v1548 = vpop.permute.xlu0 %1547
        %1549 = vrot.lane.b32.xlu0 %v1507, 6
        %v1550 = vpop.permute.xlu0 %1549
        %1551 = vrot.lane.b32.xlu0 %v1510, 6
        %v1552 = vpop.permute.xlu0 %1551
        %1553 = vrot.lane.b32.xlu0 %v1513, 6
        %v1554 = vpop.permute.xlu0 %1553
        %1555 = vrot.lane.b32.xlu0 %v1516, 6
        %v1556 = vpop.permute.xlu0 %1555
        %1557 = vrot.lane.b32.xlu0 %v1519, 6
        %v1558 = vpop.permute.xlu0 %1557
        %1559 = vrot.lane.b32.xlu0 %v1522, 6
        %v1560 = vpop.permute.xlu0 %1559
        %1561 = vrot.lane.b32.xlu0 %v1525, 6
        %v1562 = vpop.permute.xlu0 %1561
        %1563 = vrot.lane.b32.xlu0 %v1528, 6
        %v1564 = vpop.permute.xlu0 %1563
        %1565 = vrot.lane.b32.xlu0 %v1531, 6
        %v1566 = vpop.permute.xlu0 %1565
        %1567 = vrot.lane.b32.xlu0 %v1534, 6
        %v1568 = vpop.permute.xlu0 %1567
        %1569 = vrot.lane.b32.xlu0 %v1537, 6
        %v1570 = vpop.permute.xlu0 %1569
        %1571 = vrot.lane.b32.xlu0 %v1540, 6
        %v1572 = vpop.permute.xlu0 %1571
        %vm1573 = vcmask 23552
        %v1575 = vsel %vm1573, %v1155, %v1413
        %v1577 = vsel %vm1573, %v1156, %v1415
        %v1579 = vsel %vm1573, %v1157, %v1417
        %v1581 = vsel %vm1573, %v1158, %v1419
        %v1583 = vsel %vm1573, %v1159, %v1421
        %v1585 = vsel %vm1573, %v1160, %v1423
        %v1587 = vsel %vm1573, %v1161, %v1425
        %v1589 = vsel %vm1573, %v1162, %v1427
        %v1591 = vsel %vm1573, %v1163, %v1429
        %v1593 = vsel %vm1573, %v1164, %v1431
        %v1595 = vsel %vm1573, %v1165, %v1433
        %v1597 = vsel %vm1573, %v1166, %v1435
        %v1599 = vsel %vm1573, %v1167, %v1437
        %v1601 = vsel %vm1573, %v1168, %v1439
        %v1603 = vsel %vm1573, %v1169, %v1441
        %v1605 = vsel %vm1573, %v1170, %v1443
        %vm1606 = vcmask 48128
        %v1608 = vsel %vm1606, %v1575, %v1542
        %v1610 = vsel %vm1606, %v1577, %v1544
        %v1612 = vsel %vm1606, %v1579, %v1546
        %v1614 = vsel %vm1606, %v1581, %v1548
        %v1616 = vsel %vm1606, %v1583, %v1550
        %v1618 = vsel %vm1606, %v1585, %v1552
        %v1620 = vsel %vm1606, %v1587, %v1554
        %v1622 = vsel %vm1606, %v1589, %v1556
        %v1624 = vsel %vm1606, %v1591, %v1558
        %v1626 = vsel %vm1606, %v1593, %v1560
        %v1628 = vsel %vm1606, %v1595, %v1562
        %v1630 = vsel %vm1606, %v1597, %v1564
        %v1632 = vsel %vm1606, %v1599, %v1566
        %v1634 = vsel %vm1606, %v1601, %v1568
        %v1636 = vsel %vm1606, %v1603, %v1570
        %v1638 = vsel %vm1606, %v1605, %v1572
        %v1639 = vld [vmem:[%s391] sm:$0xf]
        %v1640 = vld [vmem:[%s391 + $0x4] sm:$0xf]
        %v1641 = vld [vmem:[%s391 + $0xc] sm:$0xf]
        %v1642 = vld [vmem:[%s391 + $0x10] sm:$0xf]
        %v1643 = vld [vmem:[%s391 + $0x18] sm:$0xf]
        %v1644 = vld [vmem:[%s391 + $0x1c] sm:$0xf]
        %v1645 = vld [vmem:[%s391 + $0x24] sm:$0xf]
        %v1646 = vld [vmem:[%s391 + $0x28] sm:$0xf]
        %v1647 = vld [vmem:[%s391 + $0x30] sm:$0xf]
        %v1648 = vld [vmem:[%s391 + $0x34] sm:$0xf]
        %v1649 = vld [vmem:[%s391 + $0x3c] sm:$0xf]
        %v1650 = vld [vmem:[%s391 + $0x40] sm:$0xf]
        %v1651 = vld [vmem:[%s391 + $0x48] sm:$0xf]
        %v1652 = vld [vmem:[%s391 + $0x4c] sm:$0xf]
        %v1653 = vld [vmem:[%s391 + $0x54] sm:$0xf]
        %v1654 = vld [vmem:[%s391 + $0x58] sm:$0xf]
        %v1655 = vld [vmem:[%s391 + $0x60] sm:$0xf]
        %v1656 = vld [vmem:[%s391 + $0x64] sm:$0xf]
        %v1657 = vld [vmem:[%s391 + $0x6c] sm:$0xf]
        %v1658 = vld [vmem:[%s391 + $0x70] sm:$0xf]
        %v1659 = vld [vmem:[%s391 + $0x78] sm:$0xf]
        %v1660 = vld [vmem:[%s391 + $0x7c] sm:$0xf]
        %v1661 = vld [vmem:[%s391 + $0x84] sm:$0xf]
        %v1662 = vld [vmem:[%s391 + $0x88] sm:$0xf]
        %v1663 = vld [vmem:[%s391 + $0x90] sm:$0xf]
        %v1664 = vld [vmem:[%s391 + $0x94] sm:$0xf]
        %v1665 = vld [vmem:[%s391 + $0x9c] sm:$0xf]
        %v1666 = vld [vmem:[%s391 + $0xa0] sm:$0xf]
        %v1667 = vld [vmem:[%s391 + $0xa8] sm:$0xf]
        %v1668 = vld [vmem:[%s391 + $0xac] sm:$0xf]
        %v1669 = vld [vmem:[%s391 + $0xb4] sm:$0xf]
        %v1670 = vld [vmem:[%s391 + $0xb8] sm:$0xf]
        %v1671 = vld [vmem:[%s391 + $0x8] sm:$0x1]
        %v1672 = vld [vmem:[%s391 + $0x14] sm:$0x1]
        %v1673 = vld [vmem:[%s391 + $0x20] sm:$0x1]
        %v1674 = vld [vmem:[%s391 + $0x2c] sm:$0x1]
        %v1675 = vld [vmem:[%s391 + $0x38] sm:$0x1]
        %v1676 = vld [vmem:[%s391 + $0x44] sm:$0x1]
        %v1677 = vld [vmem:[%s391 + $0x50] sm:$0x1]
        %v1678 = vld [vmem:[%s391 + $0x5c] sm:$0x1]
        %v1679 = vld [vmem:[%s391 + $0x68] sm:$0x1]
        %v1680 = vld [vmem:[%s391 + $0x74] sm:$0x1]
        %v1681 = vld [vmem:[%s391 + $0x80] sm:$0x1]
        %v1682 = vld [vmem:[%s391 + $0x8c] sm:$0x1]
        %v1683 = vld [vmem:[%s391 + $0x98] sm:$0x1]
        %v1684 = vld [vmem:[%s391 + $0xa4] sm:$0x1]
        %v1685 = vld [vmem:[%s391 + $0xb0] sm:$0x1]
        %v1686 = vld [vmem:[%s391 + $0xbc] sm:$0x1]
        %v1687 = vld [vmem:[%s391] sm:$0xe]
        %v1688 = vld [vmem:[%s391 + $0xc] sm:$0xe]
        %v1689 = vld [vmem:[%s391 + $0x18] sm:$0xe]
        %v1690 = vld [vmem:[%s391 + $0x24] sm:$0xe]
        %v1691 = vld [vmem:[%s391 + $0x30] sm:$0xe]
        %v1692 = vld [vmem:[%s391 + $0x3c] sm:$0xe]
        %v1693 = vld [vmem:[%s391 + $0x48] sm:$0xe]
        %v1694 = vld [vmem:[%s391 + $0x54] sm:$0xe]
        %v1695 = vld [vmem:[%s391 + $0x60] sm:$0xe]
        %v1696 = vld [vmem:[%s391 + $0x6c] sm:$0xe]
        %v1697 = vld [vmem:[%s391 + $0x78] sm:$0xe]
        %v1698 = vld [vmem:[%s391 + $0x84] sm:$0xe]
        %v1699 = vld [vmem:[%s391 + $0x90] sm:$0xe]
        %v1700 = vld [vmem:[%s391 + $0x9c] sm:$0xe]
        %v1701 = vld [vmem:[%s391 + $0xa8] sm:$0xe]
        %v1702 = vld [vmem:[%s391 + $0xb4] sm:$0xe]
        %v1735 = vunpack.c.l.b16 %v1639
        %v1736 = vunpack.c.l.b16 %v1640
        %v1737 = vunpack.c.l.b16 %v1641
        %v1738 = vunpack.c.l.b16 %v1642
        %v1739 = vunpack.c.l.b16 %v1643
        %v1740 = vunpack.c.l.b16 %v1644
        %v1741 = vunpack.c.l.b16 %v1645
        %v1742 = vunpack.c.l.b16 %v1646
        %v1743 = vunpack.c.l.b16 %v1647
        %v1744 = vunpack.c.l.b16 %v1648
        %v1745 = vunpack.c.l.b16 %v1649
        %v1746 = vunpack.c.l.b16 %v1650
        %v1747 = vunpack.c.l.b16 %v1651
        %v1748 = vunpack.c.l.b16 %v1652
        %v1749 = vunpack.c.l.b16 %v1653
        %v1750 = vunpack.c.l.b16 %v1654
        %v1751 = vunpack.c.l.b16 %v1655
        %v1752 = vunpack.c.l.b16 %v1656
        %v1753 = vunpack.c.l.b16 %v1657
        %v1754 = vunpack.c.l.b16 %v1658
        %v1755 = vunpack.c.l.b16 %v1659
        %v1756 = vunpack.c.l.b16 %v1660
        %v1757 = vunpack.c.l.b16 %v1661
        %v1758 = vunpack.c.l.b16 %v1662
        %v1759 = vunpack.c.l.b16 %v1663
        %v1760 = vunpack.c.l.b16 %v1664
        %v1761 = vunpack.c.l.b16 %v1665
        %v1762 = vunpack.c.l.b16 %v1666
        %v1763 = vunpack.c.l.b16 %v1667
        %v1764 = vunpack.c.l.b16 %v1668
        %v1765 = vunpack.c.l.b16 %v1669
        %v1766 = vunpack.c.l.b16 %v1670
        %v1767 = vpack.c.b16 %v1736, %v1735
        %v1768 = vpack.c.b16 %v1738, %v1737
        %v1769 = vpack.c.b16 %v1740, %v1739
        %v1770 = vpack.c.b16 %v1742, %v1741
        %v1771 = vpack.c.b16 %v1744, %v1743
        %v1772 = vpack.c.b16 %v1746, %v1745
        %v1773 = vpack.c.b16 %v1748, %v1747
        %v1774 = vpack.c.b16 %v1750, %v1749
        %v1775 = vpack.c.b16 %v1752, %v1751
        %v1776 = vpack.c.b16 %v1754, %v1753
        %v1777 = vpack.c.b16 %v1756, %v1755
        %v1778 = vpack.c.b16 %v1758, %v1757
        %v1779 = vpack.c.b16 %v1760, %v1759
        %v1780 = vpack.c.b16 %v1762, %v1761
        %v1781 = vpack.c.b16 %v1764, %v1763
        %v1782 = vpack.c.b16 %v1766, %v1765
        %v1799 = vunpack.c.l.b16 %v1671
        %v1800 = vunpack.c.l.b16 %v1672
        %v1801 = vunpack.c.l.b16 %v1673
        %v1802 = vunpack.c.l.b16 %v1674
        %v1803 = vunpack.c.l.b16 %v1675
        %v1804 = vunpack.c.l.b16 %v1676
        %v1805 = vunpack.c.l.b16 %v1677
        %v1806 = vunpack.c.l.b16 %v1678
        %v1807 = vunpack.c.l.b16 %v1679
        %v1808 = vunpack.c.l.b16 %v1680
        %v1809 = vunpack.c.l.b16 %v1681
        %v1810 = vunpack.c.l.b16 %v1682
        %v1811 = vunpack.c.l.b16 %v1683
        %v1812 = vunpack.c.l.b16 %v1684
        %v1813 = vunpack.c.l.b16 %v1685
        %v1814 = vunpack.c.l.b16 %v1686
        %v1815 = vpack.c.b16 %v1799, %v1799
        %v1816 = vpack.c.b16 %v1800, %v1800
        %v1817 = vpack.c.b16 %v1801, %v1801
        %v1818 = vpack.c.b16 %v1802, %v1802
        %v1819 = vpack.c.b16 %v1803, %v1803
        %v1820 = vpack.c.b16 %v1804, %v1804
        %v1821 = vpack.c.b16 %v1805, %v1805
        %v1822 = vpack.c.b16 %v1806, %v1806
        %v1823 = vpack.c.b16 %v1807, %v1807
        %v1824 = vpack.c.b16 %v1808, %v1808
        %v1825 = vpack.c.b16 %v1809, %v1809
        %v1826 = vpack.c.b16 %v1810, %v1810
        %v1827 = vpack.c.b16 %v1811, %v1811
        %v1828 = vpack.c.b16 %v1812, %v1812
        %v1829 = vpack.c.b16 %v1813, %v1813
        %v1830 = vpack.c.b16 %v1814, %v1814
        %v1832 = vshrl.u32 %v1767, 16
        %v1834 = vshll.u32 %v1767, 16
        %v1836 = vrot.slane %v1834, 1
        %v1837 = vor.u32 %v1832, %v1836
        %v1839 = vshll.u32 %v1815, 16
        %v1841 = vrot.slane %v1839, 1
        %v1842 = vsel %vm1219, %v1837, %v1841
        %v1844 = vshrl.u32 %v1768, 16
        %v1846 = vshll.u32 %v1768, 16
        %v1848 = vrot.slane %v1846, 1
        %v1849 = vor.u32 %v1844, %v1848
        %v1851 = vshll.u32 %v1816, 16
        %v1853 = vrot.slane %v1851, 1
        %v1854 = vsel %vm1219, %v1849, %v1853
        %v1856 = vshrl.u32 %v1769, 16
        %v1858 = vshll.u32 %v1769, 16
        %v1860 = vrot.slane %v1858, 1
        %v1861 = vor.u32 %v1856, %v1860
        %v1863 = vshll.u32 %v1817, 16
        %v1865 = vrot.slane %v1863, 1
        %v1866 = vsel %vm1219, %v1861, %v1865
        %v1868 = vshrl.u32 %v1770, 16
        %v1870 = vshll.u32 %v1770, 16
        %v1872 = vrot.slane %v1870, 1
        %v1873 = vor.u32 %v1868, %v1872
        %v1875 = vshll.u32 %v1818, 16
        %v1877 = vrot.slane %v1875, 1
        %v1878 = vsel %vm1219, %v1873, %v1877
        %v1880 = vshrl.u32 %v1771, 16
        %v1882 = vshll.u32 %v1771, 16
        %v1884 = vrot.slane %v1882, 1
        %v1885 = vor.u32 %v1880, %v1884
        %v1887 = vshll.u32 %v1819, 16
        %v1889 = vrot.slane %v1887, 1
        %v1890 = vsel %vm1219, %v1885, %v1889
        %v1892 = vshrl.u32 %v1772, 16
        %v1894 = vshll.u32 %v1772, 16
        %v1896 = vrot.slane %v1894, 1
        %v1897 = vor.u32 %v1892, %v1896
        %v1899 = vshll.u32 %v1820, 16
        %v1901 = vrot.slane %v1899, 1
        %v1902 = vsel %vm1219, %v1897, %v1901
        %v1904 = vshrl.u32 %v1773, 16
        %v1906 = vshll.u32 %v1773, 16
        %v1908 = vrot.slane %v1906, 1
        %v1909 = vor.u32 %v1904, %v1908
        %v1911 = vshll.u32 %v1821, 16
        %v1913 = vrot.slane %v1911, 1
        %v1914 = vsel %vm1219, %v1909, %v1913
        %v1916 = vshrl.u32 %v1774, 16
        %v1918 = vshll.u32 %v1774, 16
        %v1920 = vrot.slane %v1918, 1
        %v1921 = vor.u32 %v1916, %v1920
        %v1923 = vshll.u32 %v1822, 16
        %v1925 = vrot.slane %v1923, 1
        %v1926 = vsel %vm1219, %v1921, %v1925
        %v1928 = vshrl.u32 %v1775, 16
        %v1930 = vshll.u32 %v1775, 16
        %v1932 = vrot.slane %v1930, 1
        %v1933 = vor.u32 %v1928, %v1932
        %v1935 = vshll.u32 %v1823, 16
        %v1937 = vrot.slane %v1935, 1
        %v1938 = vsel %vm1219, %v1933, %v1937
        %v1940 = vshrl.u32 %v1776, 16
        %v1942 = vshll.u32 %v1776, 16
        %v1944 = vrot.slane %v1942, 1
        %v1945 = vor.u32 %v1940, %v1944
        %v1947 = vshll.u32 %v1824, 16
        %v1949 = vrot.slane %v1947, 1
        %v1950 = vsel %vm1219, %v1945, %v1949
        %v1952 = vshrl.u32 %v1777, 16
        %v1954 = vshll.u32 %v1777, 16
        %v1956 = vrot.slane %v1954, 1
        %v1957 = vor.u32 %v1952, %v1956
        %v1959 = vshll.u32 %v1825, 16
        %v1961 = vrot.slane %v1959, 1
        %v1962 = vsel %vm1219, %v1957, %v1961
        %v1964 = vshrl.u32 %v1778, 16
        %v1966 = vshll.u32 %v1778, 16
        %v1968 = vrot.slane %v1966, 1
        %v1969 = vor.u32 %v1964, %v1968
        %v1971 = vshll.u32 %v1826, 16
        %v1973 = vrot.slane %v1971, 1
        %v1974 = vsel %vm1219, %v1969, %v1973
        %v1976 = vshrl.u32 %v1779, 16
        %v1978 = vshll.u32 %v1779, 16
        %v1980 = vrot.slane %v1978, 1
        %v1981 = vor.u32 %v1976, %v1980
        %v1983 = vshll.u32 %v1827, 16
        %v1985 = vrot.slane %v1983, 1
        %v1986 = vsel %vm1219, %v1981, %v1985
        %v1988 = vshrl.u32 %v1780, 16
        %v1990 = vshll.u32 %v1780, 16
        %v1992 = vrot.slane %v1990, 1
        %v1993 = vor.u32 %v1988, %v1992
        %v1995 = vshll.u32 %v1828, 16
        %v1997 = vrot.slane %v1995, 1
        %v1998 = vsel %vm1219, %v1993, %v1997
        %v2000 = vshrl.u32 %v1781, 16
        %v2002 = vshll.u32 %v1781, 16
        %v2004 = vrot.slane %v2002, 1
        %v2005 = vor.u32 %v2000, %v2004
        %v2007 = vshll.u32 %v1829, 16
        %v2009 = vrot.slane %v2007, 1
        %v2010 = vsel %vm1219, %v2005, %v2009
        %v2012 = vshrl.u32 %v1782, 16
        %v2014 = vshll.u32 %v1782, 16
        %v2016 = vrot.slane %v2014, 1
        %v2017 = vor.u32 %v2012, %v2016
        %v2019 = vshll.u32 %v1830, 16
        %v2021 = vrot.slane %v2019, 1
        %v2022 = vsel %vm1219, %v2017, %v2021
        %2023 = vrot.lane.b32.xlu0 %v1842, 3
        %v2024 = vpop.permute.xlu0 %2023
        %2025 = vrot.lane.b32.xlu0 %v1854, 3
        %v2026 = vpop.permute.xlu0 %2025
        %2027 = vrot.lane.b32.xlu0 %v1866, 3
        %v2028 = vpop.permute.xlu0 %2027
        %2029 = vrot.lane.b32.xlu0 %v1878, 3
        %v2030 = vpop.permute.xlu0 %2029
        %2031 = vrot.lane.b32.xlu0 %v1890, 3
        %v2032 = vpop.permute.xlu0 %2031
        %2033 = vrot.lane.b32.xlu0 %v1902, 3
        %v2034 = vpop.permute.xlu0 %2033
        %2035 = vrot.lane.b32.xlu0 %v1914, 3
        %v2036 = vpop.permute.xlu0 %2035
        %2037 = vrot.lane.b32.xlu0 %v1926, 3
        %v2038 = vpop.permute.xlu0 %2037
        %2039 = vrot.lane.b32.xlu0 %v1938, 3
        %v2040 = vpop.permute.xlu0 %2039
        %2041 = vrot.lane.b32.xlu0 %v1950, 3
        %v2042 = vpop.permute.xlu0 %2041
        %2043 = vrot.lane.b32.xlu0 %v1962, 3
        %v2044 = vpop.permute.xlu0 %2043
        %2045 = vrot.lane.b32.xlu0 %v1974, 3
        %v2046 = vpop.permute.xlu0 %2045
        %2047 = vrot.lane.b32.xlu0 %v1986, 3
        %v2048 = vpop.permute.xlu0 %2047
        %2049 = vrot.lane.b32.xlu0 %v1998, 3
        %v2050 = vpop.permute.xlu0 %2049
        %2051 = vrot.lane.b32.xlu0 %v2010, 3
        %v2052 = vpop.permute.xlu0 %2051
        %2053 = vrot.lane.b32.xlu0 %v2022, 3
        %v2054 = vpop.permute.xlu0 %2053
        %v2071 = vunpack.c.l.b16 %v1687
        %v2072 = vunpack.c.l.b16 %v1688
        %v2073 = vunpack.c.l.b16 %v1689
        %v2074 = vunpack.c.l.b16 %v1690
        %v2075 = vunpack.c.l.b16 %v1691
        %v2076 = vunpack.c.l.b16 %v1692
        %v2077 = vunpack.c.l.b16 %v1693
        %v2078 = vunpack.c.l.b16 %v1694
        %v2079 = vunpack.c.l.b16 %v1695
        %v2080 = vunpack.c.l.b16 %v1696
        %v2081 = vunpack.c.l.b16 %v1697
        %v2082 = vunpack.c.l.b16 %v1698
        %v2083 = vunpack.c.l.b16 %v1699
        %v2084 = vunpack.c.l.b16 %v1700
        %v2085 = vunpack.c.l.b16 %v1701
        %v2086 = vunpack.c.l.b16 %v1702
        %v2087 = vpack.c.b16 %v1736, %v2071
        %v2088 = vpack.c.b16 %v1738, %v2072
        %v2089 = vpack.c.b16 %v1740, %v2073
        %v2090 = vpack.c.b16 %v1742, %v2074
        %v2091 = vpack.c.b16 %v1744, %v2075
        %v2092 = vpack.c.b16 %v1746, %v2076
        %v2093 = vpack.c.b16 %v1748, %v2077
        %v2094 = vpack.c.b16 %v1750, %v2078
        %v2095 = vpack.c.b16 %v1752, %v2079
        %v2096 = vpack.c.b16 %v1754, %v2080
        %v2097 = vpack.c.b16 %v1756, %v2081
        %v2098 = vpack.c.b16 %v1758, %v2082
        %v2099 = vpack.c.b16 %v1760, %v2083
        %v2100 = vpack.c.b16 %v1762, %v2084
        %v2101 = vpack.c.b16 %v1764, %v2085
        %v2102 = vpack.c.b16 %v1766, %v2086
        %v2103 = vrot.slane %v2087, 1
        %v2104 = vrot.slane %v1815, 1
        %v2105 = vsel %vm1492, %v2103, %v2104
        %v2106 = vrot.slane %v2088, 1
        %v2107 = vrot.slane %v1816, 1
        %v2108 = vsel %vm1492, %v2106, %v2107
        %v2109 = vrot.slane %v2089, 1
        %v2110 = vrot.slane %v1817, 1
        %v2111 = vsel %vm1492, %v2109, %v2110
        %v2112 = vrot.slane %v2090, 1
        %v2113 = vrot.slane %v1818, 1
        %v2114 = vsel %vm1492, %v2112, %v2113
        %v2115 = vrot.slane %v2091, 1
        %v2116 = vrot.slane %v1819, 1
        %v2117 = vsel %vm1492, %v2115, %v2116
        %v2118 = vrot.slane %v2092, 1
        %v2119 = vrot.slane %v1820, 1
        %v2120 = vsel %vm1492, %v2118, %v2119
        %v2121 = vrot.slane %v2093, 1
        %v2122 = vrot.slane %v1821, 1
        %v2123 = vsel %vm1492, %v2121, %v2122
        %v2124 = vrot.slane %v2094, 1
        %v2125 = vrot.slane %v1822, 1
        %v2126 = vsel %vm1492, %v2124, %v2125
        %v2127 = vrot.slane %v2095, 1
        %v2128 = vrot.slane %v1823, 1
        %v2129 = vsel %vm1492, %v2127, %v2128
        %v2130 = vrot.slane %v2096, 1
        %v2131 = vrot.slane %v1824, 1
        %v2132 = vsel %vm1492, %v2130, %v2131
        %v2133 = vrot.slane %v2097, 1
        %v2134 = vrot.slane %v1825, 1
        %v2135 = vsel %vm1492, %v2133, %v2134
        %v2136 = vrot.slane %v2098, 1
        %v2137 = vrot.slane %v1826, 1
        %v2138 = vsel %vm1492, %v2136, %v2137
        %v2139 = vrot.slane %v2099, 1
        %v2140 = vrot.slane %v1827, 1
        %v2141 = vsel %vm1492, %v2139, %v2140
        %v2142 = vrot.slane %v2100, 1
        %v2143 = vrot.slane %v1828, 1
        %v2144 = vsel %vm1492, %v2142, %v2143
        %v2145 = vrot.slane %v2101, 1
        %v2146 = vrot.slane %v1829, 1
        %v2147 = vsel %vm1492, %v2145, %v2146
        %v2148 = vrot.slane %v2102, 1
        %v2149 = vrot.slane %v1830, 1
        %v2150 = vsel %vm1492, %v2148, %v2149
        %2151 = vrot.lane.b32.xlu0 %v2105, 6
        %v2152 = vpop.permute.xlu0 %2151
        %2153 = vrot.lane.b32.xlu0 %v2108, 6
        %v2154 = vpop.permute.xlu0 %2153
        %2155 = vrot.lane.b32.xlu0 %v2111, 6
        %v2156 = vpop.permute.xlu0 %2155
        %2157 = vrot.lane.b32.xlu0 %v2114, 6
        %v2158 = vpop.permute.xlu0 %2157
        %2159 = vrot.lane.b32.xlu0 %v2117, 6
        %v2160 = vpop.permute.xlu0 %2159
        %2161 = vrot.lane.b32.xlu0 %v2120, 6
        %v2162 = vpop.permute.xlu0 %2161
        %2163 = vrot.lane.b32.xlu0 %v2123, 6
        %v2164 = vpop.permute.xlu0 %2163
        %2165 = vrot.lane.b32.xlu0 %v2126, 6
        %v2166 = vpop.permute.xlu0 %2165
        %2167 = vrot.lane.b32.xlu0 %v2129, 6
        %v2168 = vpop.permute.xlu0 %2167
        %2169 = vrot.lane.b32.xlu0 %v2132, 6
        %v2170 = vpop.permute.xlu0 %2169
        %2171 = vrot.lane.b32.xlu0 %v2135, 6
        %v2172 = vpop.permute.xlu0 %2171
        %2173 = vrot.lane.b32.xlu0 %v2138, 6
        %v2174 = vpop.permute.xlu0 %2173
        %2175 = vrot.lane.b32.xlu0 %v2141, 6
        %v2176 = vpop.permute.xlu0 %2175
        %2177 = vrot.lane.b32.xlu0 %v2144, 6
        %v2178 = vpop.permute.xlu0 %2177
        %2179 = vrot.lane.b32.xlu0 %v2147, 6
        %v2180 = vpop.permute.xlu0 %2179
        %2181 = vrot.lane.b32.xlu0 %v2150, 6
        %v2182 = vpop.permute.xlu0 %2181
        %v2184 = vsel %vm1573, %v1767, %v2024
        %v2186 = vsel %vm1573, %v1768, %v2026
        %v2188 = vsel %vm1573, %v1769, %v2028
        %v2190 = vsel %vm1573, %v1770, %v2030
        %v2192 = vsel %vm1573, %v1771, %v2032
        %v2194 = vsel %vm1573, %v1772, %v2034
        %v2196 = vsel %vm1573, %v1773, %v2036
        %v2198 = vsel %vm1573, %v1774, %v2038
        %v2200 = vsel %vm1573, %v1775, %v2040
        %v2202 = vsel %vm1573, %v1776, %v2042
        %v2204 = vsel %vm1573, %v1777, %v2044
        %v2206 = vsel %vm1573, %v1778, %v2046
        %v2208 = vsel %vm1573, %v1779, %v2048
        %v2210 = vsel %vm1573, %v1780, %v2050
        %v2212 = vsel %vm1573, %v1781, %v2052
        %v2214 = vsel %vm1573, %v1782, %v2054
        %v2216 = vsel %vm1606, %v2184, %v2152
        %v2218 = vsel %vm1606, %v2186, %v2154
        %v2220 = vsel %vm1606, %v2188, %v2156
        %v2222 = vsel %vm1606, %v2190, %v2158
        %v2224 = vsel %vm1606, %v2192, %v2160
        %v2226 = vsel %vm1606, %v2194, %v2162
        %v2228 = vsel %vm1606, %v2196, %v2164
        %v2230 = vsel %vm1606, %v2198, %v2166
        %v2232 = vsel %vm1606, %v2200, %v2168
        %v2234 = vsel %vm1606, %v2202, %v2170
        %v2236 = vsel %vm1606, %v2204, %v2172
        %v2238 = vsel %vm1606, %v2206, %v2174
        %v2240 = vsel %vm1606, %v2208, %v2176
        %v2242 = vsel %vm1606, %v2210, %v2178
        %v2244 = vsel %vm1606, %v2212, %v2180
        %v2246 = vsel %vm1606, %v2214, %v2182
        %s2247 = scalar_lea.vmem [#allocation2], 24
        %v2248 = vld [vmem:[%s2247] sm:$0xf]
        %v2249 = vld [vmem:[%s2247 + $0x4] sm:$0xf]
        %v2250 = vld [vmem:[%s2247 + $0xc] sm:$0xf]
        %v2251 = vld [vmem:[%s2247 + $0x10] sm:$0xf]
        %v2252 = vld [vmem:[%s2247 + $0x18] sm:$0xf]
        %v2253 = vld [vmem:[%s2247 + $0x1c] sm:$0xf]
        %v2254 = vld [vmem:[%s2247 + $0x24] sm:$0xf]
        %v2255 = vld [vmem:[%s2247 + $0x28] sm:$0xf]
        %v2256 = vld [vmem:[%s2247 + $0x30] sm:$0xf]
        %v2257 = vld [vmem:[%s2247 + $0x34] sm:$0xf]
        %v2258 = vld [vmem:[%s2247 + $0x3c] sm:$0xf]
        %v2259 = vld [vmem:[%s2247 + $0x40] sm:$0xf]
        %v2260 = vld [vmem:[%s2247 + $0x48] sm:$0xf]
        %v2261 = vld [vmem:[%s2247 + $0x4c] sm:$0xf]
        %v2262 = vld [vmem:[%s2247 + $0x54] sm:$0xf]
        %v2263 = vld [vmem:[%s2247 + $0x58] sm:$0xf]
        %v2264 = vld [vmem:[%s2247 + $0x60] sm:$0xf]
        %v2265 = vld [vmem:[%s2247 + $0x64] sm:$0xf]
        %v2266 = vld [vmem:[%s2247 + $0x6c] sm:$0xf]
        %v2267 = vld [vmem:[%s2247 + $0x70] sm:$0xf]
        %v2268 = vld [vmem:[%s2247 + $0x78] sm:$0xf]
        %v2269 = vld [vmem:[%s2247 + $0x7c] sm:$0xf]
        %v2270 = vld [vmem:[%s2247 + $0x84] sm:$0xf]
        %v2271 = vld [vmem:[%s2247 + $0x88] sm:$0xf]
        %v2272 = vld [vmem:[%s2247 + $0x90] sm:$0xf]
        %v2273 = vld [vmem:[%s2247 + $0x94] sm:$0xf]
        %v2274 = vld [vmem:[%s2247 + $0x9c] sm:$0xf]
        %v2275 = vld [vmem:[%s2247 + $0xa0] sm:$0xf]
        %v2276 = vld [vmem:[%s2247 + $0xa8] sm:$0xf]
        %v2277 = vld [vmem:[%s2247 + $0xac] sm:$0xf]
        %v2278 = vld [vmem:[%s2247 + $0xb4] sm:$0xf]
        %v2279 = vld [vmem:[%s2247 + $0xb8] sm:$0xf]
        %v2280 = vld [vmem:[%s2247 + $0x8] sm:$0x1]
        %v2281 = vld [vmem:[%s2247 + $0x14] sm:$0x1]
        %v2282 = vld [vmem:[%s2247 + $0x20] sm:$0x1]
        %v2283 = vld [vmem:[%s2247 + $0x2c] sm:$0x1]
        %v2284 = vld [vmem:[%s2247 + $0x38] sm:$0x1]
        %v2285 = vld [vmem:[%s2247 + $0x44] sm:$0x1]
        %v2286 = vld [vmem:[%s2247 + $0x50] sm:$0x1]
        %v2287 = vld [vmem:[%s2247 + $0x5c] sm:$0x1]
        %v2288 = vld [vmem:[%s2247 + $0x68] sm:$0x1]
        %v2289 = vld [vmem:[%s2247 + $0x74] sm:$0x1]
        %v2290 = vld [vmem:[%s2247 + $0x80] sm:$0x1]
        %v2291 = vld [vmem:[%s2247 + $0x8c] sm:$0x1]
        %v2292 = vld [vmem:[%s2247 + $0x98] sm:$0x1]
        %v2293 = vld [vmem:[%s2247 + $0xa4] sm:$0x1]
        %v2294 = vld [vmem:[%s2247 + $0xb0] sm:$0x1]
        %v2295 = vld [vmem:[%s2247 + $0xbc] sm:$0x1]
        %v2296 = vld [vmem:[%s2247] sm:$0xe]
        %v2297 = vld [vmem:[%s2247 + $0xc] sm:$0xe]
        %v2298 = vld [vmem:[%s2247 + $0x18] sm:$0xe]
        %v2299 = vld [vmem:[%s2247 + $0x24] sm:$0xe]
        %v2300 = vld [vmem:[%s2247 + $0x30] sm:$0xe]
        %v2301 = vld [vmem:[%s2247 + $0x3c] sm:$0xe]
        %v2302 = vld [vmem:[%s2247 + $0x48] sm:$0xe]
        %v2303 = vld [vmem:[%s2247 + $0x54] sm:$0xe]
        %v2304 = vld [vmem:[%s2247 + $0x60] sm:$0xe]
        %v2305 = vld [vmem:[%s2247 + $0x6c] sm:$0xe]
        %v2306 = vld [vmem:[%s2247 + $0x78] sm:$0xe]
        %v2307 = vld [vmem:[%s2247 + $0x84] sm:$0xe]
        %v2308 = vld [vmem:[%s2247 + $0x90] sm:$0xe]
        %v2309 = vld [vmem:[%s2247 + $0x9c] sm:$0xe]
        %v2310 = vld [vmem:[%s2247 + $0xa8] sm:$0xe]
        %v2311 = vld [vmem:[%s2247 + $0xb4] sm:$0xe]
        %v2344 = vunpack.c.l.b16 %v2248
        %v2345 = vunpack.c.l.b16 %v2249
        %v2346 = vunpack.c.l.b16 %v2250
        %v2347 = vunpack.c.l.b16 %v2251
        %v2348 = vunpack.c.l.b16 %v2252
        %v2349 = vunpack.c.l.b16 %v2253
        %v2350 = vunpack.c.l.b16 %v2254
        %v2351 = vunpack.c.l.b16 %v2255
        %v2352 = vunpack.c.l.b16 %v2256
        %v2353 = vunpack.c.l.b16 %v2257
        %v2354 = vunpack.c.l.b16 %v2258
        %v2355 = vunpack.c.l.b16 %v2259
        %v2356 = vunpack.c.l.b16 %v2260
        %v2357 = vunpack.c.l.b16 %v2261
        %v2358 = vunpack.c.l.b16 %v2262
        %v2359 = vunpack.c.l.b16 %v2263
        %v2360 = vunpack.c.l.b16 %v2264
        %v2361 = vunpack.c.l.b16 %v2265
        %v2362 = vunpack.c.l.b16 %v2266
        %v2363 = vunpack.c.l.b16 %v2267
        %v2364 = vunpack.c.l.b16 %v2268
        %v2365 = vunpack.c.l.b16 %v2269
        %v2366 = vunpack.c.l.b16 %v2270
        %v2367 = vunpack.c.l.b16 %v2271
        %v2368 = vunpack.c.l.b16 %v2272
        %v2369 = vunpack.c.l.b16 %v2273
        %v2370 = vunpack.c.l.b16 %v2274
        %v2371 = vunpack.c.l.b16 %v2275
        %v2372 = vunpack.c.l.b16 %v2276
        %v2373 = vunpack.c.l.b16 %v2277
        %v2374 = vunpack.c.l.b16 %v2278
        %v2375 = vunpack.c.l.b16 %v2279
        %v2376 = vpack.c.b16 %v2345, %v2344
        %v2377 = vpack.c.b16 %v2347, %v2346
        %v2378 = vpack.c.b16 %v2349, %v2348
        %v2379 = vpack.c.b16 %v2351, %v2350
        %v2380 = vpack.c.b16 %v2353, %v2352
        %v2381 = vpack.c.b16 %v2355, %v2354
        %v2382 = vpack.c.b16 %v2357, %v2356
        %v2383 = vpack.c.b16 %v2359, %v2358
        %v2384 = vpack.c.b16 %v2361, %v2360
        %v2385 = vpack.c.b16 %v2363, %v2362
        %v2386 = vpack.c.b16 %v2365, %v2364
        %v2387 = vpack.c.b16 %v2367, %v2366
        %v2388 = vpack.c.b16 %v2369, %v2368
        %v2389 = vpack.c.b16 %v2371, %v2370
        %v2390 = vpack.c.b16 %v2373, %v2372
        %v2391 = vpack.c.b16 %v2375, %v2374
        %v2408 = vunpack.c.l.b16 %v2280
        %v2409 = vunpack.c.l.b16 %v2281
        %v2410 = vunpack.c.l.b16 %v2282
        %v2411 = vunpack.c.l.b16 %v2283
        %v2412 = vunpack.c.l.b16 %v2284
        %v2413 = vunpack.c.l.b16 %v2285
        %v2414 = vunpack.c.l.b16 %v2286
        %v2415 = vunpack.c.l.b16 %v2287
        %v2416 = vunpack.c.l.b16 %v2288
        %v2417 = vunpack.c.l.b16 %v2289
        %v2418 = vunpack.c.l.b16 %v2290
        %v2419 = vunpack.c.l.b16 %v2291
        %v2420 = vunpack.c.l.b16 %v2292
        %v2421 = vunpack.c.l.b16 %v2293
        %v2422 = vunpack.c.l.b16 %v2294
        %v2423 = vunpack.c.l.b16 %v2295
        %v2424 = vpack.c.b16 %v2408, %v2408
        %v2425 = vpack.c.b16 %v2409, %v2409
        %v2426 = vpack.c.b16 %v2410, %v2410
        %v2427 = vpack.c.b16 %v2411, %v2411
        %v2428 = vpack.c.b16 %v2412, %v2412
        %v2429 = vpack.c.b16 %v2413, %v2413
        %v2430 = vpack.c.b16 %v2414, %v2414
        %v2431 = vpack.c.b16 %v2415, %v2415
        %v2432 = vpack.c.b16 %v2416, %v2416
        %v2433 = vpack.c.b16 %v2417, %v2417
        %v2434 = vpack.c.b16 %v2418, %v2418
        %v2435 = vpack.c.b16 %v2419, %v2419
        %v2436 = vpack.c.b16 %v2420, %v2420
        %v2437 = vpack.c.b16 %v2421, %v2421
        %v2438 = vpack.c.b16 %v2422, %v2422
        %v2439 = vpack.c.b16 %v2423, %v2423
        %v2441 = vshrl.u32 %v2376, 16
        %v2443 = vshll.u32 %v2376, 16
        %v2445 = vrot.slane %v2443, 1
        %v2446 = vor.u32 %v2441, %v2445
        %v2448 = vshll.u32 %v2424, 16
        %v2450 = vrot.slane %v2448, 1
        %v2451 = vsel %vm1219, %v2446, %v2450
        %v2453 = vshrl.u32 %v2377, 16
        %v2455 = vshll.u32 %v2377, 16
        %v2457 = vrot.slane %v2455, 1
        %v2458 = vor.u32 %v2453, %v2457
        %v2460 = vshll.u32 %v2425, 16
        %v2462 = vrot.slane %v2460, 1
        %v2463 = vsel %vm1219, %v2458, %v2462
        %v2465 = vshrl.u32 %v2378, 16
        %v2467 = vshll.u32 %v2378, 16
        %v2469 = vrot.slane %v2467, 1
        %v2470 = vor.u32 %v2465, %v2469
        %v2472 = vshll.u32 %v2426, 16
        %v2474 = vrot.slane %v2472, 1
        %v2475 = vsel %vm1219, %v2470, %v2474
        %v2477 = vshrl.u32 %v2379, 16
        %v2479 = vshll.u32 %v2379, 16
        %v2481 = vrot.slane %v2479, 1
        %v2482 = vor.u32 %v2477, %v2481
        %v2484 = vshll.u32 %v2427, 16
        %v2486 = vrot.slane %v2484, 1
        %v2487 = vsel %vm1219, %v2482, %v2486
        %v2489 = vshrl.u32 %v2380, 16
        %v2491 = vshll.u32 %v2380, 16
        %v2493 = vrot.slane %v2491, 1
        %v2494 = vor.u32 %v2489, %v2493
        %v2496 = vshll.u32 %v2428, 16
        %v2498 = vrot.slane %v2496, 1
        %v2499 = vsel %vm1219, %v2494, %v2498
        %v2501 = vshrl.u32 %v2381, 16
        %v2503 = vshll.u32 %v2381, 16
        %v2505 = vrot.slane %v2503, 1
        %v2506 = vor.u32 %v2501, %v2505
        %v2508 = vshll.u32 %v2429, 16
        %v2510 = vrot.slane %v2508, 1
        %v2511 = vsel %vm1219, %v2506, %v2510
        %v2513 = vshrl.u32 %v2382, 16
        %v2515 = vshll.u32 %v2382, 16
        %v2517 = vrot.slane %v2515, 1
        %v2518 = vor.u32 %v2513, %v2517
        %v2520 = vshll.u32 %v2430, 16
        %v2522 = vrot.slane %v2520, 1
        %v2523 = vsel %vm1219, %v2518, %v2522
        %v2525 = vshrl.u32 %v2383, 16
        %v2527 = vshll.u32 %v2383, 16
        %v2529 = vrot.slane %v2527, 1
        %v2530 = vor.u32 %v2525, %v2529
        %v2532 = vshll.u32 %v2431, 16
        %v2534 = vrot.slane %v2532, 1
        %v2535 = vsel %vm1219, %v2530, %v2534
        %v2537 = vshrl.u32 %v2384, 16
        %v2539 = vshll.u32 %v2384, 16
        %v2541 = vrot.slane %v2539, 1
        %v2542 = vor.u32 %v2537, %v2541
        %v2544 = vshll.u32 %v2432, 16
        %v2546 = vrot.slane %v2544, 1
        %v2547 = vsel %vm1219, %v2542, %v2546
        %v2549 = vshrl.u32 %v2385, 16
        %v2551 = vshll.u32 %v2385, 16
        %v2553 = vrot.slane %v2551, 1
        %v2554 = vor.u32 %v2549, %v2553
        %v2556 = vshll.u32 %v2433, 16
        %v2558 = vrot.slane %v2556, 1
        %v2559 = vsel %vm1219, %v2554, %v2558
        %v2561 = vshrl.u32 %v2386, 16
        %v2563 = vshll.u32 %v2386, 16
        %v2565 = vrot.slane %v2563, 1
        %v2566 = vor.u32 %v2561, %v2565
        %v2568 = vshll.u32 %v2434, 16
        %v2570 = vrot.slane %v2568, 1
        %v2571 = vsel %vm1219, %v2566, %v2570
        %v2573 = vshrl.u32 %v2387, 16
        %v2575 = vshll.u32 %v2387, 16
        %v2577 = vrot.slane %v2575, 1
        %v2578 = vor.u32 %v2573, %v2577
        %v2580 = vshll.u32 %v2435, 16
        %v2582 = vrot.slane %v2580, 1
        %v2583 = vsel %vm1219, %v2578, %v2582
        %v2585 = vshrl.u32 %v2388, 16
        %v2587 = vshll.u32 %v2388, 16
        %v2589 = vrot.slane %v2587, 1
        %v2590 = vor.u32 %v2585, %v2589
        %v2592 = vshll.u32 %v2436, 16
        %v2594 = vrot.slane %v2592, 1
        %v2595 = vsel %vm1219, %v2590, %v2594
        %v2597 = vshrl.u32 %v2389, 16
        %v2599 = vshll.u32 %v2389, 16
        %v2601 = vrot.slane %v2599, 1
        %v2602 = vor.u32 %v2597, %v2601
        %v2604 = vshll.u32 %v2437, 16
        %v2606 = vrot.slane %v2604, 1
        %v2607 = vsel %vm1219, %v2602, %v2606
        %v2609 = vshrl.u32 %v2390, 16
        %v2611 = vshll.u32 %v2390, 16
        %v2613 = vrot.slane %v2611, 1
        %v2614 = vor.u32 %v2609, %v2613
        %v2616 = vshll.u32 %v2438, 16
        %v2618 = vrot.slane %v2616, 1
        %v2619 = vsel %vm1219, %v2614, %v2618
        %v2621 = vshrl.u32 %v2391, 16
        %v2623 = vshll.u32 %v2391, 16
        %v2625 = vrot.slane %v2623, 1
        %v2626 = vor.u32 %v2621, %v2625
        %v2628 = vshll.u32 %v2439, 16
        %v2630 = vrot.slane %v2628, 1
        %v2631 = vsel %vm1219, %v2626, %v2630
        %2632 = vrot.lane.b32.xlu0 %v2451, 3
        %v2633 = vpop.permute.xlu0 %2632
        %2634 = vrot.lane.b32.xlu0 %v2463, 3
        %v2635 = vpop.permute.xlu0 %2634
        %2636 = vrot.lane.b32.xlu0 %v2475, 3
        %v2637 = vpop.permute.xlu0 %2636
        %2638 = vrot.lane.b32.xlu0 %v2487, 3
        %v2639 = vpop.permute.xlu0 %2638
        %2640 = vrot.lane.b32.xlu0 %v2499, 3
        %v2641 = vpop.permute.xlu0 %2640
        %2642 = vrot.lane.b32.xlu0 %v2511, 3
        %v2643 = vpop.permute.xlu0 %2642
        %2644 = vrot.lane.b32.xlu0 %v2523, 3
        %v2645 = vpop.permute.xlu0 %2644
        %2646 = vrot.lane.b32.xlu0 %v2535, 3
        %v2647 = vpop.permute.xlu0 %2646
        %2648 = vrot.lane.b32.xlu0 %v2547, 3
        %v2649 = vpop.permute.xlu0 %2648
        %2650 = vrot.lane.b32.xlu0 %v2559, 3
        %v2651 = vpop.permute.xlu0 %2650
        %2652 = vrot.lane.b32.xlu0 %v2571, 3
        %v2653 = vpop.permute.xlu0 %2652
        %2654 = vrot.lane.b32.xlu0 %v2583, 3
        %v2655 = vpop.permute.xlu0 %2654
        %2656 = vrot.lane.b32.xlu0 %v2595, 3
        %v2657 = vpop.permute.xlu0 %2656
        %2658 = vrot.lane.b32.xlu0 %v2607, 3
        %v2659 = vpop.permute.xlu0 %2658
        %2660 = vrot.lane.b32.xlu0 %v2619, 3
        %v2661 = vpop.permute.xlu0 %2660
        %2662 = vrot.lane.b32.xlu0 %v2631, 3
        %v2663 = vpop.permute.xlu0 %2662
        %v2680 = vunpack.c.l.b16 %v2296
        %v2681 = vunpack.c.l.b16 %v2297
        %v2682 = vunpack.c.l.b16 %v2298
        %v2683 = vunpack.c.l.b16 %v2299
        %v2684 = vunpack.c.l.b16 %v2300
        %v2685 = vunpack.c.l.b16 %v2301
        %v2686 = vunpack.c.l.b16 %v2302
        %v2687 = vunpack.c.l.b16 %v2303
        %v2688 = vunpack.c.l.b16 %v2304
        %v2689 = vunpack.c.l.b16 %v2305
        %v2690 = vunpack.c.l.b16 %v2306
        %v2691 = vunpack.c.l.b16 %v2307
        %v2692 = vunpack.c.l.b16 %v2308
        %v2693 = vunpack.c.l.b16 %v2309
        %v2694 = vunpack.c.l.b16 %v2310
        %v2695 = vunpack.c.l.b16 %v2311
        %v2696 = vpack.c.b16 %v2345, %v2680
        %v2697 = vpack.c.b16 %v2347, %v2681
        %v2698 = vpack.c.b16 %v2349, %v2682
        %v2699 = vpack.c.b16 %v2351, %v2683
        %v2700 = vpack.c.b16 %v2353, %v2684
        %v2701 = vpack.c.b16 %v2355, %v2685
        %v2702 = vpack.c.b16 %v2357, %v2686
        %v2703 = vpack.c.b16 %v2359, %v2687
        %v2704 = vpack.c.b16 %v2361, %v2688
        %v2705 = vpack.c.b16 %v2363, %v2689
        %v2706 = vpack.c.b16 %v2365, %v2690
        %v2707 = vpack.c.b16 %v2367, %v2691
        %v2708 = vpack.c.b16 %v2369, %v2692
        %v2709 = vpack.c.b16 %v2371, %v2693
        %v2710 = vpack.c.b16 %v2373, %v2694
        %v2711 = vpack.c.b16 %v2375, %v2695
        %v2712 = vrot.slane %v2696, 1
        %v2713 = vrot.slane %v2424, 1
        %v2714 = vsel %vm1492, %v2712, %v2713
        %v2715 = vrot.slane %v2697, 1
        %v2716 = vrot.slane %v2425, 1
        %v2717 = vsel %vm1492, %v2715, %v2716
        %v2718 = vrot.slane %v2698, 1
        %v2719 = vrot.slane %v2426, 1
        %v2720 = vsel %vm1492, %v2718, %v2719
        %v2721 = vrot.slane %v2699, 1
        %v2722 = vrot.slane %v2427, 1
        %v2723 = vsel %vm1492, %v2721, %v2722
        %v2724 = vrot.slane %v2700, 1
        %v2725 = vrot.slane %v2428, 1
        %v2726 = vsel %vm1492, %v2724, %v2725
        %v2727 = vrot.slane %v2701, 1
        %v2728 = vrot.slane %v2429, 1
        %v2729 = vsel %vm1492, %v2727, %v2728
        %v2730 = vrot.slane %v2702, 1
        %v2731 = vrot.slane %v2430, 1
        %v2732 = vsel %vm1492, %v2730, %v2731
        %v2733 = vrot.slane %v2703, 1
        %v2734 = vrot.slane %v2431, 1
        %v2735 = vsel %vm1492, %v2733, %v2734
        %v2736 = vrot.slane %v2704, 1
        %v2737 = vrot.slane %v2432, 1
        %v2738 = vsel %vm1492, %v2736, %v2737
        %v2739 = vrot.slane %v2705, 1
        %v2740 = vrot.slane %v2433, 1
        %v2741 = vsel %vm1492, %v2739, %v2740
        %v2742 = vrot.slane %v2706, 1
        %v2743 = vrot.slane %v2434, 1
        %v2744 = vsel %vm1492, %v2742, %v2743
        %v2745 = vrot.slane %v2707, 1
        %v2746 = vrot.slane %v2435, 1
        %v2747 = vsel %vm1492, %v2745, %v2746
        %v2748 = vrot.slane %v2708, 1
        %v2749 = vrot.slane %v2436, 1
        %v2750 = vsel %vm1492, %v2748, %v2749
        %v2751 = vrot.slane %v2709, 1
        %v2752 = vrot.slane %v2437, 1
        %v2753 = vsel %vm1492, %v2751, %v2752
        %v2754 = vrot.slane %v2710, 1
        %v2755 = vrot.slane %v2438, 1
        %v2756 = vsel %vm1492, %v2754, %v2755
        %v2757 = vrot.slane %v2711, 1
        %v2758 = vrot.slane %v2439, 1
        %v2759 = vsel %vm1492, %v2757, %v2758
        %2760 = vrot.lane.b32.xlu0 %v2714, 6
        %v2761 = vpop.permute.xlu0 %2760
        %2762 = vrot.lane.b32.xlu0 %v2717, 6
        %v2763 = vpop.permute.xlu0 %2762
        %2764 = vrot.lane.b32.xlu0 %v2720, 6
        %v2765 = vpop.permute.xlu0 %2764
        %2766 = vrot.lane.b32.xlu0 %v2723, 6
        %v2767 = vpop.permute.xlu0 %2766
        %2768 = vrot.lane.b32.xlu0 %v2726, 6
        %v2769 = vpop.permute.xlu0 %2768
        %2770 = vrot.lane.b32.xlu0 %v2729, 6
        %v2771 = vpop.permute.xlu0 %2770
        %2772 = vrot.lane.b32.xlu0 %v2732, 6
        %v2773 = vpop.permute.xlu0 %2772
        %2774 = vrot.lane.b32.xlu0 %v2735, 6
        %v2775 = vpop.permute.xlu0 %2774
        %2776 = vrot.lane.b32.xlu0 %v2738, 6
        %v2777 = vpop.permute.xlu0 %2776
        %2778 = vrot.lane.b32.xlu0 %v2741, 6
        %v2779 = vpop.permute.xlu0 %2778
        %2780 = vrot.lane.b32.xlu0 %v2744, 6
        %v2781 = vpop.permute.xlu0 %2780
        %2782 = vrot.lane.b32.xlu0 %v2747, 6
        %v2783 = vpop.permute.xlu0 %2782
        %2784 = vrot.lane.b32.xlu0 %v2750, 6
        %v2785 = vpop.permute.xlu0 %2784
        %2786 = vrot.lane.b32.xlu0 %v2753, 6
        %v2787 = vpop.permute.xlu0 %2786
        %2788 = vrot.lane.b32.xlu0 %v2756, 6
        %v2789 = vpop.permute.xlu0 %2788
        %2790 = vrot.lane.b32.xlu0 %v2759, 6
        %v2791 = vpop.permute.xlu0 %2790
        %v2793 = vsel %vm1573, %v2376, %v2633
        %v2795 = vsel %vm1573, %v2377, %v2635
        %v2797 = vsel %vm1573, %v2378, %v2637
        %v2799 = vsel %vm1573, %v2379, %v2639
        %v2801 = vsel %vm1573, %v2380, %v2641
        %v2803 = vsel %vm1573, %v2381, %v2643
        %v2805 = vsel %vm1573, %v2382, %v2645
        %v2807 = vsel %vm1573, %v2383, %v2647
        %v2809 = vsel %vm1573, %v2384, %v2649
        %v2811 = vsel %vm1573, %v2385, %v2651
        %v2813 = vsel %vm1573, %v2386, %v2653
        %v2815 = vsel %vm1573, %v2387, %v2655
        %v2817 = vsel %vm1573, %v2388, %v2657
        %v2819 = vsel %vm1573, %v2389, %v2659
        %v2821 = vsel %vm1573, %v2390, %v2661
        %v2823 = vsel %vm1573, %v2391, %v2663
        %v2825 = vsel %vm1606, %v2793, %v2761
        %v2827 = vsel %vm1606, %v2795, %v2763
        %v2829 = vsel %vm1606, %v2797, %v2765
        %v2831 = vsel %vm1606, %v2799, %v2767
        %v2833 = vsel %vm1606, %v2801, %v2769
        %v2835 = vsel %vm1606, %v2803, %v2771
        %v2837 = vsel %vm1606, %v2805, %v2773
        %v2839 = vsel %vm1606, %v2807, %v2775
        %v2841 = vsel %vm1606, %v2809, %v2777
        %v2843 = vsel %vm1606, %v2811, %v2779
        %v2845 = vsel %vm1606, %v2813, %v2781
        %v2847 = vsel %vm1606, %v2815, %v2783
        %v2849 = vsel %vm1606, %v2817, %v2785
        %v2851 = vsel %vm1606, %v2819, %v2787
        %v2853 = vsel %vm1606, %v2821, %v2789
        %v2855 = vsel %vm1606, %v2823, %v2791
        %2872 = vrot.lane.b32.xlu0 %v2216, 9
        %v2873 = vpop.permute.xlu0 %2872
        %2874 = vrot.lane.b32.xlu0 %v2218, 9
        %v2875 = vpop.permute.xlu0 %2874
        %2876 = vrot.lane.b32.xlu0 %v2220, 9
        %v2877 = vpop.permute.xlu0 %2876
        %2878 = vrot.lane.b32.xlu0 %v2222, 9
        %v2879 = vpop.permute.xlu0 %2878
        %2880 = vrot.lane.b32.xlu0 %v2224, 9
        %v2881 = vpop.permute.xlu0 %2880
        %2882 = vrot.lane.b32.xlu0 %v2226, 9
        %v2883 = vpop.permute.xlu0 %2882
        %2884 = vrot.lane.b32.xlu0 %v2228, 9
        %v2885 = vpop.permute.xlu0 %2884
        %2886 = vrot.lane.b32.xlu0 %v2230, 9
        %v2887 = vpop.permute.xlu0 %2886
        %2888 = vrot.lane.b32.xlu0 %v2232, 9
        %v2889 = vpop.permute.xlu0 %2888
        %2890 = vrot.lane.b32.xlu0 %v2234, 9
        %v2891 = vpop.permute.xlu0 %2890
        %2892 = vrot.lane.b32.xlu0 %v2236, 9
        %v2893 = vpop.permute.xlu0 %2892
        %2894 = vrot.lane.b32.xlu0 %v2238, 9
        %v2895 = vpop.permute.xlu0 %2894
        %2896 = vrot.lane.b32.xlu0 %v2240, 9
        %v2897 = vpop.permute.xlu0 %2896
        %2898 = vrot.lane.b32.xlu0 %v2242, 9
        %v2899 = vpop.permute.xlu0 %2898
        %2900 = vrot.lane.b32.xlu0 %v2244, 9
        %v2901 = vpop.permute.xlu0 %2900
        %2902 = vrot.lane.b32.xlu0 %v2246, 9
        %v2903 = vpop.permute.xlu0 %2902
        %2920 = vrot.lane.b32.xlu0 %v2825, 18
        %v2921 = vpop.permute.xlu0 %2920
        %2922 = vrot.lane.b32.xlu0 %v2827, 18
        %v2923 = vpop.permute.xlu0 %2922
        %2924 = vrot.lane.b32.xlu0 %v2829, 18
        %v2925 = vpop.permute.xlu0 %2924
        %2926 = vrot.lane.b32.xlu0 %v2831, 18
        %v2927 = vpop.permute.xlu0 %2926
        %2928 = vrot.lane.b32.xlu0 %v2833, 18
        %v2929 = vpop.permute.xlu0 %2928
        %2930 = vrot.lane.b32.xlu0 %v2835, 18
        %v2931 = vpop.permute.xlu0 %2930
        %2932 = vrot.lane.b32.xlu0 %v2837, 18
        %v2933 = vpop.permute.xlu0 %2932
        %2934 = vrot.lane.b32.xlu0 %v2839, 18
        %v2935 = vpop.permute.xlu0 %2934
        %2936 = vrot.lane.b32.xlu0 %v2841, 18
        %v2937 = vpop.permute.xlu0 %2936
        %2938 = vrot.lane.b32.xlu0 %v2843, 18
        %v2939 = vpop.permute.xlu0 %2938
        %2940 = vrot.lane.b32.xlu0 %v2845, 18
        %v2941 = vpop.permute.xlu0 %2940
        %2942 = vrot.lane.b32.xlu0 %v2847, 18
        %v2943 = vpop.permute.xlu0 %2942
        %2944 = vrot.lane.b32.xlu0 %v2849, 18
        %v2945 = vpop.permute.xlu0 %2944
        %2946 = vrot.lane.b32.xlu0 %v2851, 18
        %v2947 = vpop.permute.xlu0 %2946
        %2948 = vrot.lane.b32.xlu0 %v2853, 18
        %v2949 = vpop.permute.xlu0 %2948
        %2950 = vrot.lane.b32.xlu0 %v2855, 18
        %v2951 = vpop.permute.xlu0 %2950
        %vm2952 = vcmask 72704
        %v2954 = vsel %vm2952, %v1608, %v2873
        %v2956 = vsel %vm2952, %v1610, %v2875
        %v2958 = vsel %vm2952, %v1612, %v2877
        %v2960 = vsel %vm2952, %v1614, %v2879
        %v2962 = vsel %vm2952, %v1616, %v2881
        %v2964 = vsel %vm2952, %v1618, %v2883
        %v2966 = vsel %vm2952, %v1620, %v2885
        %v2968 = vsel %vm2952, %v1622, %v2887
        %v2970 = vsel %vm2952, %v1624, %v2889
        %v2972 = vsel %vm2952, %v1626, %v2891
        %v2974 = vsel %vm2952, %v1628, %v2893
        %v2976 = vsel %vm2952, %v1630, %v2895
        %v2978 = vsel %vm2952, %v1632, %v2897
        %v2980 = vsel %vm2952, %v1634, %v2899
        %v2982 = vsel %vm2952, %v1636, %v2901
        %v2984 = vsel %vm2952, %v1638, %v2903
        %vm2985 = vcmask 146432
        %v2987 = vsel %vm2985, %v2954, %v2921
        %v2989 = vsel %vm2985, %v2956, %v2923
        %v2991 = vsel %vm2985, %v2958, %v2925
        %v2993 = vsel %vm2985, %v2960, %v2927
        %v2995 = vsel %vm2985, %v2962, %v2929
        %v2997 = vsel %vm2985, %v2964, %v2931
        %v2999 = vsel %vm2985, %v2966, %v2933
        %v3001 = vsel %vm2985, %v2968, %v2935
        %v3003 = vsel %vm2985, %v2970, %v2937
        %v3005 = vsel %vm2985, %v2972, %v2939
        %v3007 = vsel %vm2985, %v2974, %v2941
        %v3009 = vsel %vm2985, %v2976, %v2943
        %v3011 = vsel %vm2985, %v2978, %v2945
        %v3013 = vsel %vm2985, %v2980, %v2947
        %v3015 = vsel %vm2985, %v2982, %v2949
        %v3017 = vsel %vm2985, %v2984, %v2951
        %v3018 = vld [vmem:[%s3] sm:$0xf]
        %v3019 = vld [vmem:[%s3 + $0x4] sm:$0x1]
        %v3020 = vld [vmem:[%s3 + $0x8] sm:$0xf]
        %v3021 = vld [vmem:[%s3 + $0xc] sm:$0x1]
        %v3022 = vld [vmem:[%s3 + $0x10] sm:$0xf]
        %v3023 = vld [vmem:[%s3 + $0x14] sm:$0x1]
        %v3031 = vunpack.c.l.s4 1966171168
        %v3032 = vunpack.c.0.s8 %v3031
        %v3033 = vlaneseq
        %v3034 = vshrl.u32 %v3033, 7
        %v3035 = vsub.s32 %v3032, %v3034
        %v3036 = vrot.slane %v3018, %v3035
        %v3037 = vcombine.high %v3036, %v3036
        %v3039 = vunpack.c.l.s4 1966171168
        %v3040 = vunpack.c.0.s8 %v3039
        %v3041 = vlaneseq
        %v3042 = vshrl.u32 %v3041, 7
        %v3043 = vsub.s32 %v3040, %v3042
        %v3044 = vrot.slane %v3036, %v3043
        %v3046 = vunpack.c.l.s4 1966171168
        %v3047 = vunpack.c.0.s8 %v3046
        %v3048 = vlaneseq
        %v3049 = vshrl.u32 %v3048, 7
        %v3050 = vsub.s32 %v3047, %v3049
        %v3051 = vrot.slane %v3037, %v3050
        %v3052 = vcombine.high %v3044, %v3044
        %v3053 = vcombine.high %v3051, %v3051
        %v3055 = vunpack.c.l.s4 1966171168
        %v3056 = vunpack.c.0.s8 %v3055
        %v3057 = vlaneseq
        %v3058 = vshrl.u32 %v3057, 7
        %v3059 = vsub.s32 %v3056, %v3058
        %v3060 = vrot.slane %v3019, %v3059
        %v3062 = vunpack.c.l.s4 1966171168
        %v3063 = vunpack.c.0.s8 %v3062
        %v3064 = vlaneseq
        %v3065 = vshrl.u32 %v3064, 7
        %v3066 = vsub.s32 %v3063, %v3065
        %v3067 = vrot.slane %v3060, %v3066
        %v3069 = vunpack.c.l.s4 1966171168
        %v3070 = vunpack.c.0.s8 %v3069
        %v3071 = vlaneseq
        %v3072 = vshrl.u32 %v3071, 7
        %v3073 = vsub.s32 %v3070, %v3072
        %v3074 = vrot.slane %v3020, %v3073
        %v3075 = vcombine.high %v3074, %v3074
        %v3077 = vunpack.c.l.s4 1966171168
        %v3078 = vunpack.c.0.s8 %v3077
        %v3079 = vlaneseq
        %v3080 = vshrl.u32 %v3079, 7
        %v3081 = vsub.s32 %v3078, %v3080
        %v3082 = vrot.slane %v3074, %v3081
        %v3084 = vunpack.c.l.s4 1966171168
        %v3085 = vunpack.c.0.s8 %v3084
        %v3086 = vlaneseq
        %v3087 = vshrl.u32 %v3086, 7
        %v3088 = vsub.s32 %v3085, %v3087
        %v3089 = vrot.slane %v3075, %v3088
        %v3090 = vcombine.high %v3082, %v3082
        %v3091 = vcombine.high %v3089, %v3089
        %v3093 = vunpack.c.l.s4 1966171168
        %v3094 = vunpack.c.0.s8 %v3093
        %v3095 = vlaneseq
        %v3096 = vshrl.u32 %v3095, 7
        %v3097 = vsub.s32 %v3094, %v3096
        %v3098 = vrot.slane %v3021, %v3097
        %v3100 = vunpack.c.l.s4 1966171168
        %v3101 = vunpack.c.0.s8 %v3100
        %v3102 = vlaneseq
        %v3103 = vshrl.u32 %v3102, 7
        %v3104 = vsub.s32 %v3101, %v3103
        %v3105 = vrot.slane %v3098, %v3104
        %v3107 = vunpack.c.l.s4 1966171168
        %v3108 = vunpack.c.0.s8 %v3107
        %v3109 = vlaneseq
        %v3110 = vshrl.u32 %v3109, 7
        %v3111 = vsub.s32 %v3108, %v3110
        %v3112 = vrot.slane %v3022, %v3111
        %v3113 = vcombine.high %v3112, %v3112
        %v3115 = vunpack.c.l.s4 1966171168
        %v3116 = vunpack.c.0.s8 %v3115
        %v3117 = vlaneseq
        %v3118 = vshrl.u32 %v3117, 7
        %v3119 = vsub.s32 %v3116, %v3118
        %v3120 = vrot.slane %v3112, %v3119
        %v3122 = vunpack.c.l.s4 1966171168
        %v3123 = vunpack.c.0.s8 %v3122
        %v3124 = vlaneseq
        %v3125 = vshrl.u32 %v3124, 7
        %v3126 = vsub.s32 %v3123, %v3125
        %v3127 = vrot.slane %v3113, %v3126
        %v3128 = vcombine.high %v3120, %v3120
        %v3129 = vcombine.high %v3127, %v3127
        %v3131 = vunpack.c.l.s4 1966171168
        %v3132 = vunpack.c.0.s8 %v3131
        %v3133 = vlaneseq
        %v3134 = vshrl.u32 %v3133, 7
        %v3135 = vsub.s32 %v3132, %v3134
        %v3136 = vrot.slane %v3023, %v3135
        %v3138 = vunpack.c.l.s4 1966171168
        %v3139 = vunpack.c.0.s8 %v3138
        %v3140 = vlaneseq
        %v3141 = vshrl.u32 %v3140, 7
        %v3142 = vsub.s32 %v3139, %v3141
        %v3143 = vrot.slane %v3136, %v3142
        %v3144 = vunpack.i.l.s16 %v3044
        %v3145 = vunpack.i.h.s16 %v3044
        %v3146 = vunpack.i.l.s16 %v3051
        %v3147 = vunpack.i.h.s16 %v3051
        %v3148 = vunpack.i.l.s16 %v3052
        %v3149 = vunpack.i.h.s16 %v3052
        %v3150 = vunpack.i.l.s16 %v3053
        %v3151 = vunpack.i.h.s16 %v3053
        %v3152 = vunpack.i.l.s16 %v3067
        %v3153 = vunpack.i.l.s16 %v3082
        %v3154 = vunpack.i.h.s16 %v3082
        %v3155 = vunpack.i.l.s16 %v3089
        %v3156 = vunpack.i.h.s16 %v3089
        %v3157 = vunpack.i.l.s16 %v3090
        %v3158 = vunpack.i.h.s16 %v3090
        %v3159 = vunpack.i.l.s16 %v3091
        %v3160 = vunpack.i.h.s16 %v3091
        %v3161 = vunpack.i.l.s16 %v3105
        %v3162 = vunpack.i.l.s16 %v3120
        %v3163 = vunpack.i.h.s16 %v3120
        %v3164 = vunpack.i.l.s16 %v3127
        %v3165 = vunpack.i.h.s16 %v3127
        %v3166 = vunpack.i.l.s16 %v3128
        %v3167 = vunpack.i.h.s16 %v3128
        %v3168 = vunpack.i.l.s16 %v3129
        %v3169 = vunpack.i.h.s16 %v3129
        %v3170 = vunpack.i.l.s16 %v3143
        %v3171 = vld [vmem:[%s4] sm:$0x1]
        %v3173 = vlaneseq
        %v3174 = vshrl.u32 %v3173, 7
        %v3175 = vsub.s32 0, %v3174
        %v3176 = vrot.slane %v3171, %v3175
        %v3178 = vpack.i.b16 %v3145, %v3144
        %v3179 = vpack.i.b16 %v3147, %v3146
        %v3180 = vpack.i.b16 %v3149, %v3148
        %v3181 = vpack.i.b16 %v3151, %v3150
        %v3182 = vpack.i.b16 %v3153, %v3152
        %v3183 = vpack.i.b16 %v3155, %v3154
        %v3184 = vpack.i.b16 %v3157, %v3156
        %v3185 = vpack.i.b16 %v3159, %v3158
        %v3186 = vpack.i.b16 %v3161, %v3160
        %v3187 = vpack.i.b16 %v3163, %v3162
        %v3188 = vpack.i.b16 %v3165, %v3164
        %v3189 = vpack.i.b16 %v3167, %v3166
        %v3190 = vpack.i.b16 %v3169, %v3168
        %v3192 = vcombine.low %v3178, %v3179
        %v3193 = vcombine.low %v3180, %v3181
        %v3194 = vcombine.low %v3182, %v3183
        %v3195 = vcombine.low %v3184, %v3185
        %v3197 = vunpack.c.l.s4 1966171168
        %v3198 = vunpack.c.0.s8 %v3197
        %v3199 = vlaneseq
        %v3200 = vshrl.u32 %v3199, 7
        %v3201 = vsub.s32 %v3198, %v3200
        %v3202 = vrot.slane %v3192, %v3201
        %v3204 = vunpack.c.l.s4 1966171168
        %v3205 = vunpack.c.0.s8 %v3204
        %v3206 = vlaneseq
        %v3207 = vshrl.u32 %v3206, 7
        %v3208 = vsub.s32 %v3205, %v3207
        %v3209 = vrot.slane %v3193, %v3208
        %v3211 = vunpack.c.l.s4 1966171168
        %v3212 = vunpack.c.0.s8 %v3211
        %v3213 = vlaneseq
        %v3214 = vshrl.u32 %v3213, 7
        %v3215 = vsub.s32 %v3212, %v3214
        %v3216 = vrot.slane %v3194, %v3215
        %v3218 = vunpack.c.l.s4 1966171168
        %v3219 = vunpack.c.0.s8 %v3218
        %v3220 = vlaneseq
        %v3221 = vshrl.u32 %v3220, 7
        %v3222 = vsub.s32 %v3219, %v3221
        %v3223 = vrot.slane %v3195, %v3222
        %v3224 = vcombine.low %v3202, %v3209
        %v3225 = vcombine.low %v3216, %v3223
        %v3227 = vunpack.c.l.s4 1966171168
        %v3228 = vunpack.c.0.s8 %v3227
        %v3229 = vlaneseq
        %v3230 = vshrl.u32 %v3229, 7
        %v3231 = vsub.s32 %v3228, %v3230
        %v3232 = vrot.slane %v3224, %v3231
        %v3234 = vunpack.c.l.s4 1966171168
        %v3235 = vunpack.c.0.s8 %v3234
        %v3236 = vlaneseq
        %v3237 = vshrl.u32 %v3236, 7
        %v3238 = vsub.s32 %v3235, %v3237
        %v3239 = vrot.slane %v3225, %v3238
        %v3240 = vcombine.low %v3232, %v3239
        %v3241 = vcombine.low %v3186, %v3187
        %v3242 = vcombine.low %v3188, %v3189
        %v3243 = vcombine.low %v3190, %v3170
        %v3245 = vunpack.c.l.s4 1966171168
        %v3246 = vunpack.c.0.s8 %v3245
        %v3247 = vlaneseq
        %v3248 = vshrl.u32 %v3247, 7
        %v3249 = vsub.s32 %v3246, %v3248
        %v3250 = vrot.slane %v3241, %v3249
        %v3252 = vunpack.c.l.s4 1966171168
        %v3253 = vunpack.c.0.s8 %v3252
        %v3254 = vlaneseq
        %v3255 = vshrl.u32 %v3254, 7
        %v3256 = vsub.s32 %v3253, %v3255
        %v3257 = vrot.slane %v3242, %v3256
        %v3259 = vunpack.c.l.s4 1966171168
        %v3260 = vunpack.c.0.s8 %v3259
        %v3261 = vlaneseq
        %v3262 = vshrl.u32 %v3261, 7
        %v3263 = vsub.s32 %v3260, %v3262
        %v3264 = vrot.slane %v3243, %v3263
        %v3265 = vcombine.low %v3250, %v3257
        %v3267 = vunpack.c.l.s4 1966171168
        %v3268 = vunpack.c.0.s8 %v3267
        %v3269 = vlaneseq
        %v3270 = vshrl.u32 %v3269, 7
        %v3271 = vsub.s32 %v3268, %v3270
        %v3272 = vrot.slane %v3265, %v3271
        %v3274 = vunpack.c.l.s4 1966171168
        %v3275 = vunpack.c.0.s8 %v3274
        %v3276 = vlaneseq
        %v3277 = vshrl.u32 %v3276, 7
        %v3278 = vsub.s32 %v3275, %v3277
        %v3279 = vrot.slane %v3264, %v3278
        %v3280 = vcombine.low %v3272, %v3279
        %vm3282 = vcmask 220160
        %v3283 = vsel %vm3282, %v2987, 0
        %v3285 = vsel %vm3282, %v2989, 0
        %v3287 = vsel %vm3282, %v2991, 0
        %v3289 = vsel %vm3282, %v2993, 0
        %v3291 = vsel %vm3282, %v2995, 0
        %v3293 = vsel %vm3282, %v2997, 0
        %v3295 = vsel %vm3282, %v2999, 0
        %v3297 = vsel %vm3282, %v3001, 0
        %v3299 = vsel %vm3282, %v3003, 0
        %v3301 = vsel %vm3282, %v3005, 0
        %v3303 = vsel %vm3282, %v3007, 0
        %v3305 = vsel %vm3282, %v3009, 0
        %v3307 = vsel %vm3282, %v3011, 0
        %v3309 = vsel %vm3282, %v3013, 0
        %v3311 = vsel %vm3282, %v3015, 0
        %v3313 = vsel %vm3282, %v3017, 0
        %vm3315 = vcmask 1044480
        %vm3316 = vcmask 1045504
        %v3317 = vsel %vm3315, 4294967295, 65535
        %v3318 = vsel %vm3316, %v3317, 0
        %v3320 = vand.u32 %v3280, %v3318
        %3322 = vmatprep.subr.bf16.mxu0 0
        %3323 = vmatpush1.bf16.msra.mxu0 %v3240
        %3324 = vmatprep.subr.bf16.mxu0 0
        %3325 = vmatpush1.bf16.msra.mxu0 %v3320
        %3326 = vmatprep.subr.bf16.mxu0 0
        %3327 = vmatpush1.bf16.msra.mxu0 0
        %3328 = vmatprep.subr.bf16.mxu0 0
        %3329 = vmatpush1.bf16.msra.mxu0 0
        %3330 = vmatprep.subr.bf16.mxu0 0
        %3331 = vmatpush1.bf16.msra.mxu0 0
        %3332 = vmatprep.subr.bf16.mxu0 0
        %3333 = vmatpush1.bf16.msra.mxu0 0
        %3334 = vmatprep.subr.bf16.mxu0 0
        %3335 = vmatpush1.bf16.msra.mxu0 0
        %3336 = vmatprep.subr.bf16.mxu0 0
        %3337 = vmatpush1.bf16.msra.mxu0 0
        %3338 = vmatprep.subr.bf16.mxu0 0
        %3339 = vmatpush1.bf16.msra.mxu0 0
        %3340 = vmatprep.subr.bf16.mxu0 0
        %3341 = vmatpush1.bf16.msra.mxu0 0
        %3342 = vmatprep.subr.bf16.mxu0 0
        %3343 = vmatpush1.bf16.msra.mxu0 0
        %3344 = vmatprep.subr.bf16.mxu0 0
        %3345 = vmatpush1.bf16.msra.mxu0 0
        %3346 = vmatprep.subr.bf16.mxu0 0
        %3347 = vmatpush1.bf16.msra.mxu0 0
        %3348 = vmatprep.subr.bf16.mxu0 0
        %3349 = vmatpush1.bf16.msra.mxu0 0
        %3350 = vmatprep.subr.bf16.mxu0 0
        %3351 = vmatpush1.bf16.msra.mxu0 0
        %3352 = vmatprep.subr.bf16.mxu0 0
        %3353 = vmatpush1.bf16.msra.mxu0 0
        %3354 = vmatprep.mubr.bf16.mxu0 0
        %3355 = vmatmul.mubr.bf16.gmra.mrb[0].mxu0 %v3283
        %v3356 = vpop.f32.mrb[0].mxu0
        %v3357 = vadd.f32 %v3176, %v3356
        %v3358 = vpop.f32.mrb[0].mxu0
        %v3359 = vpop.f32.mrb[0].mxu0
        %v3360 = vadd.f32 %v3176, %v3359
        %v3361 = vpop.f32.mrb[0].mxu0
        %3362 = vmatprep.mubr.bf16.mxu0 0
        %3363 = vmatmul.mubr.bf16.gmra.mrb[0].mxu0 %v3285
        %v3364 = vpop.f32.mrb[0].mxu0
        %v3365 = vadd.f32 %v3176, %v3364
        %v3366 = vpop.f32.mrb[0].mxu0
        %v3367 = vpop.f32.mrb[0].mxu0
        %v3368 = vadd.f32 %v3176, %v3367
        %v3369 = vpop.f32.mrb[0].mxu0
        %3370 = vmatprep.mubr.bf16.mxu0 0
        %3371 = vmatmul.mubr.bf16.gmra.mrb[0].mxu0 %v3287
        %v3372 = vpop.f32.mrb[0].mxu0
        %v3373 = vadd.f32 %v3176, %v3372
        %v3374 = vpop.f32.mrb[0].mxu0
        %v3375 = vpop.f32.mrb[0].mxu0
        %v3376 = vadd.f32 %v3176, %v3375
        %v3377 = vpop.f32.mrb[0].mxu0
        %3378 = vmatprep.mubr.bf16.mxu0 0
        %3379 = vmatmul.mubr.bf16.gmra.mrb[0].mxu0 %v3289
        %v3380 = vpop.f32.mrb[0].mxu0
        %v3381 = vadd.f32 %v3176, %v3380
        %v3382 = vpop.f32.mrb[0].mxu0
        %v3383 = vpop.f32.mrb[0].mxu0
        %v3384 = vadd.f32 %v3176, %v3383
        %v3385 = vpop.f32.mrb[0].mxu0
        %3386 = vmatprep.mubr.bf16.mxu0 0
        %3387 = vmatmul.mubr.bf16.gmra.mrb[0].mxu0 %v3291
        %v3388 = vpop.f32.mrb[0].mxu0
        %v3389 = vadd.f32 %v3176, %v3388
        %v3390 = vpop.f32.mrb[0].mxu0
        %v3391 = vpop.f32.mrb[0].mxu0
        %v3392 = vadd.f32 %v3176, %v3391
        %v3393 = vpop.f32.mrb[0].mxu0
        %3394 = vmatprep.mubr.bf16.mxu0 0
        %3395 = vmatmul.mubr.bf16.gmra.mrb[0].mxu0 %v3293
        %v3396 = vpop.f32.mrb[0].mxu0
        %v3397 = vadd.f32 %v3176, %v3396
        %v3398 = vpop.f32.mrb[0].mxu0
        %v3399 = vpop.f32.mrb[0].mxu0
        %v3400 = vadd.f32 %v3176, %v3399
        %v3401 = vpop.f32.mrb[0].mxu0
        %3402 = vmatprep.mubr.bf16.mxu0 0
        %3403 = vmatmul.mubr.bf16.gmra.mrb[0].mxu0 %v3295
        %v3404 = vpop.f32.mrb[0].mxu0
        %v3405 = vadd.f32 %v3176, %v3404
        %v3406 = vpop.f32.mrb[0].mxu0
        %v3407 = vpop.f32.mrb[0].mxu0
        %v3408 = vadd.f32 %v3176, %v3407
        %v3409 = vpop.f32.mrb[0].mxu0
        %3410 = vmatprep.mubr.bf16.mxu0 0
        %3411 = vmatmul.mubr.bf16.gmra.mrb[0].mxu0 %v3297
        %v3412 = vpop.f32.mrb[0].mxu0
        %v3413 = vadd.f32 %v3176, %v3412
        %v3414 = vpop.f32.mrb[0].mxu0
        %v3415 = vpop.f32.mrb[0].mxu0
        %v3416 = vadd.f32 %v3176, %v3415
        %v3417 = vpop.f32.mrb[0].mxu0
        %3418 = vmatprep.mubr.bf16.mxu0 0
        %3419 = vmatmul.mubr.bf16.gmra.mrb[0].mxu0 %v3299
        %v3420 = vpop.f32.mrb[0].mxu0
        %v3421 = vadd.f32 %v3176, %v3420
        %v3422 = vpop.f32.mrb[0].mxu0
        %v3423 = vpop.f32.mrb[0].mxu0
        %v3424 = vadd.f32 %v3176, %v3423
        %v3425 = vpop.f32.mrb[0].mxu0
        %3426 = vmatprep.mubr.bf16.mxu0 0
        %3427 = vmatmul.mubr.bf16.gmra.mrb[0].mxu0 %v3301
        %v3428 = vpop.f32.mrb[0].mxu0
        %v3429 = vadd.f32 %v3176, %v3428
        %v3430 = vpop.f32.mrb[0].mxu0
        %v3431 = vpop.f32.mrb[0].mxu0
        %v3432 = vadd.f32 %v3176, %v3431
        %v3433 = vpop.f32.mrb[0].mxu0
        %3434 = vmatprep.mubr.bf16.mxu0 0
        %3435 = vmatmul.mubr.bf16.gmra.mrb[0].mxu0 %v3303
        %v3436 = vpop.f32.mrb[0].mxu0
        %v3437 = vadd.f32 %v3176, %v3436
        %v3438 = vpop.f32.mrb[0].mxu0
        %v3439 = vpop.f32.mrb[0].mxu0
        %v3440 = vadd.f32 %v3176, %v3439
        %v3441 = vpop.f32.mrb[0].mxu0
        %3442 = vmatprep.mubr.bf16.mxu0 0
        %3443 = vmatmul.mubr.bf16.gmra.mrb[0].mxu0 %v3305
        %v3444 = vpop.f32.mrb[0].mxu0
        %v3445 = vadd.f32 %v3176, %v3444
        %v3446 = vpop.f32.mrb[0].mxu0
        %v3447 = vpop.f32.mrb[0].mxu0
        %v3448 = vadd.f32 %v3176, %v3447
        %v3449 = vpop.f32.mrb[0].mxu0
        %3450 = vmatprep.mubr.bf16.mxu0 0
        %3451 = vmatmul.mubr.bf16.gmra.mrb[0].mxu0 %v3307
        %v3452 = vpop.f32.mrb[0].mxu0
        %v3453 = vadd.f32 %v3176, %v3452
        %v3454 = vpop.f32.mrb[0].mxu0
        %v3455 = vpop.f32.mrb[0].mxu0
        %v3456 = vadd.f32 %v3176, %v3455
        %v3457 = vpop.f32.mrb[0].mxu0
        %3458 = vmatprep.mubr.bf16.mxu0 0
        %3459 = vmatmul.mubr.bf16.gmra.mrb[0].mxu0 %v3309
        %v3460 = vpop.f32.mrb[0].mxu0
        %v3461 = vadd.f32 %v3176, %v3460
        %v3462 = vpop.f32.mrb[0].mxu0
        %v3463 = vpop.f32.mrb[0].mxu0
        %v3464 = vadd.f32 %v3176, %v3463
        %v3465 = vpop.f32.mrb[0].mxu0
        %3466 = vmatprep.mubr.bf16.mxu0 0
        %3467 = vmatmul.mubr.bf16.gmra.mrb[0].mxu0 %v3311
        %v3468 = vpop.f32.mrb[0].mxu0
        %v3469 = vadd.f32 %v3176, %v3468
        %v3470 = vpop.f32.mrb[0].mxu0
        %v3471 = vpop.f32.mrb[0].mxu0
        %v3472 = vadd.f32 %v3176, %v3471
        %v3473 = vpop.f32.mrb[0].mxu0
        %3474 = vmatprep.mubr.bf16.mxu0 0
        %3475 = vmatmul.mubr.bf16.gmra.mrb[0].mxu0 %v3313
        %v3476 = vpop.f32.mrb[0].mxu0
        %v3477 = vadd.f32 %v3176, %v3476
        %v3478 = vpop.f32.mrb[0].mxu0
        %v3479 = vpop.f32.mrb[0].mxu0
        %v3480 = vadd.f32 %v3176, %v3479
        %v3481 = vpop.f32.mrb[0].mxu0
        %3482 = vdwg.mxu0
        %v3483 = vmax.f32 %v3357, 0.0
        %v3484 = vmax.f32 %v3360, 0.0
        %v3485 = vmax.f32 %v3365, 0.0
        %v3486 = vmax.f32 %v3368, 0.0
        %v3487 = vmax.f32 %v3373, 0.0
        %v3488 = vmax.f32 %v3376, 0.0
        %v3489 = vmax.f32 %v3381, 0.0
        %v3490 = vmax.f32 %v3384, 0.0
        %v3491 = vmax.f32 %v3389, 0.0
        %v3492 = vmax.f32 %v3392, 0.0
        %v3493 = vmax.f32 %v3397, 0.0
        %v3494 = vmax.f32 %v3400, 0.0
        %v3495 = vmax.f32 %v3405, 0.0
        %v3496 = vmax.f32 %v3408, 0.0
        %v3497 = vmax.f32 %v3413, 0.0
        %v3498 = vmax.f32 %v3416, 0.0
        %v3499 = vmax.f32 %v3421, 0.0
        %v3500 = vmax.f32 %v3424, 0.0
        %v3501 = vmax.f32 %v3429, 0.0
        %v3502 = vmax.f32 %v3432, 0.0
        %v3503 = vmax.f32 %v3437, 0.0
        %v3504 = vmax.f32 %v3440, 0.0
        %v3505 = vmax.f32 %v3445, 0.0
        %v3506 = vmax.f32 %v3448, 0.0
        %v3507 = vmax.f32 %v3453, 0.0
        %v3508 = vmax.f32 %v3456, 0.0
        %v3509 = vmax.f32 %v3461, 0.0
        %v3510 = vmax.f32 %v3464, 0.0
        %v3511 = vmax.f32 %v3469, 0.0
        %v3512 = vmax.f32 %v3472, 0.0
        %v3513 = vmax.f32 %v3477, 0.0
        %v3514 = vmax.f32 %v3480, 0.0
        %v3515 = vpack.c.bf16 %v3484, %v3483
        %v3516 = vpack.c.bf16 %v3486, %v3485
        %v3517 = vpack.c.bf16 %v3488, %v3487
        %v3518 = vpack.c.bf16 %v3490, %v3489
        %v3519 = vpack.c.bf16 %v3492, %v3491
        %v3520 = vpack.c.bf16 %v3494, %v3493
        %v3521 = vpack.c.bf16 %v3496, %v3495
        %v3522 = vpack.c.bf16 %v3498, %v3497
        %v3523 = vpack.c.bf16 %v3500, %v3499
        %v3524 = vpack.c.bf16 %v3502, %v3501
        %v3525 = vpack.c.bf16 %v3504, %v3503
        %v3526 = vpack.c.bf16 %v3506, %v3505
        %v3527 = vpack.c.bf16 %v3508, %v3507
        %v3528 = vpack.c.bf16 %v3510, %v3509
        %v3529 = vpack.c.bf16 %v3512, %v3511
        %v3530 = vpack.c.bf16 %v3514, %v3513
        %v3547 = vunpack.c.l.b16 %v3515
        %v3548 = vunpack.c.h.b16 %v3515
        %v3549 = vunpack.c.l.b16 %v3516
        %v3550 = vunpack.c.h.b16 %v3516
        %v3551 = vunpack.c.l.b16 %v3517
        %v3552 = vunpack.c.h.b16 %v3517
        %v3553 = vunpack.c.l.b16 %v3518
        %v3554 = vunpack.c.h.b16 %v3518
        %v3555 = vunpack.c.l.b16 %v3519
        %v3556 = vunpack.c.h.b16 %v3519
        %v3557 = vunpack.c.l.b16 %v3520
        %v3558 = vunpack.c.h.b16 %v3520
        %v3559 = vunpack.c.l.b16 %v3521
        %v3560 = vunpack.c.h.b16 %v3521
        %v3561 = vunpack.c.l.b16 %v3522
        %v3562 = vunpack.c.h.b16 %v3522
        %v3563 = vunpack.c.l.b16 %v3523
        %v3564 = vunpack.c.h.b16 %v3523
        %v3565 = vunpack.c.l.b16 %v3524
        %v3566 = vunpack.c.h.b16 %v3524
        %v3567 = vunpack.c.l.b16 %v3525
        %v3568 = vunpack.c.h.b16 %v3525
        %v3569 = vunpack.c.l.b16 %v3526
        %v3570 = vunpack.c.h.b16 %v3526
        %v3571 = vunpack.c.l.b16 %v3527
        %v3572 = vunpack.c.h.b16 %v3527
        %v3573 = vunpack.c.l.b16 %v3528
        %v3574 = vunpack.c.h.b16 %v3528
        %v3575 = vunpack.c.l.b16 %v3529
        %v3576 = vunpack.c.h.b16 %v3529
        %v3577 = vunpack.c.l.b16 %v3530
        %v3578 = vunpack.c.h.b16 %v3530
        %v3579 = vpack.c.b16 %v3547, %v3547
        %v3580 = vpack.c.b16 %v3548, %v3548
        %v3581 = vpack.c.b16 %v3549, %v3549
        %v3582 = vpack.c.b16 %v3550, %v3550
        %v3583 = vpack.c.b16 %v3551, %v3551
        %v3584 = vpack.c.b16 %v3552, %v3552
        %v3585 = vpack.c.b16 %v3553, %v3553
        %v3586 = vpack.c.b16 %v3554, %v3554
        %v3587 = vpack.c.b16 %v3555, %v3555
        %v3588 = vpack.c.b16 %v3556, %v3556
        %v3589 = vpack.c.b16 %v3557, %v3557
        %v3590 = vpack.c.b16 %v3558, %v3558
        %v3591 = vpack.c.b16 %v3559, %v3559
        %v3592 = vpack.c.b16 %v3560, %v3560
        %v3593 = vpack.c.b16 %v3561, %v3561
        %v3594 = vpack.c.b16 %v3562, %v3562
        %v3595 = vpack.c.b16 %v3563, %v3563
        %v3596 = vpack.c.b16 %v3564, %v3564
        %v3597 = vpack.c.b16 %v3565, %v3565
        %v3598 = vpack.c.b16 %v3566, %v3566
        %v3599 = vpack.c.b16 %v3567, %v3567
        %v3600 = vpack.c.b16 %v3568, %v3568
        %v3601 = vpack.c.b16 %v3569, %v3569
        %v3602 = vpack.c.b16 %v3570, %v3570
        %v3603 = vpack.c.b16 %v3571, %v3571
        %v3604 = vpack.c.b16 %v3572, %v3572
        %v3605 = vpack.c.b16 %v3573, %v3573
        %v3606 = vpack.c.b16 %v3574, %v3574
        %v3607 = vpack.c.b16 %v3575, %v3575
        %v3608 = vpack.c.b16 %v3576, %v3576
        %v3609 = vpack.c.b16 %v3577, %v3577
        %v3610 = vpack.c.b16 %v3578, %v3578
        %vm3643 = vcmask 519168
        %3644 = vst.msk [vmem:[%s334] sm:$0xf] %vm3643, %v3579
        %3645 = vst.msk [vmem:[%s334 + $0x4] sm:$0xf] %vm3643, %v3580
        %3646 = vst.msk [vmem:[%s334 + $0x8] sm:$0xf] %vm3643, %v3581
        %3647 = vst.msk [vmem:[%s334 + $0xc] sm:$0xf] %vm3643, %v3582
        %3648 = vst.msk [vmem:[%s334 + $0x10] sm:$0xf] %vm3643, %v3583
        %3649 = vst.msk [vmem:[%s334 + $0x14] sm:$0xf] %vm3643, %v3584
        %3650 = vst.msk [vmem:[%s334 + $0x18] sm:$0xf] %vm3643, %v3585
        %3651 = vst.msk [vmem:[%s334 + $0x1c] sm:$0xf] %vm3643, %v3586
        %3652 = vst.msk [vmem:[%s334 + $0x20] sm:$0xf] %vm3643, %v3587
        %3653 = vst.msk [vmem:[%s334 + $0x24] sm:$0xf] %vm3643, %v3588
        %3654 = vst.msk [vmem:[%s334 + $0x28] sm:$0xf] %vm3643, %v3589
        %3655 = vst.msk [vmem:[%s334 + $0x2c] sm:$0xf] %vm3643, %v3590
        %3656 = vst.msk [vmem:[%s334 + $0x30] sm:$0xf] %vm3643, %v3591
        %3657 = vst.msk [vmem:[%s334 + $0x34] sm:$0xf] %vm3643, %v3592
        %3658 = vst.msk [vmem:[%s334 + $0x38] sm:$0xf] %vm3643, %v3593
        %3659 = vst.msk [vmem:[%s334 + $0x3c] sm:$0xf] %vm3643, %v3594
        %3660 = vst.msk [vmem:[%s334 + $0x40] sm:$0xf] %vm3643, %v3595
        %3661 = vst.msk [vmem:[%s334 + $0x44] sm:$0xf] %vm3643, %v3596
        %3662 = vst.msk [vmem:[%s334 + $0x48] sm:$0xf] %vm3643, %v3597
        %3663 = vst.msk [vmem:[%s334 + $0x4c] sm:$0xf] %vm3643, %v3598
        %3664 = vst.msk [vmem:[%s334 + $0x50] sm:$0xf] %vm3643, %v3599
        %3665 = vst.msk [vmem:[%s334 + $0x54] sm:$0xf] %vm3643, %v3600
        %3666 = vst.msk [vmem:[%s334 + $0x58] sm:$0xf] %vm3643, %v3601
        %3667 = vst.msk [vmem:[%s334 + $0x5c] sm:$0xf] %vm3643, %v3602
        %3668 = vst.msk [vmem:[%s334 + $0x60] sm:$0xf] %vm3643, %v3603
        %3669 = vst.msk [vmem:[%s334 + $0x64] sm:$0xf] %vm3643, %v3604
        %3670 = vst.msk [vmem:[%s334 + $0x68] sm:$0xf] %vm3643, %v3605
        %3671 = vst.msk [vmem:[%s334 + $0x6c] sm:$0xf] %vm3643, %v3606
        %3672 = vst.msk [vmem:[%s334 + $0x70] sm:$0xf] %vm3643, %v3607
        %3673 = vst.msk [vmem:[%s334 + $0x74] sm:$0xf] %vm3643, %v3608
        %3674 = vst.msk [vmem:[%s334 + $0x78] sm:$0xf] %vm3643, %v3609
        %3675 = vst.msk [vmem:[%s334 + $0x7c] sm:$0xf] %vm3643, %v3610
        %s3676 = sand.u32 %s183, 1
        %s3677 = scalar_lea.sflag [#allocation4], %s3676
        %s3678 = sand.u32 %s183, 1
        %s3679 = smul.addr %s3678, 128
        %s3680 = scalar_lea.vmem [#allocation3], %s3679
        // Predicated region
        $region49: #{tpu_custom_call.1} parent=39 // pred_check
          %p3681 = pneg %p193
        $region50: #{tpu_custom_call.1} parent=39 // pred_check_branch
          %3683 = sbr.rel (%p3681) target = $region52
        $region51: #{tpu_custom_call.1} parent=39 // pred_region
          %s3684 = smul.u32 16, %s24
          %s3686 = ssub.s32 2048, 2048
          %3687 = vsyncadd %s3677, %s3686
          %s3688 = smul.addr %s3684, 2
          %s3689 = smul.addr %s23, 32
          %s3690 = sadd.s32 %s3688, %s3689
          %s3691 = smul.addr %s3690, 64
          %s3692 = scalar_lea.hbm %s5, %s3691
          %s3693 = sshll.u32 %s3680, 4
          %s3694 = int_to_ptr.vmem [resolvable:$true] %s3693
          %3699 = dma.vmem_to_hbm [thread:$0]  %s3694, 2048, %s3692, %s3677, 64, 64, 4
        $region52: #{tpu_custom_call.1} parent=39 // pred_fallthru
          _
      $region40: #{tpu_custom_call.1} parent=5 // pred_fallthru
        _
      %p3700 = scmp.le.s32.totalorder 2, %s14
      // Predicated region
      $region53: #{tpu_custom_call.1} parent=5 // pred_check
        %p3701 = pneg %p3700
      $region54: #{tpu_custom_call.1} parent=5 // pred_check_branch
        %3703 = sbr.rel (%p3701) target = $region56
      $region55: #{tpu_custom_call.1} parent=5 // pred_region
        %s3704 = ssub.s32 %s14, 2
        // Predicated region
        $region57: #{tpu_custom_call.1} parent=55 // pred_check
          %p3705 = pneg %p199
        $region58: #{tpu_custom_call.1} parent=55 // pred_check_branch
          %3707 = sbr.rel (%p3705) target = $region60
        $region59: #{tpu_custom_call.1} parent=55 // pred_region
          %s3708 = sand.u32 %s184, 1
          %s3709 = scalar_lea.sflag [#allocation4], %s3708
          %s3710 = sand.u32 %s184, 1
          %s3711 = smul.addr %s3710, 128
          %s3712 = scalar_lea.vmem [#allocation3], %s3711
          %3713 = dma.done %s3709, 2048
        $region60: #{tpu_custom_call.1} parent=55 // pred_fallthru
          _
      $region56: #{tpu_custom_call.1} parent=5 // pred_fallthru
        _
    $region6: #{tpu_custom_call.1} parent=1 // loop_footer
      %s18 = sadd.s32 1, %s14
    $region7: #{tpu_custom_call.1} parent=1 // loop_footer_branch
      %13 = sbr.rel target = $region3
    $region8: #{tpu_custom_call.1} parent=1 // loop_exit
      _
    %3714 = vsyncpa [#allocation4], 1
    %s3715 = scalar_lea.sflag [#allocation4], 1
    %3716 = vsyncpa %s3715, 1

</llo_original>
